<compile_context>
chip_gen: v5e
topology: v5e:2x2
jax: 0.10.0
libtpu: 0.0.40
codegen_flags: <defaults>
</compile_context>

<pallas_src>
import functools
import math

import jax
import jax.numpy as jnp
from jax.experimental import pallas as pl
from jax.experimental.pallas import tpu as pltpu


# ----------------------------- config ---------------------------------------

CFG = dict(
    vocab=100,          # synthetic vocab
    hidden=128,         # embedding_dim (lane-dense stand-in for 768)
    heads=4,
    layers=2,
    intermediate=256,
    max_pos=16,
    eps=1e-12,          # BERT LayerNorm eps
)

_VMEM = pl.BlockSpec(memory_space=pltpu.MemorySpace.VMEM)


# ----------------------------- Pallas kernel ---------------------------------

def _encoder_kernel(emb_ref, mask_ref, eg_ref, eb_ref, *rest,
                    nb, seq, heads, dh, n_layers, eps):
    """Whole BERT encoder (emb-LayerNorm + n_layers layers), fully in VMEM.

    emb_ref : [nb*seq, H]  summed word+pos+type embeddings (pre-LayerNorm)
    mask_ref: [nb, 1, seq] additive attention mask ((1 - m) * -1e4)
    rest    : 12 weight/bias refs per layer, then the output ref.
    """
    o_ref = rest[-1]
    lrefs = rest[:-1]
    H = heads * dh
    rows = nb * seq

    def layer_norm(x, g_ref, b_ref):
        # One-pass stats: E[x] and E[x^2] are independent reductions that can
        # overlap in the XLU (vs. the sequential mean -> centered-var form).
        mu = jnp.mean(x, axis=-1, keepdims=True)
        ex2 = jnp.mean(x * x, axis=-1, keepdims=True)
        var = jnp.maximum(ex2 - mu * mu, 0.0)
        return (x - mu) * jax.lax.rsqrt(var + eps) * g_ref[...] + b_ref[...]

    x = layer_norm(emb_ref[...], eg_ref, eb_ref)                    # [rows, H]

    # Mask broadcast hoisted once; reused by every head and every layer.
    mask_b = jnp.broadcast_to(mask_ref[...], (nb, seq, seq))        # [nb, S, S]

    for li in range(n_layers):                                      # static unroll
        (wqkv, bqkv, wo, bo, ln1g, ln1b,
         w1, fb1, w2, fb2, ln2g, ln2b) = lrefs[12 * li:12 * (li + 1)]

        # --- fused QKV projection (1/sqrt(dh) already folded into Q columns) --
        qkv = jnp.dot(x, wqkv[...],
                      preferred_element_type=jnp.float32) + bqkv[...]  # [rows, 3H]

        # --- multi-head attention; per-head context folded into output proj --
        attn = None
        for h in range(heads):                                      # static unroll
            qh = qkv[:, h * dh:(h + 1) * dh].reshape(nb, seq, dh)
            kh = qkv[:, H + h * dh:H + (h + 1) * dh].reshape(nb, seq, dh)
            vh = qkv[:, 2 * H + h * dh:2 * H + (h + 1) * dh].reshape(nb, seq, dh)

            s = jnp.einsum("bqd,bkd->bqk", qh, kh,
                           preferred_element_type=jnp.float32) + mask_b
            mx = jnp.max(s, axis=-1, keepdims=True)
            p = jnp.exp(s - mx)
            # Softmax denominator -> EUP approximate reciprocal (frees VALU).
            p = p * pl.reciprocal(jnp.sum(p, axis=-1, keepdims=True), approx=True)
            ctx = jnp.einsum("bqk,bkd->bqd", p, vh,
                             preferred_element_type=jnp.float32)     # [nb,S,dh]
            part = jnp.dot(ctx.reshape(rows, dh), wo[h * dh:(h + 1) * dh, :],
                           preferred_element_type=jnp.float32)       # [rows, H]
            attn = part if attn is None else attn + part
        attn = attn + bo[...]

        # --- residual + LayerNorm -------------------------------------------
        h1 = layer_norm(attn + x, ln1g, ln1b)

        # --- FFN with GELU + residual + LayerNorm ----------------------------
        f = jnp.dot(h1, w1[...], preferred_element_type=jnp.float32) + fb1[...]
        # TODO(synk): HF BERT uses exact erf-GELU; tanh approximation kept
        # because erf lowering inside Mosaic kernels is not guaranteed across
        # JAX versions (numeric deviation is negligible at inference).
        c = math.sqrt(2.0 / math.pi)
        f = 0.5 * f * (1.0 + jnp.tanh(c * (f + 0.044715 * f * f * f)))
        f = jnp.dot(f, w2[...], preferred_element_type=jnp.float32) + fb2[...]

        x = layer_norm(f + h1, ln2g, ln2b)

    o_ref[...] = x                                                   # lane-dense (H=128)


def bert_encoder(params, emb_flat, add_mask, cfg):
    """emb_flat:[2B*S,H], add_mask:[2B,1,S] (additive) -> [2B*S,H]."""
    BS, H = emb_flat.shape
    nb = add_mask.shape[0]
    S = BS // nb
    nH = cfg["heads"]
    dH = H // nH

    flat = []
    for lp in params["layers"]:
        flat += [lp["wqkv"], lp["bqkv"], lp["wo"], lp["bo"],
                 lp["ln1_g"], lp["ln1_b"], lp["w1"], lp["b1"],
                 lp["w2"], lp["b2"], lp["ln2_g"], lp["ln2_b"]]

    kern = functools.partial(_encoder_kernel, nb=nb, seq=S, heads=nH, dh=dH,
                             n_layers=len(params["layers"]), eps=cfg["eps"])

    # Single launch, no grid: activations (~16 KB) and f32 weights (~1 MB) are
    # trivially VMEM-resident, so BlockSpec pipelining / Buffered(1) weight
    # specs / megacore batch splitting would only add per-step overhead here.
    # TODO(synk): at real BERT-base sizes, reintroduce a 2-step "parallel"
    # batch grid for v7x, bf16 matmul operands (f32 accumulation), and
    # Buffered(1) on the constant weight specs to fit v7x's 64 MiB VMEM.
    return pl.pallas_call(
        kern,
        out_shape=jax.ShapeDtypeStruct((BS, H), jnp.float32),
        in_specs=[_VMEM] * (4 + len(flat)),
        out_specs=_VMEM,
    )(emb_flat, add_mask, params["emb_ln_g"], params["emb_ln_b"], *flat)


# ----------------------------- parameters ------------------------------------

def init_params(key, cfg):
    H, I = cfg["hidden"], cfg["intermediate"]
    dh = H // cfg["heads"]
    scale = 1.0 / math.sqrt(dh)
    keys = iter(jax.random.split(key, 4 + 6 * cfg["layers"]))

    def norm(shape, k, std=0.02):
        return (std * jax.random.normal(k, shape)).astype(jnp.float32)

    params = {
        "word_emb": norm((cfg["vocab"], H), next(keys)),
        "pos_emb": norm((cfg["max_pos"], H), next(keys)),
        "type_emb": norm((2, H), next(keys)),
        "emb_ln_g": jnp.ones((1, H), jnp.float32),
        "emb_ln_b": jnp.zeros((1, H), jnp.float32),
        "layers": [],
    }
    for _ in range(cfg["layers"]):
        wq, wk, wv = (norm((H, H), next(keys)) for _ in range(3))
        bq = bk = bv = jnp.zeros((1, H), jnp.float32)
        layer = {
            # Fused [H, 3H] QKV weight with 1/sqrt(dh) folded into the Q
            # columns (and Q bias) -> no score scaling at runtime.
            "wqkv": jnp.concatenate([wq * scale, wk, wv], axis=1),
            "bqkv": jnp.concatenate([bq * scale, bk, bv], axis=1),
            "wo": norm((H, H), next(keys)), "bo": jnp.zeros((1, H), jnp.float32),
            "ln1_g": jnp.ones((1, H), jnp.float32), "ln1_b": jnp.zeros((1, H), jnp.float32),
            "w1": norm((H, I), next(keys)), "b1": jnp.zeros((1, I), jnp.float32),
            "w2": norm((I, H), next(keys)), "b2": jnp.zeros((1, H), jnp.float32),
            "ln2_g": jnp.ones((1, H), jnp.float32), "ln2_b": jnp.zeros((1, H), jnp.float32),
        }
        params["layers"].append(layer)

    # self.v = nn.Parameter(torch.randn(embedding_dim, 1)); xavier_uniform_
    bound = math.sqrt(6.0 / (H + 1))
    params["v"] = jax.random.uniform(next(keys), (H, 1), jnp.float32,
                                     minval=-bound, maxval=bound)
    return params


# ----------------------------- model forward ---------------------------------

def bert_binary_classifier_forward(params, ids1, mask1, ids2, mask2, cfg):
    B, S = ids1.shape
    H = cfg["hidden"]

    # Batch both sentences into a single 2B-row encoder pass.
    ids = jnp.concatenate([ids1, ids2], axis=0)                     # [2B, S]
    amask = jnp.concatenate([mask1, mask2], axis=0)                 # [2B, S]

    # Embedding gathers are glue (data-dependent gather left to XLA); the rest
    # of the encoder is ONE fused Pallas kernel.
    pos = jnp.arange(S)
    emb = (params["word_emb"][ids]
           + params["pos_emb"][pos][None, :, :]
           + params["type_emb"][0][None, None, :])                  # [2B, S, H]
    add_mask = ((1.0 - amask.astype(jnp.float32)) * -10000.0)[:, None, :]

    hidden = bert_encoder(params, emb.reshape(2 * B * S, H), add_mask, cfg)
    cls = hidden.reshape(2 * B, S, H)[:, 0, :]                      # [2B, H]
    # Classifier head (<100 FLOPs) stays in plain JAX: a dedicated pallas_call
    # would only add launch cost + masked 2-lane stores.
    scores = jnp.squeeze(cls @ params["v"], axis=-1)                # [2B]
    return jnp.stack([scores[:B], scores[B:]], axis=-1)             # [B, 2]


# ----------------------------- main ------------------------------------------

if __name__ == "__main__":
    key = jax.random.PRNGKey(0)
    k_param, k_ids1, k_ids2 = jax.random.split(key, 3)

    B, S = 2, 8
    params = init_params(k_param, CFG)

    input_ids_s1 = jax.random.randint(k_ids1, (B, S), 0, CFG["vocab"], dtype=jnp.int32)
    input_ids_s2 = jax.random.randint(k_ids2, (B, S), 0, CFG["vocab"], dtype=jnp.int32)
    # first example fully attended, second example has 2 padded tokens at the end
    attention_mask_s1 = jnp.array([[1] * S, [1] * (S - 2) + [0, 0]], dtype=jnp.int32)
    attention_mask_s2 = jnp.array([[1] * (S - 2) + [0, 0], [1] * S], dtype=jnp.int32)

    fwd = jax.jit(lambda p, a, b, c, d: bert_binary_classifier_forward(p, a, b, c, d, CFG))
    logits = fwd(params, input_ids_s1, attention_mask_s1,
                 input_ids_s2, attention_mask_s2)
    jax.block_until_ready(logits)

    assert logits.shape == (B, 2) and logits.dtype == jnp.float32
    print("KERNEL_OK")
</pallas_src>

<mosaic_0001>
module attributes {stable_mosaic.version = 11 : i64} {
  func.func @_encoder_kernel(%arg0: memref<32x128xf32, #tpu.memory_space<vmem>>, %arg1: memref<4x1x8xf32, #tpu.memory_space<vmem>>, %arg2: memref<1x128xf32, #tpu.memory_space<vmem>>, %arg3: memref<1x128xf32, #tpu.memory_space<vmem>>, %arg4: memref<128x384xf32, #tpu.memory_space<vmem>>, %arg5: memref<1x384xf32, #tpu.memory_space<vmem>>, %arg6: memref<128x128xf32, #tpu.memory_space<vmem>>, %arg7: memref<1x128xf32, #tpu.memory_space<vmem>>, %arg8: memref<1x128xf32, #tpu.memory_space<vmem>>, %arg9: memref<1x128xf32, #tpu.memory_space<vmem>>, %arg10: memref<128x256xf32, #tpu.memory_space<vmem>>, %arg11: memref<1x256xf32, #tpu.memory_space<vmem>>, %arg12: memref<256x128xf32, #tpu.memory_space<vmem>>, %arg13: memref<1x128xf32, #tpu.memory_space<vmem>>, %arg14: memref<1x128xf32, #tpu.memory_space<vmem>>, %arg15: memref<1x128xf32, #tpu.memory_space<vmem>>, %arg16: memref<128x384xf32, #tpu.memory_space<vmem>>, %arg17: memref<1x384xf32, #tpu.memory_space<vmem>>, %arg18: memref<128x128xf32, #tpu.memory_space<vmem>>, %arg19: memref<1x128xf32, #tpu.memory_space<vmem>>, %arg20: memref<1x128xf32, #tpu.memory_space<vmem>>, %arg21: memref<1x128xf32, #tpu.memory_space<vmem>>, %arg22: memref<128x256xf32, #tpu.memory_space<vmem>>, %arg23: memref<1x256xf32, #tpu.memory_space<vmem>>, %arg24: memref<256x128xf32, #tpu.memory_space<vmem>>, %arg25: memref<1x128xf32, #tpu.memory_space<vmem>>, %arg26: memref<1x128xf32, #tpu.memory_space<vmem>>, %arg27: memref<1x128xf32, #tpu.memory_space<vmem>>, %arg28: memref<32x128xf32, #tpu.memory_space<vmem>>) attributes {dimension_semantics = [], scalar_prefetch = 0 : i64, scratch_operands = 0 : i64, tpu.core_type = #tpu.core_type<tc>} {
    %c0 = arith.constant 0 : index
    %c0_0 = arith.constant 0 : index
    %0 = vector.load %arg0[%c0, %c0_0] : memref<32x128xf32, #tpu.memory_space<vmem>>, vector<32x128xf32>
    %cst = arith.constant dense<0.000000e+00> : vector<32xf32>
    %1 = vector.multi_reduction <add>, %0, %cst [1] : vector<32x128xf32> to vector<32xf32>
    %2 = vector.shape_cast %1 : vector<32xf32> to vector<32x1xf32>
    %cst_1 = arith.constant 1.280000e+02 : f32
    %3 = vector.broadcast %cst_1 : f32 to vector<32x1xf32>
    %4 = arith.divf %2, %3 : vector<32x1xf32>
    %5 = arith.mulf %0, %0 : vector<32x128xf32>
    %cst_2 = arith.constant dense<0.000000e+00> : vector<32xf32>
    %6 = vector.multi_reduction <add>, %5, %cst_2 [1] : vector<32x128xf32> to vector<32xf32>
    %7 = vector.shape_cast %6 : vector<32xf32> to vector<32x1xf32>
    %cst_3 = arith.constant 1.280000e+02 : f32
    %8 = vector.broadcast %cst_3 : f32 to vector<32x1xf32>
    %9 = arith.divf %7, %8 : vector<32x1xf32>
    %10 = arith.mulf %4, %4 : vector<32x1xf32>
    %11 = arith.subf %9, %10 : vector<32x1xf32>
    %cst_4 = arith.constant 0.000000e+00 : f32
    %12 = vector.broadcast %cst_4 : f32 to vector<32x1xf32>
    %13 = arith.maximumf %11, %12 : vector<32x1xf32>
    %14 = vector.broadcast %4 : vector<32x1xf32> to vector<32x128xf32>
    %15 = arith.subf %0, %14 : vector<32x128xf32>
    %cst_5 = arith.constant 9.99999996E-13 : f32
    %16 = vector.broadcast %cst_5 : f32 to vector<32x1xf32>
    %17 = arith.addf %13, %16 : vector<32x1xf32>
    %18 = math.rsqrt %17 : vector<32x1xf32>
    %19 = vector.broadcast %18 : vector<32x1xf32> to vector<32x128xf32>
    %20 = arith.mulf %15, %19 : vector<32x128xf32>
    %c0_6 = arith.constant 0 : index
    %c0_7 = arith.constant 0 : index
    %21 = vector.load %arg2[%c0_6, %c0_7] : memref<1x128xf32, #tpu.memory_space<vmem>>, vector<1x128xf32>
    %22 = vector.broadcast %21 : vector<1x128xf32> to vector<32x128xf32>
    %23 = arith.mulf %20, %22 : vector<32x128xf32>
    %c0_8 = arith.constant 0 : index
    %c0_9 = arith.constant 0 : index
    %24 = vector.load %arg3[%c0_8, %c0_9] : memref<1x128xf32, #tpu.memory_space<vmem>>, vector<1x128xf32>
    %25 = vector.broadcast %24 : vector<1x128xf32> to vector<32x128xf32>
    %26 = arith.addf %23, %25 : vector<32x128xf32>
    %c0_10 = arith.constant 0 : index
    %c0_11 = arith.constant 0 : index
    %c0_12 = arith.constant 0 : index
    %27 = vector.load %arg1[%c0_10, %c0_11, %c0_12] : memref<4x1x8xf32, #tpu.memory_space<vmem>>, vector<4x1x8xf32>
    %28 = vector.shape_cast %27 : vector<4x1x8xf32> to vector<4x1x8xf32>
    %29 = vector.broadcast %28 : vector<4x1x8xf32> to vector<4x8x8xf32>
    %c0_13 = arith.constant 0 : index
    %c0_14 = arith.constant 0 : index
    %30 = vector.load %arg4[%c0_13, %c0_14] : memref<128x384xf32, #tpu.memory_space<vmem>>, vector<128x384xf32>
    %cst_15 = arith.constant dense<0.000000e+00> : vector<32x384xf32>
    %31 = tpu.matmul %26, %30, %cst_15 {dimension_numbers = #tpu.dot_dimension_numbers<[1], [0], [0], [1], [0, 0, 1, 1], [], []>} : vector<32x128xf32>, vector<128x384xf32>, vector<32x384xf32> -> vector<32x384xf32>
    %c0_16 = arith.constant 0 : index
    %c0_17 = arith.constant 0 : index
    %32 = vector.load %arg5[%c0_16, %c0_17] : memref<1x384xf32, #tpu.memory_space<vmem>>, vector<1x384xf32>
    %33 = vector.broadcast %32 : vector<1x384xf32> to vector<32x384xf32>
    %34 = arith.addf %31, %33 : vector<32x384xf32>
    %35 = vector.extract_strided_slice %34 {offsets = [0, 0], sizes = [32, 32], strides = [1, 1]} : vector<32x384xf32> to vector<32x32xf32>
    %36 = vector.shape_cast %35 : vector<32x32xf32> to vector<4x8x32xf32>
    %37 = vector.extract_strided_slice %34 {offsets = [0, 128], sizes = [32, 32], strides = [1, 1]} : vector<32x384xf32> to vector<32x32xf32>
    %38 = vector.shape_cast %37 : vector<32x32xf32> to vector<4x8x32xf32>
    %39 = vector.extract_strided_slice %34 {offsets = [0, 256], sizes = [32, 32], strides = [1, 1]} : vector<32x384xf32> to vector<32x32xf32>
    %40 = vector.shape_cast %39 : vector<32x32xf32> to vector<4x8x32xf32>
    "tpu.trace_start"() <{level = 10 : i32, message = "bqd,bkd->bqk"}> : () -> ()
    %cst_18 = arith.constant dense<0.000000e+00> : vector<4x8x8xf32>
    %41 = tpu.matmul %36, %38, %cst_18 {dimension_numbers = #tpu.dot_dimension_numbers<[2], [2], [1], [1], [0, 0, 0, 1, 1, 1], [0], [0]>} : vector<4x8x32xf32>, vector<4x8x32xf32>, vector<4x8x8xf32> -> vector<4x8x8xf32>
    "tpu.trace_stop"() : () -> ()
    %42 = arith.addf %41, %29 : vector<4x8x8xf32>
    %cst_19 = arith.constant dense<0xFF800000> : vector<4x8xf32>
    %43 = vector.multi_reduction <maximumf>, %42, %cst_19 [2] : vector<4x8x8xf32> to vector<4x8xf32>
    %44 = vector.shape_cast %43 : vector<4x8xf32> to vector<4x8x1xf32>
    %45 = vector.broadcast %44 : vector<4x8x1xf32> to vector<4x8x8xf32>
    %46 = arith.subf %42, %45 : vector<4x8x8xf32>
    %47 = math.exp %46 : vector<4x8x8xf32>
    %cst_20 = arith.constant dense<0.000000e+00> : vector<4x8xf32>
    %48 = vector.multi_reduction <add>, %47, %cst_20 [2] : vector<4x8x8xf32> to vector<4x8xf32>
    %49 = vector.shape_cast %48 : vector<4x8xf32> to vector<4x8x1xf32>
    %50 = tpu.reciprocal %49 {approx = true} : vector<4x8x1xf32> -> vector<4x8x1xf32>
    %51 = vector.broadcast %50 : vector<4x8x1xf32> to vector<4x8x8xf32>
    %52 = arith.mulf %47, %51 : vector<4x8x8xf32>
    "tpu.trace_start"() <{level = 10 : i32, message = "bqk,bkd->bqd"}> : () -> ()
    %cst_21 = arith.constant dense<0.000000e+00> : vector<4x8x32xf32>
    %53 = tpu.matmul %52, %40, %cst_21 {dimension_numbers = #tpu.dot_dimension_numbers<[2], [1], [1], [2], [0, 0, 0, 1, 1, 2], [0], [0]>} : vector<4x8x8xf32>, vector<4x8x32xf32>, vector<4x8x32xf32> -> vector<4x8x32xf32>
    "tpu.trace_stop"() : () -> ()
    %54 = vector.shape_cast %53 : vector<4x8x32xf32> to vector<32x32xf32>
    %c0_22 = arith.constant 0 : index
    %c0_23 = arith.constant 0 : index
    %55 = vector.load %arg6[%c0_22, %c0_23] : memref<128x128xf32, #tpu.memory_space<vmem>>, vector<32x128xf32>
    %cst_24 = arith.constant dense<0.000000e+00> : vector<32x128xf32>
    %56 = tpu.matmul %54, %55, %cst_24 {dimension_numbers = #tpu.dot_dimension_numbers<[1], [0], [0], [1], [0, 0, 1, 1], [], []>} : vector<32x32xf32>, vector<32x128xf32>, vector<32x128xf32> -> vector<32x128xf32>
    %57 = vector.extract_strided_slice %34 {offsets = [0, 32], sizes = [32, 32], strides = [1, 1]} : vector<32x384xf32> to vector<32x32xf32>
    %58 = vector.shape_cast %57 : vector<32x32xf32> to vector<4x8x32xf32>
    %59 = vector.extract_strided_slice %34 {offsets = [0, 160], sizes = [32, 32], strides = [1, 1]} : vector<32x384xf32> to vector<32x32xf32>
    %60 = vector.shape_cast %59 : vector<32x32xf32> to vector<4x8x32xf32>
    %61 = vector.extract_strided_slice %34 {offsets = [0, 288], sizes = [32, 32], strides = [1, 1]} : vector<32x384xf32> to vector<32x32xf32>
    %62 = vector.shape_cast %61 : vector<32x32xf32> to vector<4x8x32xf32>
    "tpu.trace_start"() <{level = 10 : i32, message = "bqd,bkd->bqk"}> : () -> ()
    %cst_25 = arith.constant dense<0.000000e+00> : vector<4x8x8xf32>
    %63 = tpu.matmul %58, %60, %cst_25 {dimension_numbers = #tpu.dot_dimension_numbers<[2], [2], [1], [1], [0, 0, 0, 1, 1, 1], [0], [0]>} : vector<4x8x32xf32>, vector<4x8x32xf32>, vector<4x8x8xf32> -> vector<4x8x8xf32>
    "tpu.trace_stop"() : () -> ()
    %64 = arith.addf %63, %29 : vector<4x8x8xf32>
    %cst_26 = arith.constant dense<0xFF800000> : vector<4x8xf32>
    %65 = vector.multi_reduction <maximumf>, %64, %cst_26 [2] : vector<4x8x8xf32> to vector<4x8xf32>
    %66 = vector.shape_cast %65 : vector<4x8xf32> to vector<4x8x1xf32>
    %67 = vector.broadcast %66 : vector<4x8x1xf32> to vector<4x8x8xf32>
    %68 = arith.subf %64, %67 : vector<4x8x8xf32>
    %69 = math.exp %68 : vector<4x8x8xf32>
    %cst_27 = arith.constant dense<0.000000e+00> : vector<4x8xf32>
    %70 = vector.multi_reduction <add>, %69, %cst_27 [2] : vector<4x8x8xf32> to vector<4x8xf32>
    %71 = vector.shape_cast %70 : vector<4x8xf32> to vector<4x8x1xf32>
    %72 = tpu.reciprocal %71 {approx = true} : vector<4x8x1xf32> -> vector<4x8x1xf32>
    %73 = vector.broadcast %72 : vector<4x8x1xf32> to vector<4x8x8xf32>
    %74 = arith.mulf %69, %73 : vector<4x8x8xf32>
    "tpu.trace_start"() <{level = 10 : i32, message = "bqk,bkd->bqd"}> : () -> ()
    %cst_28 = arith.constant dense<0.000000e+00> : vector<4x8x32xf32>
    %75 = tpu.matmul %74, %62, %cst_28 {dimension_numbers = #tpu.dot_dimension_numbers<[2], [1], [1], [2], [0, 0, 0, 1, 1, 2], [0], [0]>} : vector<4x8x8xf32>, vector<4x8x32xf32>, vector<4x8x32xf32> -> vector<4x8x32xf32>
    "tpu.trace_stop"() : () -> ()
    %76 = vector.shape_cast %75 : vector<4x8x32xf32> to vector<32x32xf32>
    %c32 = arith.constant 32 : index
    %c0_29 = arith.constant 0 : index
    %77 = vector.load %arg6[%c32, %c0_29] : memref<128x128xf32, #tpu.memory_space<vmem>>, vector<32x128xf32>
    %cst_30 = arith.constant dense<0.000000e+00> : vector<32x128xf32>
    %78 = tpu.matmul %76, %77, %cst_30 {dimension_numbers = #tpu.dot_dimension_numbers<[1], [0], [0], [1], [0, 0, 1, 1], [], []>} : vector<32x32xf32>, vector<32x128xf32>, vector<32x128xf32> -> vector<32x128xf32>
    %79 = arith.addf %56, %78 : vector<32x128xf32>
    %80 = vector.extract_strided_slice %34 {offsets = [0, 64], sizes = [32, 32], strides = [1, 1]} : vector<32x384xf32> to vector<32x32xf32>
    %81 = vector.shape_cast %80 : vector<32x32xf32> to vector<4x8x32xf32>
    %82 = vector.extract_strided_slice %34 {offsets = [0, 192], sizes = [32, 32], strides = [1, 1]} : vector<32x384xf32> to vector<32x32xf32>
    %83 = vector.shape_cast %82 : vector<32x32xf32> to vector<4x8x32xf32>
    %84 = vector.extract_strided_slice %34 {offsets = [0, 320], sizes = [32, 32], strides = [1, 1]} : vector<32x384xf32> to vector<32x32xf32>
    %85 = vector.shape_cast %84 : vector<32x32xf32> to vector<4x8x32xf32>
    "tpu.trace_start"() <{level = 10 : i32, message = "bqd,bkd->bqk"}> : () -> ()
    %cst_31 = arith.constant dense<0.000000e+00> : vector<4x8x8xf32>
    %86 = tpu.matmul %81, %83, %cst_31 {dimension_numbers = #tpu.dot_dimension_numbers<[2], [2], [1], [1], [0, 0, 0, 1, 1, 1], [0], [0]>} : vector<4x8x32xf32>, vector<4x8x32xf32>, vector<4x8x8xf32> -> vector<4x8x8xf32>
    "tpu.trace_stop"() : () -> ()
    %87 = arith.addf %86, %29 : vector<4x8x8xf32>
    %cst_32 = arith.constant dense<0xFF800000> : vector<4x8xf32>
    %88 = vector.multi_reduction <maximumf>, %87, %cst_32 [2] : vector<4x8x8xf32> to vector<4x8xf32>
    %89 = vector.shape_cast %88 : vector<4x8xf32> to vector<4x8x1xf32>
    %90 = vector.broadcast %89 : vector<4x8x1xf32> to vector<4x8x8xf32>
    %91 = arith.subf %87, %90 : vector<4x8x8xf32>
    %92 = math.exp %91 : vector<4x8x8xf32>
    %cst_33 = arith.constant dense<0.000000e+00> : vector<4x8xf32>
    %93 = vector.multi_reduction <add>, %92, %cst_33 [2] : vector<4x8x8xf32> to vector<4x8xf32>
    %94 = vector.shape_cast %93 : vector<4x8xf32> to vector<4x8x1xf32>
    %95 = tpu.reciprocal %94 {approx = true} : vector<4x8x1xf32> -> vector<4x8x1xf32>
    %96 = vector.broadcast %95 : vector<4x8x1xf32> to vector<4x8x8xf32>
    %97 = arith.mulf %92, %96 : vector<4x8x8xf32>
    "tpu.trace_start"() <{level = 10 : i32, message = "bqk,bkd->bqd"}> : () -> ()
    %cst_34 = arith.constant dense<0.000000e+00> : vector<4x8x32xf32>
    %98 = tpu.matmul %97, %85, %cst_34 {dimension_numbers = #tpu.dot_dimension_numbers<[2], [1], [1], [2], [0, 0, 0, 1, 1, 2], [0], [0]>} : vector<4x8x8xf32>, vector<4x8x32xf32>, vector<4x8x32xf32> -> vector<4x8x32xf32>
    "tpu.trace_stop"() : () -> ()
    %99 = vector.shape_cast %98 : vector<4x8x32xf32> to vector<32x32xf32>
    %c64 = arith.constant 64 : index
    %c0_35 = arith.constant 0 : index
    %100 = vector.load %arg6[%c64, %c0_35] : memref<128x128xf32, #tpu.memory_space<vmem>>, vector<32x128xf32>
    %cst_36 = arith.constant dense<0.000000e+00> : vector<32x128xf32>
    %101 = tpu.matmul %99, %100, %cst_36 {dimension_numbers = #tpu.dot_dimension_numbers<[1], [0], [0], [1], [0, 0, 1, 1], [], []>} : vector<32x32xf32>, vector<32x128xf32>, vector<32x128xf32> -> vector<32x128xf32>
    %102 = arith.addf %79, %101 : vector<32x128xf32>
    %103 = vector.extract_strided_slice %34 {offsets = [0, 96], sizes = [32, 32], strides = [1, 1]} : vector<32x384xf32> to vector<32x32xf32>
    %104 = vector.shape_cast %103 : vector<32x32xf32> to vector<4x8x32xf32>
    %105 = vector.extract_strided_slice %34 {offsets = [0, 224], sizes = [32, 32], strides = [1, 1]} : vector<32x384xf32> to vector<32x32xf32>
    %106 = vector.shape_cast %105 : vector<32x32xf32> to vector<4x8x32xf32>
    %107 = vector.extract_strided_slice %34 {offsets = [0, 352], sizes = [32, 32], strides = [1, 1]} : vector<32x384xf32> to vector<32x32xf32>
    %108 = vector.shape_cast %107 : vector<32x32xf32> to vector<4x8x32xf32>
    "tpu.trace_start"() <{level = 10 : i32, message = "bqd,bkd->bqk"}> : () -> ()
    %cst_37 = arith.constant dense<0.000000e+00> : vector<4x8x8xf32>
    %109 = tpu.matmul %104, %106, %cst_37 {dimension_numbers = #tpu.dot_dimension_numbers<[2], [2], [1], [1], [0, 0, 0, 1, 1, 1], [0], [0]>} : vector<4x8x32xf32>, vector<4x8x32xf32>, vector<4x8x8xf32> -> vector<4x8x8xf32>
    "tpu.trace_stop"() : () -> ()
    %110 = arith.addf %109, %29 : vector<4x8x8xf32>
    %cst_38 = arith.constant dense<0xFF800000> : vector<4x8xf32>
    %111 = vector.multi_reduction <maximumf>, %110, %cst_38 [2] : vector<4x8x8xf32> to vector<4x8xf32>
    %112 = vector.shape_cast %111 : vector<4x8xf32> to vector<4x8x1xf32>
    %113 = vector.broadcast %112 : vector<4x8x1xf32> to vector<4x8x8xf32>
    %114 = arith.subf %110, %113 : vector<4x8x8xf32>
    %115 = math.exp %114 : vector<4x8x8xf32>
    %cst_39 = arith.constant dense<0.000000e+00> : vector<4x8xf32>
    %116 = vector.multi_reduction <add>, %115, %cst_39 [2] : vector<4x8x8xf32> to vector<4x8xf32>
    %117 = vector.shape_cast %116 : vector<4x8xf32> to vector<4x8x1xf32>
    %118 = tpu.reciprocal %117 {approx = true} : vector<4x8x1xf32> -> vector<4x8x1xf32>
    %119 = vector.broadcast %118 : vector<4x8x1xf32> to vector<4x8x8xf32>
    %120 = arith.mulf %115, %119 : vector<4x8x8xf32>
    "tpu.trace_start"() <{level = 10 : i32, message = "bqk,bkd->bqd"}> : () -> ()
    %cst_40 = arith.constant dense<0.000000e+00> : vector<4x8x32xf32>
    %121 = tpu.matmul %120, %108, %cst_40 {dimension_numbers = #tpu.dot_dimension_numbers<[2], [1], [1], [2], [0, 0, 0, 1, 1, 2], [0], [0]>} : vector<4x8x8xf32>, vector<4x8x32xf32>, vector<4x8x32xf32> -> vector<4x8x32xf32>
    "tpu.trace_stop"() : () -> ()
    %122 = vector.shape_cast %121 : vector<4x8x32xf32> to vector<32x32xf32>
    %c96 = arith.constant 96 : index
    %c0_41 = arith.constant 0 : index
    %123 = vector.load %arg6[%c96, %c0_41] : memref<128x128xf32, #tpu.memory_space<vmem>>, vector<32x128xf32>
    %cst_42 = arith.constant dense<0.000000e+00> : vector<32x128xf32>
    %124 = tpu.matmul %122, %123, %cst_42 {dimension_numbers = #tpu.dot_dimension_numbers<[1], [0], [0], [1], [0, 0, 1, 1], [], []>} : vector<32x32xf32>, vector<32x128xf32>, vector<32x128xf32> -> vector<32x128xf32>
    %125 = arith.addf %102, %124 : vector<32x128xf32>
    %c0_43 = arith.constant 0 : index
    %c0_44 = arith.constant 0 : index
    %126 = vector.load %arg7[%c0_43, %c0_44] : memref<1x128xf32, #tpu.memory_space<vmem>>, vector<1x128xf32>
    %127 = vector.broadcast %126 : vector<1x128xf32> to vector<32x128xf32>
    %128 = arith.addf %125, %127 : vector<32x128xf32>
    %129 = arith.addf %128, %26 : vector<32x128xf32>
    %cst_45 = arith.constant dense<0.000000e+00> : vector<32xf32>
    %130 = vector.multi_reduction <add>, %129, %cst_45 [1] : vector<32x128xf32> to vector<32xf32>
    %131 = vector.shape_cast %130 : vector<32xf32> to vector<32x1xf32>
    %cst_46 = arith.constant 1.280000e+02 : f32
    %132 = vector.broadcast %cst_46 : f32 to vector<32x1xf32>
    %133 = arith.divf %131, %132 : vector<32x1xf32>
    %134 = arith.mulf %129, %129 : vector<32x128xf32>
    %cst_47 = arith.constant dense<0.000000e+00> : vector<32xf32>
    %135 = vector.multi_reduction <add>, %134, %cst_47 [1] : vector<32x128xf32> to vector<32xf32>
    %136 = vector.shape_cast %135 : vector<32xf32> to vector<32x1xf32>
    %cst_48 = arith.constant 1.280000e+02 : f32
    %137 = vector.broadcast %cst_48 : f32 to vector<32x1xf32>
    %138 = arith.divf %136, %137 : vector<32x1xf32>
    %139 = arith.mulf %133, %133 : vector<32x1xf32>
    %140 = arith.subf %138, %139 : vector<32x1xf32>
    %cst_49 = arith.constant 0.000000e+00 : f32
    %141 = vector.broadcast %cst_49 : f32 to vector<32x1xf32>
    %142 = arith.maximumf %140, %141 : vector<32x1xf32>
    %143 = vector.broadcast %133 : vector<32x1xf32> to vector<32x128xf32>
    %144 = arith.subf %129, %143 : vector<32x128xf32>
    %cst_50 = arith.constant 9.99999996E-13 : f32
    %145 = vector.broadcast %cst_50 : f32 to vector<32x1xf32>
    %146 = arith.addf %142, %145 : vector<32x1xf32>
    %147 = math.rsqrt %146 : vector<32x1xf32>
    %148 = vector.broadcast %147 : vector<32x1xf32> to vector<32x128xf32>
    %149 = arith.mulf %144, %148 : vector<32x128xf32>
    %c0_51 = arith.constant 0 : index
    %c0_52 = arith.constant 0 : index
    %150 = vector.load %arg8[%c0_51, %c0_52] : memref<1x128xf32, #tpu.memory_space<vmem>>, vector<1x128xf32>
    %151 = vector.broadcast %150 : vector<1x128xf32> to vector<32x128xf32>
    %152 = arith.mulf %149, %151 : vector<32x128xf32>
    %c0_53 = arith.constant 0 : index
    %c0_54 = arith.constant 0 : index
    %153 = vector.load %arg9[%c0_53, %c0_54] : memref<1x128xf32, #tpu.memory_space<vmem>>, vector<1x128xf32>
    %154 = vector.broadcast %153 : vector<1x128xf32> to vector<32x128xf32>
    %155 = arith.addf %152, %154 : vector<32x128xf32>
    %c0_55 = arith.constant 0 : index
    %c0_56 = arith.constant 0 : index
    %156 = vector.load %arg10[%c0_55, %c0_56] : memref<128x256xf32, #tpu.memory_space<vmem>>, vector<128x256xf32>
    %cst_57 = arith.constant dense<0.000000e+00> : vector<32x256xf32>
    %157 = tpu.matmul %155, %156, %cst_57 {dimension_numbers = #tpu.dot_dimension_numbers<[1], [0], [0], [1], [0, 0, 1, 1], [], []>} : vector<32x128xf32>, vector<128x256xf32>, vector<32x256xf32> -> vector<32x256xf32>
    %c0_58 = arith.constant 0 : index
    %c0_59 = arith.constant 0 : index
    %158 = vector.load %arg11[%c0_58, %c0_59] : memref<1x256xf32, #tpu.memory_space<vmem>>, vector<1x256xf32>
    %159 = vector.broadcast %158 : vector<1x256xf32> to vector<32x256xf32>
    %160 = arith.addf %157, %159 : vector<32x256xf32>
    %cst_60 = arith.constant 5.000000e-01 : f32
    %161 = vector.broadcast %cst_60 : f32 to vector<32x256xf32>
    %162 = arith.mulf %161, %160 : vector<32x256xf32>
    %cst_61 = arith.constant 4.471500e-02 : f32
    %163 = vector.broadcast %cst_61 : f32 to vector<32x256xf32>
    %164 = arith.mulf %163, %160 : vector<32x256xf32>
    %165 = arith.mulf %164, %160 : vector<32x256xf32>
    %166 = arith.mulf %165, %160 : vector<32x256xf32>
    %167 = arith.addf %160, %166 : vector<32x256xf32>
    %cst_62 = arith.constant 0.797884583 : f32
    %168 = vector.broadcast %cst_62 : f32 to vector<32x256xf32>
    %169 = arith.mulf %168, %167 : vector<32x256xf32>
    %170 = math.tanh %169 : vector<32x256xf32>
    %cst_63 = arith.constant 1.000000e+00 : f32
    %171 = vector.broadcast %cst_63 : f32 to vector<32x256xf32>
    %172 = arith.addf %171, %170 : vector<32x256xf32>
    %173 = arith.mulf %162, %172 : vector<32x256xf32>
    %c0_64 = arith.constant 0 : index
    %c0_65 = arith.constant 0 : index
    %174 = vector.load %arg12[%c0_64, %c0_65] : memref<256x128xf32, #tpu.memory_space<vmem>>, vector<256x128xf32>
    %cst_66 = arith.constant dense<0.000000e+00> : vector<32x128xf32>
    %175 = tpu.matmul %173, %174, %cst_66 {dimension_numbers = #tpu.dot_dimension_numbers<[1], [0], [0], [1], [0, 0, 1, 1], [], []>} : vector<32x256xf32>, vector<256x128xf32>, vector<32x128xf32> -> vector<32x128xf32>
    %c0_67 = arith.constant 0 : index
    %c0_68 = arith.constant 0 : index
    %176 = vector.load %arg13[%c0_67, %c0_68] : memref<1x128xf32, #tpu.memory_space<vmem>>, vector<1x128xf32>
    %177 = vector.broadcast %176 : vector<1x128xf32> to vector<32x128xf32>
    %178 = arith.addf %175, %177 : vector<32x128xf32>
    %179 = arith.addf %178, %155 : vector<32x128xf32>
    %cst_69 = arith.constant dense<0.000000e+00> : vector<32xf32>
    %180 = vector.multi_reduction <add>, %179, %cst_69 [1] : vector<32x128xf32> to vector<32xf32>
    %181 = vector.shape_cast %180 : vector<32xf32> to vector<32x1xf32>
    %cst_70 = arith.constant 1.280000e+02 : f32
    %182 = vector.broadcast %cst_70 : f32 to vector<32x1xf32>
    %183 = arith.divf %181, %182 : vector<32x1xf32>
    %184 = arith.mulf %179, %179 : vector<32x128xf32>
    %cst_71 = arith.constant dense<0.000000e+00> : vector<32xf32>
    %185 = vector.multi_reduction <add>, %184, %cst_71 [1] : vector<32x128xf32> to vector<32xf32>
    %186 = vector.shape_cast %185 : vector<32xf32> to vector<32x1xf32>
    %cst_72 = arith.constant 1.280000e+02 : f32
    %187 = vector.broadcast %cst_72 : f32 to vector<32x1xf32>
    %188 = arith.divf %186, %187 : vector<32x1xf32>
    %189 = arith.mulf %183, %183 : vector<32x1xf32>
    %190 = arith.subf %188, %189 : vector<32x1xf32>
    %cst_73 = arith.constant 0.000000e+00 : f32
    %191 = vector.broadcast %cst_73 : f32 to vector<32x1xf32>
    %192 = arith.maximumf %190, %191 : vector<32x1xf32>
    %193 = vector.broadcast %183 : vector<32x1xf32> to vector<32x128xf32>
    %194 = arith.subf %179, %193 : vector<32x128xf32>
    %cst_74 = arith.constant 9.99999996E-13 : f32
    %195 = vector.broadcast %cst_74 : f32 to vector<32x1xf32>
    %196 = arith.addf %192, %195 : vector<32x1xf32>
    %197 = math.rsqrt %196 : vector<32x1xf32>
    %198 = vector.broadcast %197 : vector<32x1xf32> to vector<32x128xf32>
    %199 = arith.mulf %194, %198 : vector<32x128xf32>
    %c0_75 = arith.constant 0 : index
    %c0_76 = arith.constant 0 : index
    %200 = vector.load %arg14[%c0_75, %c0_76] : memref<1x128xf32, #tpu.memory_space<vmem>>, vector<1x128xf32>
    %201 = vector.broadcast %200 : vector<1x128xf32> to vector<32x128xf32>
    %202 = arith.mulf %199, %201 : vector<32x128xf32>
    %c0_77 = arith.constant 0 : index
    %c0_78 = arith.constant 0 : index
    %203 = vector.load %arg15[%c0_77, %c0_78] : memref<1x128xf32, #tpu.memory_space<vmem>>, vector<1x128xf32>
    %204 = vector.broadcast %203 : vector<1x128xf32> to vector<32x128xf32>
    %205 = arith.addf %202, %204 : vector<32x128xf32>
    %c0_79 = arith.constant 0 : index
    %c0_80 = arith.constant 0 : index
    %206 = vector.load %arg16[%c0_79, %c0_80] : memref<128x384xf32, #tpu.memory_space<vmem>>, vector<128x384xf32>
    %cst_81 = arith.constant dense<0.000000e+00> : vector<32x384xf32>
    %207 = tpu.matmul %205, %206, %cst_81 {dimension_numbers = #tpu.dot_dimension_numbers<[1], [0], [0], [1], [0, 0, 1, 1], [], []>} : vector<32x128xf32>, vector<128x384xf32>, vector<32x384xf32> -> vector<32x384xf32>
    %c0_82 = arith.constant 0 : index
    %c0_83 = arith.constant 0 : index
    %208 = vector.load %arg17[%c0_82, %c0_83] : memref<1x384xf32, #tpu.memory_space<vmem>>, vector<1x384xf32>
    %209 = vector.broadcast %208 : vector<1x384xf32> to vector<32x384xf32>
    %210 = arith.addf %207, %209 : vector<32x384xf32>
    %211 = vector.extract_strided_slice %210 {offsets = [0, 0], sizes = [32, 32], strides = [1, 1]} : vector<32x384xf32> to vector<32x32xf32>
    %212 = vector.shape_cast %211 : vector<32x32xf32> to vector<4x8x32xf32>
    %213 = vector.extract_strided_slice %210 {offsets = [0, 128], sizes = [32, 32], strides = [1, 1]} : vector<32x384xf32> to vector<32x32xf32>
    %214 = vector.shape_cast %213 : vector<32x32xf32> to vector<4x8x32xf32>
    %215 = vector.extract_strided_slice %210 {offsets = [0, 256], sizes = [32, 32], strides = [1, 1]} : vector<32x384xf32> to vector<32x32xf32>
    %216 = vector.shape_cast %215 : vector<32x32xf32> to vector<4x8x32xf32>
    "tpu.trace_start"() <{level = 10 : i32, message = "bqd,bkd->bqk"}> : () -> ()
    %cst_84 = arith.constant dense<0.000000e+00> : vector<4x8x8xf32>
    %217 = tpu.matmul %212, %214, %cst_84 {dimension_numbers = #tpu.dot_dimension_numbers<[2], [2], [1], [1], [0, 0, 0, 1, 1, 1], [0], [0]>} : vector<4x8x32xf32>, vector<4x8x32xf32>, vector<4x8x8xf32> -> vector<4x8x8xf32>
    "tpu.trace_stop"() : () -> ()
    %218 = arith.addf %217, %29 : vector<4x8x8xf32>
    %cst_85 = arith.constant dense<0xFF800000> : vector<4x8xf32>
    %219 = vector.multi_reduction <maximumf>, %218, %cst_85 [2] : vector<4x8x8xf32> to vector<4x8xf32>
    %220 = vector.shape_cast %219 : vector<4x8xf32> to vector<4x8x1xf32>
    %221 = vector.broadcast %220 : vector<4x8x1xf32> to vector<4x8x8xf32>
    %222 = arith.subf %218, %221 : vector<4x8x8xf32>
    %223 = math.exp %222 : vector<4x8x8xf32>
    %cst_86 = arith.constant dense<0.000000e+00> : vector<4x8xf32>
    %224 = vector.multi_reduction <add>, %223, %cst_86 [2] : vector<4x8x8xf32> to vector<4x8xf32>
    %225 = vector.shape_cast %224 : vector<4x8xf32> to vector<4x8x1xf32>
    %226 = tpu.reciprocal %225 {approx = true} : vector<4x8x1xf32> -> vector<4x8x1xf32>
    %227 = vector.broadcast %226 : vector<4x8x1xf32> to vector<4x8x8xf32>
    %228 = arith.mulf %223, %227 : vector<4x8x8xf32>
    "tpu.trace_start"() <{level = 10 : i32, message = "bqk,bkd->bqd"}> : () -> ()
    %cst_87 = arith.constant dense<0.000000e+00> : vector<4x8x32xf32>
    %229 = tpu.matmul %228, %216, %cst_87 {dimension_numbers = #tpu.dot_dimension_numbers<[2], [1], [1], [2], [0, 0, 0, 1, 1, 2], [0], [0]>} : vector<4x8x8xf32>, vector<4x8x32xf32>, vector<4x8x32xf32> -> vector<4x8x32xf32>
    "tpu.trace_stop"() : () -> ()
    %230 = vector.shape_cast %229 : vector<4x8x32xf32> to vector<32x32xf32>
    %c0_88 = arith.constant 0 : index
    %c0_89 = arith.constant 0 : index
    %231 = vector.load %arg18[%c0_88, %c0_89] : memref<128x128xf32, #tpu.memory_space<vmem>>, vector<32x128xf32>
    %cst_90 = arith.constant dense<0.000000e+00> : vector<32x128xf32>
    %232 = tpu.matmul %230, %231, %cst_90 {dimension_numbers = #tpu.dot_dimension_numbers<[1], [0], [0], [1], [0, 0, 1, 1], [], []>} : vector<32x32xf32>, vector<32x128xf32>, vector<32x128xf32> -> vector<32x128xf32>
    %233 = vector.extract_strided_slice %210 {offsets = [0, 32], sizes = [32, 32], strides = [1, 1]} : vector<32x384xf32> to vector<32x32xf32>
    %234 = vector.shape_cast %233 : vector<32x32xf32> to vector<4x8x32xf32>
    %235 = vector.extract_strided_slice %210 {offsets = [0, 160], sizes = [32, 32], strides = [1, 1]} : vector<32x384xf32> to vector<32x32xf32>
    %236 = vector.shape_cast %235 : vector<32x32xf32> to vector<4x8x32xf32>
    %237 = vector.extract_strided_slice %210 {offsets = [0, 288], sizes = [32, 32], strides = [1, 1]} : vector<32x384xf32> to vector<32x32xf32>
    %238 = vector.shape_cast %237 : vector<32x32xf32> to vector<4x8x32xf32>
    "tpu.trace_start"() <{level = 10 : i32, message = "bqd,bkd->bqk"}> : () -> ()
    %cst_91 = arith.constant dense<0.000000e+00> : vector<4x8x8xf32>
    %239 = tpu.matmul %234, %236, %cst_91 {dimension_numbers = #tpu.dot_dimension_numbers<[2], [2], [1], [1], [0, 0, 0, 1, 1, 1], [0], [0]>} : vector<4x8x32xf32>, vector<4x8x32xf32>, vector<4x8x8xf32> -> vector<4x8x8xf32>
    "tpu.trace_stop"() : () -> ()
    %240 = arith.addf %239, %29 : vector<4x8x8xf32>
    %cst_92 = arith.constant dense<0xFF800000> : vector<4x8xf32>
    %241 = vector.multi_reduction <maximumf>, %240, %cst_92 [2] : vector<4x8x8xf32> to vector<4x8xf32>
    %242 = vector.shape_cast %241 : vector<4x8xf32> to vector<4x8x1xf32>
    %243 = vector.broadcast %242 : vector<4x8x1xf32> to vector<4x8x8xf32>
    %244 = arith.subf %240, %243 : vector<4x8x8xf32>
    %245 = math.exp %244 : vector<4x8x8xf32>
    %cst_93 = arith.constant dense<0.000000e+00> : vector<4x8xf32>
    %246 = vector.multi_reduction <add>, %245, %cst_93 [2] : vector<4x8x8xf32> to vector<4x8xf32>
    %247 = vector.shape_cast %246 : vector<4x8xf32> to vector<4x8x1xf32>
    %248 = tpu.reciprocal %247 {approx = true} : vector<4x8x1xf32> -> vector<4x8x1xf32>
    %249 = vector.broadcast %248 : vector<4x8x1xf32> to vector<4x8x8xf32>
    %250 = arith.mulf %245, %249 : vector<4x8x8xf32>
    "tpu.trace_start"() <{level = 10 : i32, message = "bqk,bkd->bqd"}> : () -> ()
    %cst_94 = arith.constant dense<0.000000e+00> : vector<4x8x32xf32>
    %251 = tpu.matmul %250, %238, %cst_94 {dimension_numbers = #tpu.dot_dimension_numbers<[2], [1], [1], [2], [0, 0, 0, 1, 1, 2], [0], [0]>} : vector<4x8x8xf32>, vector<4x8x32xf32>, vector<4x8x32xf32> -> vector<4x8x32xf32>
    "tpu.trace_stop"() : () -> ()
    %252 = vector.shape_cast %251 : vector<4x8x32xf32> to vector<32x32xf32>
    %c32_95 = arith.constant 32 : index
    %c0_96 = arith.constant 0 : index
    %253 = vector.load %arg18[%c32_95, %c0_96] : memref<128x128xf32, #tpu.memory_space<vmem>>, vector<32x128xf32>
    %cst_97 = arith.constant dense<0.000000e+00> : vector<32x128xf32>
    %254 = tpu.matmul %252, %253, %cst_97 {dimension_numbers = #tpu.dot_dimension_numbers<[1], [0], [0], [1], [0, 0, 1, 1], [], []>} : vector<32x32xf32>, vector<32x128xf32>, vector<32x128xf32> -> vector<32x128xf32>
    %255 = arith.addf %232, %254 : vector<32x128xf32>
    %256 = vector.extract_strided_slice %210 {offsets = [0, 64], sizes = [32, 32], strides = [1, 1]} : vector<32x384xf32> to vector<32x32xf32>
    %257 = vector.shape_cast %256 : vector<32x32xf32> to vector<4x8x32xf32>
    %258 = vector.extract_strided_slice %210 {offsets = [0, 192], sizes = [32, 32], strides = [1, 1]} : vector<32x384xf32> to vector<32x32xf32>
    %259 = vector.shape_cast %258 : vector<32x32xf32> to vector<4x8x32xf32>
    %260 = vector.extract_strided_slice %210 {offsets = [0, 320], sizes = [32, 32], strides = [1, 1]} : vector<32x384xf32> to vector<32x32xf32>
    %261 = vector.shape_cast %260 : vector<32x32xf32> to vector<4x8x32xf32>
    "tpu.trace_start"() <{level = 10 : i32, message = "bqd,bkd->bqk"}> : () -> ()
    %cst_98 = arith.constant dense<0.000000e+00> : vector<4x8x8xf32>
    %262 = tpu.matmul %257, %259, %cst_98 {dimension_numbers = #tpu.dot_dimension_numbers<[2], [2], [1], [1], [0, 0, 0, 1, 1, 1], [0], [0]>} : vector<4x8x32xf32>, vector<4x8x32xf32>, vector<4x8x8xf32> -> vector<4x8x8xf32>
    "tpu.trace_stop"() : () -> ()
    %263 = arith.addf %262, %29 : vector<4x8x8xf32>
    %cst_99 = arith.constant dense<0xFF800000> : vector<4x8xf32>
    %264 = vector.multi_reduction <maximumf>, %263, %cst_99 [2] : vector<4x8x8xf32> to vector<4x8xf32>
    %265 = vector.shape_cast %264 : vector<4x8xf32> to vector<4x8x1xf32>
    %266 = vector.broadcast %265 : vector<4x8x1xf32> to vector<4x8x8xf32>
    %267 = arith.subf %263, %266 : vector<4x8x8xf32>
    %268 = math.exp %267 : vector<4x8x8xf32>
    %cst_100 = arith.constant dense<0.000000e+00> : vector<4x8xf32>
    %269 = vector.multi_reduction <add>, %268, %cst_100 [2] : vector<4x8x8xf32> to vector<4x8xf32>
    %270 = vector.shape_cast %269 : vector<4x8xf32> to vector<4x8x1xf32>
    %271 = tpu.reciprocal %270 {approx = true} : vector<4x8x1xf32> -> vector<4x8x1xf32>
    %272 = vector.broadcast %271 : vector<4x8x1xf32> to vector<4x8x8xf32>
    %273 = arith.mulf %268, %272 : vector<4x8x8xf32>
    "tpu.trace_start"() <{level = 10 : i32, message = "bqk,bkd->bqd"}> : () -> ()
    %cst_101 = arith.constant dense<0.000000e+00> : vector<4x8x32xf32>
    %274 = tpu.matmul %273, %261, %cst_101 {dimension_numbers = #tpu.dot_dimension_numbers<[2], [1], [1], [2], [0, 0, 0, 1, 1, 2], [0], [0]>} : vector<4x8x8xf32>, vector<4x8x32xf32>, vector<4x8x32xf32> -> vector<4x8x32xf32>
    "tpu.trace_stop"() : () -> ()
    %275 = vector.shape_cast %274 : vector<4x8x32xf32> to vector<32x32xf32>
    %c64_102 = arith.constant 64 : index
    %c0_103 = arith.constant 0 : index
    %276 = vector.load %arg18[%c64_102, %c0_103] : memref<128x128xf32, #tpu.memory_space<vmem>>, vector<32x128xf32>
    %cst_104 = arith.constant dense<0.000000e+00> : vector<32x128xf32>
    %277 = tpu.matmul %275, %276, %cst_104 {dimension_numbers = #tpu.dot_dimension_numbers<[1], [0], [0], [1], [0, 0, 1, 1], [], []>} : vector<32x32xf32>, vector<32x128xf32>, vector<32x128xf32> -> vector<32x128xf32>
    %278 = arith.addf %255, %277 : vector<32x128xf32>
    %279 = vector.extract_strided_slice %210 {offsets = [0, 96], sizes = [32, 32], strides = [1, 1]} : vector<32x384xf32> to vector<32x32xf32>
    %280 = vector.shape_cast %279 : vector<32x32xf32> to vector<4x8x32xf32>
    %281 = vector.extract_strided_slice %210 {offsets = [0, 224], sizes = [32, 32], strides = [1, 1]} : vector<32x384xf32> to vector<32x32xf32>
    %282 = vector.shape_cast %281 : vector<32x32xf32> to vector<4x8x32xf32>
    %283 = vector.extract_strided_slice %210 {offsets = [0, 352], sizes = [32, 32], strides = [1, 1]} : vector<32x384xf32> to vector<32x32xf32>
    %284 = vector.shape_cast %283 : vector<32x32xf32> to vector<4x8x32xf32>
    "tpu.trace_start"() <{level = 10 : i32, message = "bqd,bkd->bqk"}> : () -> ()
    %cst_105 = arith.constant dense<0.000000e+00> : vector<4x8x8xf32>
    %285 = tpu.matmul %280, %282, %cst_105 {dimension_numbers = #tpu.dot_dimension_numbers<[2], [2], [1], [1], [0, 0, 0, 1, 1, 1], [0], [0]>} : vector<4x8x32xf32>, vector<4x8x32xf32>, vector<4x8x8xf32> -> vector<4x8x8xf32>
    "tpu.trace_stop"() : () -> ()
    %286 = arith.addf %285, %29 : vector<4x8x8xf32>
    %cst_106 = arith.constant dense<0xFF800000> : vector<4x8xf32>
    %287 = vector.multi_reduction <maximumf>, %286, %cst_106 [2] : vector<4x8x8xf32> to vector<4x8xf32>
    %288 = vector.shape_cast %287 : vector<4x8xf32> to vector<4x8x1xf32>
    %289 = vector.broadcast %288 : vector<4x8x1xf32> to vector<4x8x8xf32>
    %290 = arith.subf %286, %289 : vector<4x8x8xf32>
    %291 = math.exp %290 : vector<4x8x8xf32>
    %cst_107 = arith.constant dense<0.000000e+00> : vector<4x8xf32>
    %292 = vector.multi_reduction <add>, %291, %cst_107 [2] : vector<4x8x8xf32> to vector<4x8xf32>
    %293 = vector.shape_cast %292 : vector<4x8xf32> to vector<4x8x1xf32>
    %294 = tpu.reciprocal %293 {approx = true} : vector<4x8x1xf32> -> vector<4x8x1xf32>
    %295 = vector.broadcast %294 : vector<4x8x1xf32> to vector<4x8x8xf32>
    %296 = arith.mulf %291, %295 : vector<4x8x8xf32>
    "tpu.trace_start"() <{level = 10 : i32, message = "bqk,bkd->bqd"}> : () -> ()
    %cst_108 = arith.constant dense<0.000000e+00> : vector<4x8x32xf32>
    %297 = tpu.matmul %296, %284, %cst_108 {dimension_numbers = #tpu.dot_dimension_numbers<[2], [1], [1], [2], [0, 0, 0, 1, 1, 2], [0], [0]>} : vector<4x8x8xf32>, vector<4x8x32xf32>, vector<4x8x32xf32> -> vector<4x8x32xf32>
    "tpu.trace_stop"() : () -> ()
    %298 = vector.shape_cast %297 : vector<4x8x32xf32> to vector<32x32xf32>
    %c96_109 = arith.constant 96 : index
    %c0_110 = arith.constant 0 : index
    %299 = vector.load %arg18[%c96_109, %c0_110] : memref<128x128xf32, #tpu.memory_space<vmem>>, vector<32x128xf32>
    %cst_111 = arith.constant dense<0.000000e+00> : vector<32x128xf32>
    %300 = tpu.matmul %298, %299, %cst_111 {dimension_numbers = #tpu.dot_dimension_numbers<[1], [0], [0], [1], [0, 0, 1, 1], [], []>} : vector<32x32xf32>, vector<32x128xf32>, vector<32x128xf32> -> vector<32x128xf32>
    %301 = arith.addf %278, %300 : vector<32x128xf32>
    %c0_112 = arith.constant 0 : index
    %c0_113 = arith.constant 0 : index
    %302 = vector.load %arg19[%c0_112, %c0_113] : memref<1x128xf32, #tpu.memory_space<vmem>>, vector<1x128xf32>
    %303 = vector.broadcast %302 : vector<1x128xf32> to vector<32x128xf32>
    %304 = arith.addf %301, %303 : vector<32x128xf32>
    %305 = arith.addf %304, %205 : vector<32x128xf32>
    %cst_114 = arith.constant dense<0.000000e+00> : vector<32xf32>
    %306 = vector.multi_reduction <add>, %305, %cst_114 [1] : vector<32x128xf32> to vector<32xf32>
    %307 = vector.shape_cast %306 : vector<32xf32> to vector<32x1xf32>
    %cst_115 = arith.constant 1.280000e+02 : f32
    %308 = vector.broadcast %cst_115 : f32 to vector<32x1xf32>
    %309 = arith.divf %307, %308 : vector<32x1xf32>
    %310 = arith.mulf %305, %305 : vector<32x128xf32>
    %cst_116 = arith.constant dense<0.000000e+00> : vector<32xf32>
    %311 = vector.multi_reduction <add>, %310, %cst_116 [1] : vector<32x128xf32> to vector<32xf32>
    %312 = vector.shape_cast %311 : vector<32xf32> to vector<32x1xf32>
    %cst_117 = arith.constant 1.280000e+02 : f32
    %313 = vector.broadcast %cst_117 : f32 to vector<32x1xf32>
    %314 = arith.divf %312, %313 : vector<32x1xf32>
    %315 = arith.mulf %309, %309 : vector<32x1xf32>
    %316 = arith.subf %314, %315 : vector<32x1xf32>
    %cst_118 = arith.constant 0.000000e+00 : f32
    %317 = vector.broadcast %cst_118 : f32 to vector<32x1xf32>
    %318 = arith.maximumf %316, %317 : vector<32x1xf32>
    %319 = vector.broadcast %309 : vector<32x1xf32> to vector<32x128xf32>
    %320 = arith.subf %305, %319 : vector<32x128xf32>
    %cst_119 = arith.constant 9.99999996E-13 : f32
    %321 = vector.broadcast %cst_119 : f32 to vector<32x1xf32>
    %322 = arith.addf %318, %321 : vector<32x1xf32>
    %323 = math.rsqrt %322 : vector<32x1xf32>
    %324 = vector.broadcast %323 : vector<32x1xf32> to vector<32x128xf32>
    %325 = arith.mulf %320, %324 : vector<32x128xf32>
    %c0_120 = arith.constant 0 : index
    %c0_121 = arith.constant 0 : index
    %326 = vector.load %arg20[%c0_120, %c0_121] : memref<1x128xf32, #tpu.memory_space<vmem>>, vector<1x128xf32>
    %327 = vector.broadcast %326 : vector<1x128xf32> to vector<32x128xf32>
    %328 = arith.mulf %325, %327 : vector<32x128xf32>
    %c0_122 = arith.constant 0 : index
    %c0_123 = arith.constant 0 : index
    %329 = vector.load %arg21[%c0_122, %c0_123] : memref<1x128xf32, #tpu.memory_space<vmem>>, vector<1x128xf32>
    %330 = vector.broadcast %329 : vector<1x128xf32> to vector<32x128xf32>
    %331 = arith.addf %328, %330 : vector<32x128xf32>
    %c0_124 = arith.constant 0 : index
    %c0_125 = arith.constant 0 : index
    %332 = vector.load %arg22[%c0_124, %c0_125] : memref<128x256xf32, #tpu.memory_space<vmem>>, vector<128x256xf32>
    %cst_126 = arith.constant dense<0.000000e+00> : vector<32x256xf32>
    %333 = tpu.matmul %331, %332, %cst_126 {dimension_numbers = #tpu.dot_dimension_numbers<[1], [0], [0], [1], [0, 0, 1, 1], [], []>} : vector<32x128xf32>, vector<128x256xf32>, vector<32x256xf32> -> vector<32x256xf32>
    %c0_127 = arith.constant 0 : index
    %c0_128 = arith.constant 0 : index
    %334 = vector.load %arg23[%c0_127, %c0_128] : memref<1x256xf32, #tpu.memory_space<vmem>>, vector<1x256xf32>
    %335 = vector.broadcast %334 : vector<1x256xf32> to vector<32x256xf32>
    %336 = arith.addf %333, %335 : vector<32x256xf32>
    %cst_129 = arith.constant 5.000000e-01 : f32
    %337 = vector.broadcast %cst_129 : f32 to vector<32x256xf32>
    %338 = arith.mulf %337, %336 : vector<32x256xf32>
    %cst_130 = arith.constant 4.471500e-02 : f32
    %339 = vector.broadcast %cst_130 : f32 to vector<32x256xf32>
    %340 = arith.mulf %339, %336 : vector<32x256xf32>
    %341 = arith.mulf %340, %336 : vector<32x256xf32>
    %342 = arith.mulf %341, %336 : vector<32x256xf32>
    %343 = arith.addf %336, %342 : vector<32x256xf32>
    %cst_131 = arith.constant 0.797884583 : f32
    %344 = vector.broadcast %cst_131 : f32 to vector<32x256xf32>
    %345 = arith.mulf %344, %343 : vector<32x256xf32>
    %346 = math.tanh %345 : vector<32x256xf32>
    %cst_132 = arith.constant 1.000000e+00 : f32
    %347 = vector.broadcast %cst_132 : f32 to vector<32x256xf32>
    %348 = arith.addf %347, %346 : vector<32x256xf32>
    %349 = arith.mulf %338, %348 : vector<32x256xf32>
    %c0_133 = arith.constant 0 : index
    %c0_134 = arith.constant 0 : index
    %350 = vector.load %arg24[%c0_133, %c0_134] : memref<256x128xf32, #tpu.memory_space<vmem>>, vector<256x128xf32>
    %cst_135 = arith.constant dense<0.000000e+00> : vector<32x128xf32>
    %351 = tpu.matmul %349, %350, %cst_135 {dimension_numbers = #tpu.dot_dimension_numbers<[1], [0], [0], [1], [0, 0, 1, 1], [], []>} : vector<32x256xf32>, vector<256x128xf32>, vector<32x128xf32> -> vector<32x128xf32>
    %c0_136 = arith.constant 0 : index
    %c0_137 = arith.constant 0 : index
    %352 = vector.load %arg25[%c0_136, %c0_137] : memref<1x128xf32, #tpu.memory_space<vmem>>, vector<1x128xf32>
    %353 = vector.broadcast %352 : vector<1x128xf32> to vector<32x128xf32>
    %354 = arith.addf %351, %353 : vector<32x128xf32>
    %355 = arith.addf %354, %331 : vector<32x128xf32>
    %cst_138 = arith.constant dense<0.000000e+00> : vector<32xf32>
    %356 = vector.multi_reduction <add>, %355, %cst_138 [1] : vector<32x128xf32> to vector<32xf32>
    %357 = vector.shape_cast %356 : vector<32xf32> to vector<32x1xf32>
    %cst_139 = arith.constant 1.280000e+02 : f32
    %358 = vector.broadcast %cst_139 : f32 to vector<32x1xf32>
    %359 = arith.divf %357, %358 : vector<32x1xf32>
    %360 = arith.mulf %355, %355 : vector<32x128xf32>
    %cst_140 = arith.constant dense<0.000000e+00> : vector<32xf32>
    %361 = vector.multi_reduction <add>, %360, %cst_140 [1] : vector<32x128xf32> to vector<32xf32>
    %362 = vector.shape_cast %361 : vector<32xf32> to vector<32x1xf32>
    %cst_141 = arith.constant 1.280000e+02 : f32
    %363 = vector.broadcast %cst_141 : f32 to vector<32x1xf32>
    %364 = arith.divf %362, %363 : vector<32x1xf32>
    %365 = arith.mulf %359, %359 : vector<32x1xf32>
    %366 = arith.subf %364, %365 : vector<32x1xf32>
    %cst_142 = arith.constant 0.000000e+00 : f32
    %367 = vector.broadcast %cst_142 : f32 to vector<32x1xf32>
    %368 = arith.maximumf %366, %367 : vector<32x1xf32>
    %369 = vector.broadcast %359 : vector<32x1xf32> to vector<32x128xf32>
    %370 = arith.subf %355, %369 : vector<32x128xf32>
    %cst_143 = arith.constant 9.99999996E-13 : f32
    %371 = vector.broadcast %cst_143 : f32 to vector<32x1xf32>
    %372 = arith.addf %368, %371 : vector<32x1xf32>
    %373 = math.rsqrt %372 : vector<32x1xf32>
    %374 = vector.broadcast %373 : vector<32x1xf32> to vector<32x128xf32>
    %375 = arith.mulf %370, %374 : vector<32x128xf32>
    %c0_144 = arith.constant 0 : index
    %c0_145 = arith.constant 0 : index
    %376 = vector.load %arg26[%c0_144, %c0_145] : memref<1x128xf32, #tpu.memory_space<vmem>>, vector<1x128xf32>
    %377 = vector.broadcast %376 : vector<1x128xf32> to vector<32x128xf32>
    %378 = arith.mulf %375, %377 : vector<32x128xf32>
    %c0_146 = arith.constant 0 : index
    %c0_147 = arith.constant 0 : index
    %379 = vector.load %arg27[%c0_146, %c0_147] : memref<1x128xf32, #tpu.memory_space<vmem>>, vector<1x128xf32>
    %380 = vector.broadcast %379 : vector<1x128xf32> to vector<32x128xf32>
    %381 = arith.addf %378, %380 : vector<32x128xf32>
    %c0_148 = arith.constant 0 : index
    %c0_149 = arith.constant 0 : index
    %382 = vector.load %arg28[%c0_148, %c0_149] : memref<32x128xf32, #tpu.memory_space<vmem>>, vector<32x128xf32>
    tpu.vector_store %arg28[%c0_148, %c0_149], %381 {strides = array<i32>} : memref<32x128xf32, #tpu.memory_space<vmem>>, vector<32x128xf32>,
    return
  }
}

</mosaic_0001>

<llo_original>
// kernel: _lambda_.1
$region0: #{_lambda_.1}
  #allocation0 [shape = 'u32[]', space=smem, size = 0x4, offset = 0x4, fixed_abs, tag = 'smem constant byte address 0x4 - core index']
  #allocation1 [shape = 'u32[72,128]{1,0:T(1,128)}', space=vmem, size = 0x9000, scoped, tag = 'internal scratch']
  %s0 = inlined_call_operand.vmem [shape: f32[32,128], index: 0, kind: input, shape index: {}]
  %s1 = inlined_call_operand.vmem [shape: f32[4,1,8], index: 1, kind: input, shape index: {}]
  %s2 = inlined_call_operand.vmem [shape: f32[1,128], index: 2, kind: input, shape index: {}]
  %s3 = inlined_call_operand.vmem [shape: f32[1,128], index: 3, kind: input, shape index: {}]
  %s4 = inlined_call_operand.vmem [shape: f32[128,384], index: 4, kind: input, shape index: {}]
  %s5 = inlined_call_operand.vmem [shape: f32[1,384], index: 5, kind: input, shape index: {}]
  %s6 = inlined_call_operand.hbm [shape: f32[128,128], index: 6, kind: input, shape index: {}]
  %s7 = inlined_call_operand.vmem [shape: f32[1,128], index: 7, kind: input, shape index: {}]
  %s8 = inlined_call_operand.vmem [shape: f32[1,128], index: 8, kind: input, shape index: {}]
  %s9 = inlined_call_operand.vmem [shape: f32[1,128], index: 9, kind: input, shape index: {}]
  %s10 = inlined_call_operand.hbm [shape: f32[128,256], index: 10, kind: input, shape index: {}]
  %s11 = inlined_call_operand.vmem [shape: f32[1,256], index: 11, kind: input, shape index: {}]
  %s12 = inlined_call_operand.hbm [shape: f32[256,128], index: 12, kind: input, shape index: {}]
  %s13 = inlined_call_operand.vmem [shape: f32[1,128], index: 13, kind: input, shape index: {}]
  %s14 = inlined_call_operand.vmem [shape: f32[1,128], index: 14, kind: input, shape index: {}]
  %s15 = inlined_call_operand.vmem [shape: f32[1,128], index: 15, kind: input, shape index: {}]
  %s16 = inlined_call_operand.hbm [shape: f32[128,384], index: 16, kind: input, shape index: {}]
  %s17 = inlined_call_operand.vmem [shape: f32[1,384], index: 17, kind: input, shape index: {}]
  %s18 = inlined_call_operand.hbm [shape: f32[128,128], index: 18, kind: input, shape index: {}]
  %s19 = inlined_call_operand.vmem [shape: f32[1,128], index: 19, kind: input, shape index: {}]
  %s20 = inlined_call_operand.vmem [shape: f32[1,128], index: 20, kind: input, shape index: {}]
  %s21 = inlined_call_operand.vmem [shape: f32[1,128], index: 21, kind: input, shape index: {}]
  %s22 = inlined_call_operand.hbm [shape: f32[128,256], index: 22, kind: input, shape index: {}]
  %s23 = inlined_call_operand.vmem [shape: f32[1,256], index: 23, kind: input, shape index: {}]
  %s24 = inlined_call_operand.hbm [shape: f32[256,128], index: 24, kind: input, shape index: {}]
  %s25 = inlined_call_operand.vmem [shape: f32[1,128], index: 25, kind: input, shape index: {}]
  %s26 = inlined_call_operand.vmem [shape: f32[1,128], index: 26, kind: input, shape index: {}]
  %s27 = inlined_call_operand.vmem [shape: f32[1,128], index: 27, kind: input, shape index: {}]
  %s28 = inlined_call_operand.vmem [shape: f32[32,128], index: 28, kind: output, shape index: {}]
  %s29 = sld [smem:[#allocation0]]
  $region150: #{_lambda_.1} parent=0
    _
  %s31 = ssub.s32 1, %s29
  %s32 = scalar_select 0, %s31, %s29
  $region1: #{_lambda_.1} parent=0
    #allocation2 [shape = 'u8[65536]{0}', space=vmem, size = 0x10000, scoped, tag = 'input window, operand 6, single buffered']
    #allocation3 [shape = 's32[1]{0}', space=sflag, size = 0x4, scoped, tag = 'scoped memory for _lambda_.1']
    #allocation4 [shape = 'u8[131072]{0}', space=vmem, size = 0x20000, scoped, tag = 'input window, operand 10, single buffered']
    #allocation5 [shape = 's32[1]{0}', space=sflag, size = 0x4, scoped, tag = 'scoped memory for _lambda_.1']
    #allocation6 [shape = 'u8[131072]{0}', space=vmem, size = 0x20000, scoped, tag = 'input window, operand 12, single buffered']
    #allocation7 [shape = 'u8[196608]{0}', space=vmem, size = 0x30000, scoped, tag = 'input window, operand 16, single buffered']
    #allocation8 [shape = 's32[1]{0}', space=sflag, size = 0x4, scoped, tag = 'scoped memory for _lambda_.1']
    #allocation9 [shape = 'u8[65536]{0}', space=vmem, size = 0x10000, scoped, tag = 'input window, operand 18, single buffered']
    #allocation10 [shape = 'u8[131072]{0}', space=vmem, size = 0x20000, scoped, tag = 'input window, operand 22, single buffered']
    #allocation11 [shape = 's32[1]{0}', space=sflag, size = 0x4, scoped, tag = 'scoped memory for _lambda_.1']
    #allocation12 [shape = 'u8[131072]{0}', space=vmem, size = 0x20000, scoped, tag = 'input window, operand 24, single buffered']
    %33 = vsyncpa [#allocation3], 0
    %34 = vsyncpa [#allocation5], 0
    %35 = vsyncpa [#allocation8], 0
    %36 = vsyncpa [#allocation11], 0
    // Predicated region
    $region2: #{_lambda_.1} parent=1 // pred_check
      _
    $region3: #{_lambda_.1} parent=1 // pred_check_branch
      %38 = sbr.rel (0) target = $region5
    $region4: #{_lambda_.1} parent=1 // pred_region
      _
    $region5: #{_lambda_.1} parent=1 // pred_fallthru
      _
    // Predicated region
    $region6: #{_lambda_.1} parent=1 // pred_check
      _
    $region7: #{_lambda_.1} parent=1 // pred_check_branch
      %40 = sbr.rel (0) target = $region9
    $region8: #{_lambda_.1} parent=1 // pred_region
      _
    $region9: #{_lambda_.1} parent=1 // pred_fallthru
      _
    // Predicated region
    $region10: #{_lambda_.1} parent=1 // pred_check
      _
    $region11: #{_lambda_.1} parent=1 // pred_check_branch
      %42 = sbr.rel (0) target = $region13
    $region12: #{_lambda_.1} parent=1 // pred_region
      _
    $region13: #{_lambda_.1} parent=1 // pred_fallthru
      _
    // Predicated region
    $region14: #{_lambda_.1} parent=1 // pred_check
      _
    $region15: #{_lambda_.1} parent=1 // pred_check_branch
      %44 = sbr.rel (0) target = $region17
    $region16: #{_lambda_.1} parent=1 // pred_region
      _
    $region17: #{_lambda_.1} parent=1 // pred_fallthru
      _
    // Predicated region
    $region18: #{_lambda_.1} parent=1 // pred_check
      _
    $region19: #{_lambda_.1} parent=1 // pred_check_branch
      %46 = sbr.rel (0) target = $region21
    $region20: #{_lambda_.1} parent=1 // pred_region
      _
    $region21: #{_lambda_.1} parent=1 // pred_fallthru
      _
    // Predicated region
    $region22: #{_lambda_.1} parent=1 // pred_check
      _
    $region23: #{_lambda_.1} parent=1 // pred_check_branch
      %48 = sbr.rel (0) target = $region25
    $region24: #{_lambda_.1} parent=1 // pred_region
      _
    $region25: #{_lambda_.1} parent=1 // pred_fallthru
      _
    // Predicated region
    $region26: #{_lambda_.1} parent=1 // pred_check
      _
    $region27: #{_lambda_.1} parent=1 // pred_check_branch
      %50 = sbr.rel (0) target = $region29
    $region28: #{_lambda_.1} parent=1 // pred_region
      %52 = vsyncadd [#allocation3], 0
      %s53 = sshll.u32 %s6, 4
      %s54 = int_to_ptr.hbm [resolvable:$true] %s53
      %s55 = sshll.u32 [#allocation2], 4
      %s56 = int_to_ptr.vmem [resolvable:$true] %s55
      %61 = dma.hbm_to_vmem [thread:$0]  %s54, 2048, %s56, [#allocation3], 128, 128, 8
    $region29: #{_lambda_.1} parent=1 // pred_fallthru
      _
    // Predicated region
    $region30: #{_lambda_.1} parent=1 // pred_check
      _
    $region31: #{_lambda_.1} parent=1 // pred_check_branch
      %63 = sbr.rel (0) target = $region33
    $region32: #{_lambda_.1} parent=1 // pred_region
      _
    $region33: #{_lambda_.1} parent=1 // pred_fallthru
      _
    // Predicated region
    $region34: #{_lambda_.1} parent=1 // pred_check
      _
    $region35: #{_lambda_.1} parent=1 // pred_check_branch
      %65 = sbr.rel (0) target = $region37
    $region36: #{_lambda_.1} parent=1 // pred_region
      _
    $region37: #{_lambda_.1} parent=1 // pred_fallthru
      _
    // Predicated region
    $region38: #{_lambda_.1} parent=1 // pred_check
      _
    $region39: #{_lambda_.1} parent=1 // pred_check_branch
      %67 = sbr.rel (0) target = $region41
    $region40: #{_lambda_.1} parent=1 // pred_region
      _
    $region41: #{_lambda_.1} parent=1 // pred_fallthru
      _
    // Predicated region
    $region42: #{_lambda_.1} parent=1 // pred_check
      _
    $region43: #{_lambda_.1} parent=1 // pred_check_branch
      %69 = sbr.rel (0) target = $region45
    $region44: #{_lambda_.1} parent=1 // pred_region
      %71 = vsyncadd [#allocation5], 0
      %s72 = sshll.u32 %s10, 4
      %s73 = int_to_ptr.hbm [resolvable:$true] %s72
      %s74 = sshll.u32 [#allocation4], 4
      %s75 = int_to_ptr.vmem [resolvable:$true] %s74
      %80 = dma.hbm_to_vmem [thread:$0]  %s73, 4096, %s75, [#allocation5], 256, 256, 16
    $region45: #{_lambda_.1} parent=1 // pred_fallthru
      _
    // Predicated region
    $region46: #{_lambda_.1} parent=1 // pred_check
      _
    $region47: #{_lambda_.1} parent=1 // pred_check_branch
      %82 = sbr.rel (0) target = $region49
    $region48: #{_lambda_.1} parent=1 // pred_region
      _
    $region49: #{_lambda_.1} parent=1 // pred_fallthru
      _
    // Predicated region
    $region50: #{_lambda_.1} parent=1 // pred_check
      _
    $region51: #{_lambda_.1} parent=1 // pred_check_branch
      %84 = sbr.rel (0) target = $region53
    $region52: #{_lambda_.1} parent=1 // pred_region
      %86 = vsyncadd [#allocation5], 0
      %s87 = sshll.u32 %s12, 4
      %s88 = int_to_ptr.hbm [resolvable:$true] %s87
      %s89 = sshll.u32 [#allocation6], 4
      %s90 = int_to_ptr.vmem [resolvable:$true] %s89
      %95 = dma.hbm_to_vmem [thread:$0]  %s88, 4096, %s90, [#allocation5], 128, 128, 8
    $region53: #{_lambda_.1} parent=1 // pred_fallthru
      _
    // Predicated region
    $region54: #{_lambda_.1} parent=1 // pred_check
      _
    $region55: #{_lambda_.1} parent=1 // pred_check_branch
      %97 = sbr.rel (0) target = $region57
    $region56: #{_lambda_.1} parent=1 // pred_region
      _
    $region57: #{_lambda_.1} parent=1 // pred_fallthru
      _
    // Predicated region
    $region58: #{_lambda_.1} parent=1 // pred_check
      _
    $region59: #{_lambda_.1} parent=1 // pred_check_branch
      %99 = sbr.rel (0) target = $region61
    $region60: #{_lambda_.1} parent=1 // pred_region
      _
    $region61: #{_lambda_.1} parent=1 // pred_fallthru
      _
    // Predicated region
    $region62: #{_lambda_.1} parent=1 // pred_check
      _
    $region63: #{_lambda_.1} parent=1 // pred_check_branch
      %101 = sbr.rel (0) target = $region65
    $region64: #{_lambda_.1} parent=1 // pred_region
      _
    $region65: #{_lambda_.1} parent=1 // pred_fallthru
      _
    // Predicated region
    $region66: #{_lambda_.1} parent=1 // pred_check
      _
    $region67: #{_lambda_.1} parent=1 // pred_check_branch
      %103 = sbr.rel (0) target = $region69
    $region68: #{_lambda_.1} parent=1 // pred_region
      %105 = vsyncadd [#allocation8], 0
      %s106 = sshll.u32 %s16, 4
      %s107 = int_to_ptr.hbm [resolvable:$true] %s106
      %s108 = sshll.u32 [#allocation7], 4
      %s109 = int_to_ptr.vmem [resolvable:$true] %s108
      %114 = dma.hbm_to_vmem [thread:$0]  %s107, 6144, %s109, [#allocation8], 384, 384, 24
    $region69: #{_lambda_.1} parent=1 // pred_fallthru
      _
    // Predicated region
    $region70: #{_lambda_.1} parent=1 // pred_check
      _
    $region71: #{_lambda_.1} parent=1 // pred_check_branch
      %116 = sbr.rel (0) target = $region73
    $region72: #{_lambda_.1} parent=1 // pred_region
      _
    $region73: #{_lambda_.1} parent=1 // pred_fallthru
      _
    // Predicated region
    $region74: #{_lambda_.1} parent=1 // pred_check
      _
    $region75: #{_lambda_.1} parent=1 // pred_check_branch
      %118 = sbr.rel (0) target = $region77
    $region76: #{_lambda_.1} parent=1 // pred_region
      %120 = vsyncadd [#allocation8], 0
      %s121 = sshll.u32 %s18, 4
      %s122 = int_to_ptr.hbm [resolvable:$true] %s121
      %s123 = sshll.u32 [#allocation9], 4
      %s124 = int_to_ptr.vmem [resolvable:$true] %s123
      %129 = dma.hbm_to_vmem [thread:$0]  %s122, 2048, %s124, [#allocation8], 128, 128, 8
    $region77: #{_lambda_.1} parent=1 // pred_fallthru
      _
    // Predicated region
    $region78: #{_lambda_.1} parent=1 // pred_check
      _
    $region79: #{_lambda_.1} parent=1 // pred_check_branch
      %131 = sbr.rel (0) target = $region81
    $region80: #{_lambda_.1} parent=1 // pred_region
      _
    $region81: #{_lambda_.1} parent=1 // pred_fallthru
      _
    // Predicated region
    $region82: #{_lambda_.1} parent=1 // pred_check
      _
    $region83: #{_lambda_.1} parent=1 // pred_check_branch
      %133 = sbr.rel (0) target = $region85
    $region84: #{_lambda_.1} parent=1 // pred_region
      _
    $region85: #{_lambda_.1} parent=1 // pred_fallthru
      _
    // Predicated region
    $region86: #{_lambda_.1} parent=1 // pred_check
      _
    $region87: #{_lambda_.1} parent=1 // pred_check_branch
      %135 = sbr.rel (0) target = $region89
    $region88: #{_lambda_.1} parent=1 // pred_region
      _
    $region89: #{_lambda_.1} parent=1 // pred_fallthru
      _
    // Predicated region
    $region90: #{_lambda_.1} parent=1 // pred_check
      _
    $region91: #{_lambda_.1} parent=1 // pred_check_branch
      %137 = sbr.rel (0) target = $region93
    $region92: #{_lambda_.1} parent=1 // pred_region
      %139 = vsyncadd [#allocation11], 0
      %s140 = sshll.u32 %s22, 4
      %s141 = int_to_ptr.hbm [resolvable:$true] %s140
      %s142 = sshll.u32 [#allocation10], 4
      %s143 = int_to_ptr.vmem [resolvable:$true] %s142
      %148 = dma.hbm_to_vmem [thread:$0]  %s141, 4096, %s143, [#allocation11], 256, 256, 16
    $region93: #{_lambda_.1} parent=1 // pred_fallthru
      _
    // Predicated region
    $region94: #{_lambda_.1} parent=1 // pred_check
      _
    $region95: #{_lambda_.1} parent=1 // pred_check_branch
      %150 = sbr.rel (0) target = $region97
    $region96: #{_lambda_.1} parent=1 // pred_region
      _
    $region97: #{_lambda_.1} parent=1 // pred_fallthru
      _
    // Predicated region
    $region98: #{_lambda_.1} parent=1 // pred_check
      _
    $region99: #{_lambda_.1} parent=1 // pred_check_branch
      %152 = sbr.rel (0) target = $region101
    $region100: #{_lambda_.1} parent=1 // pred_region
      %154 = vsyncadd [#allocation11], 0
      %s155 = sshll.u32 %s24, 4
      %s156 = int_to_ptr.hbm [resolvable:$true] %s155
      %s157 = sshll.u32 [#allocation12], 4
      %s158 = int_to_ptr.vmem [resolvable:$true] %s157
      %163 = dma.hbm_to_vmem [thread:$0]  %s156, 4096, %s158, [#allocation11], 128, 128, 8
    $region101: #{_lambda_.1} parent=1 // pred_fallthru
      _
    // Predicated region
    $region102: #{_lambda_.1} parent=1 // pred_check
      _
    $region103: #{_lambda_.1} parent=1 // pred_check_branch
      %165 = sbr.rel (0) target = $region105
    $region104: #{_lambda_.1} parent=1 // pred_region
      _
    $region105: #{_lambda_.1} parent=1 // pred_fallthru
      _
    // Predicated region
    $region106: #{_lambda_.1} parent=1 // pred_check
      _
    $region107: #{_lambda_.1} parent=1 // pred_check_branch
      %167 = sbr.rel (0) target = $region109
    $region108: #{_lambda_.1} parent=1 // pred_region
      _
    $region109: #{_lambda_.1} parent=1 // pred_fallthru
      _
    // Predicated region
    $region110: #{_lambda_.1} parent=1 // pred_check
      _
    $region111: #{_lambda_.1} parent=1 // pred_check_branch
      %169 = sbr.rel (0) target = $region113
    $region112: #{_lambda_.1} parent=1 // pred_region
      _
    $region113: #{_lambda_.1} parent=1 // pred_fallthru
      _
    // Predicated region
    $region114: #{_lambda_.1} parent=1 // pred_check
      _
    $region115: #{_lambda_.1} parent=1 // pred_check_branch
      %171 = sbr.rel (0) target = $region117
    $region116: #{_lambda_.1} parent=1 // pred_region
      %173 = dma.done [#allocation3], 2048
    $region117: #{_lambda_.1} parent=1 // pred_fallthru
      _
    // Predicated region
    $region118: #{_lambda_.1} parent=1 // pred_check
      _
    $region119: #{_lambda_.1} parent=1 // pred_check_branch
      %175 = sbr.rel (0) target = $region121
    $region120: #{_lambda_.1} parent=1 // pred_region
      %177 = dma.done [#allocation5], 4096
    $region121: #{_lambda_.1} parent=1 // pred_fallthru
      _
    // Predicated region
    $region122: #{_lambda_.1} parent=1 // pred_check
      _
    $region123: #{_lambda_.1} parent=1 // pred_check_branch
      %179 = sbr.rel (0) target = $region125
    $region124: #{_lambda_.1} parent=1 // pred_region
      %181 = dma.done [#allocation5], 4096
    $region125: #{_lambda_.1} parent=1 // pred_fallthru
      _
    // Predicated region
    $region126: #{_lambda_.1} parent=1 // pred_check
      _
    $region127: #{_lambda_.1} parent=1 // pred_check_branch
      %183 = sbr.rel (0) target = $region129
    $region128: #{_lambda_.1} parent=1 // pred_region
      %185 = dma.done [#allocation8], 6144
    $region129: #{_lambda_.1} parent=1 // pred_fallthru
      _
    // Predicated region
    $region130: #{_lambda_.1} parent=1 // pred_check
      _
    $region131: #{_lambda_.1} parent=1 // pred_check_branch
      %187 = sbr.rel (0) target = $region133
    $region132: #{_lambda_.1} parent=1 // pred_region
      %189 = dma.done [#allocation8], 2048
    $region133: #{_lambda_.1} parent=1 // pred_fallthru
      _
    // Predicated region
    $region134: #{_lambda_.1} parent=1 // pred_check
      _
    $region135: #{_lambda_.1} parent=1 // pred_check_branch
      %191 = sbr.rel (0) target = $region137
    $region136: #{_lambda_.1} parent=1 // pred_region
      %193 = dma.done [#allocation11], 4096
    $region137: #{_lambda_.1} parent=1 // pred_fallthru
      _
    // Predicated region
    $region138: #{_lambda_.1} parent=1 // pred_check
      _
    $region139: #{_lambda_.1} parent=1 // pred_check_branch
      %195 = sbr.rel (0) target = $region141
    $region140: #{_lambda_.1} parent=1 // pred_region
      %197 = dma.done [#allocation11], 4096
    $region141: #{_lambda_.1} parent=1 // pred_fallthru
      _
    %v198 = vld [vmem:[%s0] sm:$0xff]
    %v199 = vld [vmem:[%s0 + $0x8] sm:$0xff]
    %v200 = vld [vmem:[%s0 + $0x10] sm:$0xff]
    %v201 = vld [vmem:[%s0 + $0x18] sm:$0xff]
    %202 = vadd.xlane.f32.xlu0 %v198
    %v203 = vpop.xlane.xlu0 %202
    %204 = vadd.xlane.f32.xlu0 %v199
    %v205 = vpop.xlane.xlu0 %204
    %206 = vadd.xlane.f32.xlu0 %v200
    %v207 = vpop.xlane.xlu0 %206
    %208 = vadd.xlane.f32.xlu0 %v201
    %v209 = vpop.xlane.xlu0 %208
    %v210 = vrcp.pop 128.0
    %v211 = vmul.f32 128.0, %v210
    %v212 = vsub.f32 1.0, %v211
    %v213 = vmul.f32 %v210, %v212
    %v214 = vadd.f32 %v210, %v213
    %vm215 = vweird.f32 %v210
    %v216 = vsel %vm215, %v210, %v214
    %v217 = vmul.f32 %v203, %v216
    %v218 = vmul.f32 %v205, %v216
    %v219 = vmul.f32 %v207, %v216
    %v220 = vmul.f32 %v209, %v216
    %v221 = vmul.f32 %v198, %v198
    %v222 = vmul.f32 %v199, %v199
    %v223 = vmul.f32 %v200, %v200
    %v224 = vmul.f32 %v201, %v201
    %225 = vadd.xlane.f32.xlu0 %v221
    %v226 = vpop.xlane.xlu0 %225
    %227 = vadd.xlane.f32.xlu0 %v222
    %v228 = vpop.xlane.xlu0 %227
    %229 = vadd.xlane.f32.xlu0 %v223
    %v230 = vpop.xlane.xlu0 %229
    %231 = vadd.xlane.f32.xlu0 %v224
    %v232 = vpop.xlane.xlu0 %231
    %v233 = vmul.f32 %v226, %v216
    %v234 = vmul.f32 %v228, %v216
    %v235 = vmul.f32 %v230, %v216
    %v236 = vmul.f32 %v232, %v216
    %v237 = vmul.f32 %v217, %v217
    %v238 = vmul.f32 %v218, %v218
    %v239 = vmul.f32 %v219, %v219
    %v240 = vmul.f32 %v220, %v220
    %v241 = vsub.f32 %v233, %v237
    %v242 = vsub.f32 %v234, %v238
    %v243 = vsub.f32 %v235, %v239
    %v244 = vsub.f32 %v236, %v240
    %v245 = vmax.f32 %v241, 0.0
    %v246 = vmax.f32 %v242, 0.0
    %v247 = vmax.f32 %v243, 0.0
    %v248 = vmax.f32 %v244, 0.0
    %v249 = vsub.f32 %v198, %v217
    %v250 = vsub.f32 %v199, %v218
    %v251 = vsub.f32 %v200, %v219
    %v252 = vsub.f32 %v201, %v220
    %v253 = vadd.f32 %v245, 1e-12
    %v254 = vadd.f32 %v246, 1e-12
    %v255 = vadd.f32 %v247, 1e-12
    %v256 = vadd.f32 %v248, 1e-12
    %v257 = vrsqrt.pop %v253
    %v258 = vmul.f32 %v257, %v253
    %v259 = vmul.f32 %v258, %v257
    %v260 = vmul.f32 0.5, %v259
    %v261 = vsub.f32 1.5, %v260
    %v262 = vmul.f32 %v257, %v261
    %vm263 = vweird.f32 %v253
    %vm264 = vweird.f32 %v257
    %vm265 = vmor %vm263, %vm264
    %v266 = vsel %vm265, %v257, %v262
    %v267 = vrsqrt.pop %v254
    %v268 = vmul.f32 %v267, %v254
    %v269 = vmul.f32 %v268, %v267
    %v270 = vmul.f32 0.5, %v269
    %v271 = vsub.f32 1.5, %v270
    %v272 = vmul.f32 %v267, %v271
    %vm273 = vweird.f32 %v254
    %vm274 = vweird.f32 %v267
    %vm275 = vmor %vm273, %vm274
    %v276 = vsel %vm275, %v267, %v272
    %v277 = vrsqrt.pop %v255
    %v278 = vmul.f32 %v277, %v255
    %v279 = vmul.f32 %v278, %v277
    %v280 = vmul.f32 0.5, %v279
    %v281 = vsub.f32 1.5, %v280
    %v282 = vmul.f32 %v277, %v281
    %vm283 = vweird.f32 %v255
    %vm284 = vweird.f32 %v277
    %vm285 = vmor %vm283, %vm284
    %v286 = vsel %vm285, %v277, %v282
    %v287 = vrsqrt.pop %v256
    %v288 = vmul.f32 %v287, %v256
    %v289 = vmul.f32 %v288, %v287
    %v290 = vmul.f32 0.5, %v289
    %v291 = vsub.f32 1.5, %v290
    %v292 = vmul.f32 %v287, %v291
    %vm293 = vweird.f32 %v256
    %vm294 = vweird.f32 %v287
    %vm295 = vmor %vm293, %vm294
    %v296 = vsel %vm295, %v287, %v292
    %v297 = vmul.f32 %v249, %v266
    %v298 = vmul.f32 %v250, %v276
    %v299 = vmul.f32 %v251, %v286
    %v300 = vmul.f32 %v252, %v296
    %v301 = vld [vmem:[%s2] sm:$0x1]
    %v303 = vperm.slane %v301, 0
    %v305 = vmul.f32 %v297, %v303
    %v306 = vmul.f32 %v298, %v303
    %v307 = vmul.f32 %v299, %v303
    %v308 = vmul.f32 %v300, %v303
    %v309 = vld [vmem:[%s3] sm:$0x1]
    %v311 = vperm.slane %v309, 0
    %v313 = vadd.f32 %v305, %v311
    %v314 = vadd.f32 %v306, %v311
    %v315 = vadd.f32 %v307, %v311
    %v316 = vadd.f32 %v308, %v311
    %v317 = vld [vmem:[%s1] sm:$0x1]
    %v318 = vld [vmem:[%s1 + $0x1] sm:$0x1]
    %v319 = vld [vmem:[%s1 + $0x2] sm:$0x1]
    %v320 = vld [vmem:[%s1 + $0x3] sm:$0x1]
    %v325 = vperm.slane %v317, 0
    %v326 = vperm.slane %v318, 0
    %v327 = vperm.slane %v319, 0
    %v328 = vperm.slane %v320, 0
    %v333 = vld [vmem:[%s4] sm:$0xff]
    %v334 = vld [vmem:[%s4 + $0x8] sm:$0xff]
    %v335 = vld [vmem:[%s4 + $0x10] sm:$0xff]
    %v336 = vld [vmem:[%s4 + $0x18] sm:$0xff]
    %v337 = vld [vmem:[%s4 + $0x20] sm:$0xff]
    %v338 = vld [vmem:[%s4 + $0x28] sm:$0xff]
    %v339 = vld [vmem:[%s4 + $0x30] sm:$0xff]
    %v340 = vld [vmem:[%s4 + $0x38] sm:$0xff]
    %v341 = vld [vmem:[%s4 + $0x40] sm:$0xff]
    %v342 = vld [vmem:[%s4 + $0x48] sm:$0xff]
    %v343 = vld [vmem:[%s4 + $0x50] sm:$0xff]
    %v344 = vld [vmem:[%s4 + $0x58] sm:$0xff]
    %v345 = vld [vmem:[%s4 + $0x60] sm:$0xff]
    %v346 = vld [vmem:[%s4 + $0x68] sm:$0xff]
    %v347 = vld [vmem:[%s4 + $0x70] sm:$0xff]
    %v348 = vld [vmem:[%s4 + $0x78] sm:$0xff]
    %v349 = vld [vmem:[%s4 + $0x80] sm:$0xff]
    %v350 = vld [vmem:[%s4 + $0x88] sm:$0xff]
    %v351 = vld [vmem:[%s4 + $0x90] sm:$0xff]
    %v352 = vld [vmem:[%s4 + $0x98] sm:$0xff]
    %v353 = vld [vmem:[%s4 + $0xa0] sm:$0xff]
    %v354 = vld [vmem:[%s4 + $0xa8] sm:$0xff]
    %v355 = vld [vmem:[%s4 + $0xb0] sm:$0xff]
    %v356 = vld [vmem:[%s4 + $0xb8] sm:$0xff]
    %v357 = vld [vmem:[%s4 + $0xc0] sm:$0xff]
    %v358 = vld [vmem:[%s4 + $0xc8] sm:$0xff]
    %v359 = vld [vmem:[%s4 + $0xd0] sm:$0xff]
    %v360 = vld [vmem:[%s4 + $0xd8] sm:$0xff]
    %v361 = vld [vmem:[%s4 + $0xe0] sm:$0xff]
    %v362 = vld [vmem:[%s4 + $0xe8] sm:$0xff]
    %v363 = vld [vmem:[%s4 + $0xf0] sm:$0xff]
    %v364 = vld [vmem:[%s4 + $0xf8] sm:$0xff]
    %v365 = vld [vmem:[%s4 + $0x100] sm:$0xff]
    %v366 = vld [vmem:[%s4 + $0x108] sm:$0xff]
    %v367 = vld [vmem:[%s4 + $0x110] sm:$0xff]
    %v368 = vld [vmem:[%s4 + $0x118] sm:$0xff]
    %v369 = vld [vmem:[%s4 + $0x120] sm:$0xff]
    %v370 = vld [vmem:[%s4 + $0x128] sm:$0xff]
    %v371 = vld [vmem:[%s4 + $0x130] sm:$0xff]
    %v372 = vld [vmem:[%s4 + $0x138] sm:$0xff]
    %v373 = vld [vmem:[%s4 + $0x140] sm:$0xff]
    %v374 = vld [vmem:[%s4 + $0x148] sm:$0xff]
    %v375 = vld [vmem:[%s4 + $0x150] sm:$0xff]
    %v376 = vld [vmem:[%s4 + $0x158] sm:$0xff]
    %v377 = vld [vmem:[%s4 + $0x160] sm:$0xff]
    %v378 = vld [vmem:[%s4 + $0x168] sm:$0xff]
    %v379 = vld [vmem:[%s4 + $0x170] sm:$0xff]
    %v380 = vld [vmem:[%s4 + $0x178] sm:$0xff]
    %v381 = vld [vmem:[%s5] sm:$0x7]
    %v383 = vperm.slane %v381, 0
    %v384 = vperm.slane %v381, 1
    %v385 = vperm.slane %v381, 2
    %389 = vmatpush.msra.mxu0 %v378
    %390 = vmatpush.msra.mxu0 %v375
    %391 = vmatpush.msra.mxu0 %v372
    %392 = vmatpush.msra.mxu0 %v369
    %393 = vmatpush.msra.mxu0 %v366
    %394 = vmatpush.msra.mxu0 %v363
    %395 = vmatpush.msra.mxu0 %v360
    %396 = vmatpush.msra.mxu0 %v357
    %397 = vmatpush.msra.mxu0 %v354
    %398 = vmatpush.msra.mxu0 %v351
    %399 = vmatpush.msra.mxu0 %v348
    %400 = vmatpush.msra.mxu0 %v345
    %401 = vmatpush.msra.mxu0 %v342
    %402 = vmatpush.msra.mxu0 %v339
    %403 = vmatpush.msra.mxu0 %v336
    %404 = vmatpush.msra.mxu0 %v333
    %405 = vmatmul.f32.gmra.mxu0 %v313
    %v406 = vpop.f32.mrf.mxu0
    %v407 = vadd.f32 %v383, %v406
    %408 = vmatmul.f32.gmra.mxu0 %v314
    %v409 = vpop.f32.mrf.mxu0
    %v410 = vadd.f32 %v383, %v409
    %411 = vmatmul.f32.gmra.mxu0 %v315
    %v412 = vpop.f32.mrf.mxu0
    %v413 = vadd.f32 %v383, %v412
    %414 = vmatmul.f32.gmra.mxu0 %v316
    %v415 = vpop.f32.mrf.mxu0
    %v416 = vadd.f32 %v383, %v415
    %417 = vdwg.mxu0
    %418 = vmatpush.msra.mxu0 %v379
    %419 = vmatpush.msra.mxu0 %v376
    %420 = vmatpush.msra.mxu0 %v373
    %421 = vmatpush.msra.mxu0 %v370
    %422 = vmatpush.msra.mxu0 %v367
    %423 = vmatpush.msra.mxu0 %v364
    %424 = vmatpush.msra.mxu0 %v361
    %425 = vmatpush.msra.mxu0 %v358
    %426 = vmatpush.msra.mxu0 %v355
    %427 = vmatpush.msra.mxu0 %v352
    %428 = vmatpush.msra.mxu0 %v349
    %429 = vmatpush.msra.mxu0 %v346
    %430 = vmatpush.msra.mxu0 %v343
    %431 = vmatpush.msra.mxu0 %v340
    %432 = vmatpush.msra.mxu0 %v337
    %433 = vmatpush.msra.mxu0 %v334
    %434 = vmatmul.f32.gmra.mxu0 %v313
    %v435 = vpop.f32.mrf.mxu0
    %v436 = vadd.f32 %v384, %v435
    %437 = vmatmul.f32.gmra.mxu0 %v314
    %v438 = vpop.f32.mrf.mxu0
    %v439 = vadd.f32 %v384, %v438
    %440 = vmatmul.f32.gmra.mxu0 %v315
    %v441 = vpop.f32.mrf.mxu0
    %v442 = vadd.f32 %v384, %v441
    %443 = vmatmul.f32.gmra.mxu0 %v316
    %v444 = vpop.f32.mrf.mxu0
    %v445 = vadd.f32 %v384, %v444
    %446 = vdwg.mxu0
    %447 = vmatpush.msra.mxu0 %v380
    %448 = vmatpush.msra.mxu0 %v377
    %449 = vmatpush.msra.mxu0 %v374
    %450 = vmatpush.msra.mxu0 %v371
    %451 = vmatpush.msra.mxu0 %v368
    %452 = vmatpush.msra.mxu0 %v365
    %453 = vmatpush.msra.mxu0 %v362
    %454 = vmatpush.msra.mxu0 %v359
    %455 = vmatpush.msra.mxu0 %v356
    %456 = vmatpush.msra.mxu0 %v353
    %457 = vmatpush.msra.mxu0 %v350
    %458 = vmatpush.msra.mxu0 %v347
    %459 = vmatpush.msra.mxu0 %v344
    %460 = vmatpush.msra.mxu0 %v341
    %461 = vmatpush.msra.mxu0 %v338
    %462 = vmatpush.msra.mxu0 %v335
    %463 = vmatmul.f32.gmra.mxu0 %v313
    %v464 = vpop.f32.mrf.mxu0
    %v465 = vadd.f32 %v385, %v464
    %466 = vmatmul.f32.gmra.mxu0 %v314
    %v467 = vpop.f32.mrf.mxu0
    %v468 = vadd.f32 %v385, %v467
    %469 = vmatmul.f32.gmra.mxu0 %v315
    %v470 = vpop.f32.mrf.mxu0
    %v471 = vadd.f32 %v385, %v470
    %472 = vmatmul.f32.gmra.mxu0 %v316
    %v473 = vpop.f32.mrf.mxu0
    %v474 = vadd.f32 %v385, %v473
    %475 = vdwg.mxu0
    %vm476 = vcmask 261120
    %v478 = vsel %vm476, %v407, 0
    %v481 = vsel %vm476, %v436, 0
    %483 = vmatpush.xpose.msra.mxu0 0.0
    %484 = vmatpush.xpose.msra.mxu0 0.0
    %485 = vmatpush.xpose.msra.mxu0 0.0
    %486 = vmatpush.xpose.msra.mxu0 0.0
    %487 = vmatpush.xpose.msra.mxu0 0.0
    %488 = vmatpush.xpose.msra.mxu0 0.0
    %489 = vmatpush.xpose.msra.mxu0 0.0
    %490 = vmatpush.xpose.msra.mxu0 0.0
    %491 = vmatpush.xpose.msra.mxu0 0.0
    %492 = vmatpush.xpose.msra.mxu0 0.0
    %493 = vmatpush.xpose.msra.mxu0 0.0
    %494 = vmatpush.xpose.msra.mxu0 0.0
    %495 = vmatpush.xpose.msra.mxu0 0.0
    %496 = vmatpush.xpose.msra.mxu0 0.0
    %497 = vmatpush.xpose.msra.mxu0 0.0
    %498 = vmatpush.xpose.msra.mxu0 %v481
    %499 = vmatmul.f32.gmra.mxu0 %v478
    %v500 = vpop.f32.mrf.mxu0
    %v501 = vadd.f32 %v325, %v500
    %502 = vdwg.mxu0
    %v504 = vsel %vm476, %v410, 0
    %v507 = vsel %vm476, %v439, 0
    %509 = vmatpush.xpose.msra.mxu0 0.0
    %510 = vmatpush.xpose.msra.mxu0 0.0
    %511 = vmatpush.xpose.msra.mxu0 0.0
    %512 = vmatpush.xpose.msra.mxu0 0.0
    %513 = vmatpush.xpose.msra.mxu0 0.0
    %514 = vmatpush.xpose.msra.mxu0 0.0
    %515 = vmatpush.xpose.msra.mxu0 0.0
    %516 = vmatpush.xpose.msra.mxu0 0.0
    %517 = vmatpush.xpose.msra.mxu0 0.0
    %518 = vmatpush.xpose.msra.mxu0 0.0
    %519 = vmatpush.xpose.msra.mxu0 0.0
    %520 = vmatpush.xpose.msra.mxu0 0.0
    %521 = vmatpush.xpose.msra.mxu0 0.0
    %522 = vmatpush.xpose.msra.mxu0 0.0
    %523 = vmatpush.xpose.msra.mxu0 0.0
    %524 = vmatpush.xpose.msra.mxu0 %v507
    %525 = vmatmul.f32.gmra.mxu0 %v504
    %v526 = vpop.f32.mrf.mxu0
    %v527 = vadd.f32 %v326, %v526
    %528 = vdwg.mxu0
    %v530 = vsel %vm476, %v413, 0
    %v533 = vsel %vm476, %v442, 0
    %535 = vmatpush.xpose.msra.mxu0 0.0
    %536 = vmatpush.xpose.msra.mxu0 0.0
    %537 = vmatpush.xpose.msra.mxu0 0.0
    %538 = vmatpush.xpose.msra.mxu0 0.0
    %539 = vmatpush.xpose.msra.mxu0 0.0
    %540 = vmatpush.xpose.msra.mxu0 0.0
    %541 = vmatpush.xpose.msra.mxu0 0.0
    %542 = vmatpush.xpose.msra.mxu0 0.0
    %543 = vmatpush.xpose.msra.mxu0 0.0
    %544 = vmatpush.xpose.msra.mxu0 0.0
    %545 = vmatpush.xpose.msra.mxu0 0.0
    %546 = vmatpush.xpose.msra.mxu0 0.0
    %547 = vmatpush.xpose.msra.mxu0 0.0
    %548 = vmatpush.xpose.msra.mxu0 0.0
    %549 = vmatpush.xpose.msra.mxu0 0.0
    %550 = vmatpush.xpose.msra.mxu0 %v533
    %551 = vmatmul.f32.gmra.mxu0 %v530
    %v552 = vpop.f32.mrf.mxu0
    %v553 = vadd.f32 %v327, %v552
    %554 = vdwg.mxu0
    %v556 = vsel %vm476, %v416, 0
    %v559 = vsel %vm476, %v445, 0
    %561 = vmatpush.xpose.msra.mxu0 0.0
    %562 = vmatpush.xpose.msra.mxu0 0.0
    %563 = vmatpush.xpose.msra.mxu0 0.0
    %564 = vmatpush.xpose.msra.mxu0 0.0
    %565 = vmatpush.xpose.msra.mxu0 0.0
    %566 = vmatpush.xpose.msra.mxu0 0.0
    %567 = vmatpush.xpose.msra.mxu0 0.0
    %568 = vmatpush.xpose.msra.mxu0 0.0
    %569 = vmatpush.xpose.msra.mxu0 0.0
    %570 = vmatpush.xpose.msra.mxu0 0.0
    %571 = vmatpush.xpose.msra.mxu0 0.0
    %572 = vmatpush.xpose.msra.mxu0 0.0
    %573 = vmatpush.xpose.msra.mxu0 0.0
    %574 = vmatpush.xpose.msra.mxu0 0.0
    %575 = vmatpush.xpose.msra.mxu0 0.0
    %576 = vmatpush.xpose.msra.mxu0 %v559
    %577 = vmatmul.f32.gmra.mxu0 %v556
    %v578 = vpop.f32.mrf.mxu0
    %v579 = vadd.f32 %v328, %v578
    %580 = vdwg.mxu0
    %vm581 = vcmask 64512
    %v582 = vsel %vm581, %v501, -inf
    %583 = vmax.xlane.f32.xlu0 %v582
    %v584 = vpop.xlane.xlu0 %583
    %v585 = vsel %vm581, %v527, -inf
    %586 = vmax.xlane.f32.xlu0 %v585
    %v587 = vpop.xlane.xlu0 %586
    %v588 = vsel %vm581, %v553, -inf
    %589 = vmax.xlane.f32.xlu0 %v588
    %v590 = vpop.xlane.xlu0 %589
    %v591 = vsel %vm581, %v579, -inf
    %592 = vmax.xlane.f32.xlu0 %v591
    %v593 = vpop.xlane.xlu0 %592
    %v594 = vsub.f32 %v501, %v584
    %v595 = vsub.f32 %v527, %v587
    %v596 = vsub.f32 %v553, %v590
    %v597 = vsub.f32 %v579, %v593
    %v598 = vmul.f32 %v594, 1.442695
    %v599 = vpow.pop %v598
    %v600 = vmul.f32 %v595, 1.442695
    %v601 = vpow.pop %v600
    %v602 = vmul.f32 %v596, 1.442695
    %v603 = vpow.pop %v602
    %v604 = vmul.f32 %v597, 1.442695
    %v605 = vpow.pop %v604
    %v606 = vsel %vm581, %v599, 0.0
    %607 = vadd.xlane.f32.xlu0 %v606
    %v608 = vpop.xlane.xlu0 %607
    %v609 = vsel %vm581, %v601, 0.0
    %610 = vadd.xlane.f32.xlu0 %v609
    %v611 = vpop.xlane.xlu0 %610
    %v612 = vsel %vm581, %v603, 0.0
    %613 = vadd.xlane.f32.xlu0 %v612
    %v614 = vpop.xlane.xlu0 %613
    %v615 = vsel %vm581, %v605, 0.0
    %616 = vadd.xlane.f32.xlu0 %v615
    %v617 = vpop.xlane.xlu0 %616
    %v618 = vrcp.pop %v608
    %v619 = vrcp.pop %v611
    %v620 = vrcp.pop %v614
    %v621 = vrcp.pop %v617
    %v622 = vmul.f32 %v599, %v618
    %v623 = vmul.f32 %v601, %v619
    %v624 = vmul.f32 %v603, %v620
    %v625 = vmul.f32 %v605, %v621
    %v627 = vsel %vm581, %v622, 0
    %629 = vmatpush.msra.mxu0 0.0
    %630 = vmatpush.msra.mxu0 0.0
    %631 = vmatpush.msra.mxu0 0.0
    %632 = vmatpush.msra.mxu0 0.0
    %633 = vmatpush.msra.mxu0 0.0
    %634 = vmatpush.msra.mxu0 0.0
    %635 = vmatpush.msra.mxu0 0.0
    %636 = vmatpush.msra.mxu0 0.0
    %637 = vmatpush.msra.mxu0 0.0
    %638 = vmatpush.msra.mxu0 0.0
    %639 = vmatpush.msra.mxu0 0.0
    %640 = vmatpush.msra.mxu0 0.0
    %641 = vmatpush.msra.mxu0 0.0
    %642 = vmatpush.msra.mxu0 0.0
    %643 = vmatpush.msra.mxu0 0.0
    %644 = vmatpush.msra.mxu0 %v465
    %645 = vmatmul.f32.gmra.mxu0 %v627
    %v646 = vpop.f32.mrf.mxu0
    %v647 = vadd.f32 0.0, %v646
    %648 = vdwg.mxu0
    %v650 = vsel %vm581, %v623, 0
    %652 = vmatpush.msra.mxu0 0.0
    %653 = vmatpush.msra.mxu0 0.0
    %654 = vmatpush.msra.mxu0 0.0
    %655 = vmatpush.msra.mxu0 0.0
    %656 = vmatpush.msra.mxu0 0.0
    %657 = vmatpush.msra.mxu0 0.0
    %658 = vmatpush.msra.mxu0 0.0
    %659 = vmatpush.msra.mxu0 0.0
    %660 = vmatpush.msra.mxu0 0.0
    %661 = vmatpush.msra.mxu0 0.0
    %662 = vmatpush.msra.mxu0 0.0
    %663 = vmatpush.msra.mxu0 0.0
    %664 = vmatpush.msra.mxu0 0.0
    %665 = vmatpush.msra.mxu0 0.0
    %666 = vmatpush.msra.mxu0 0.0
    %667 = vmatpush.msra.mxu0 %v468
    %668 = vmatmul.f32.gmra.mxu0 %v650
    %v669 = vpop.f32.mrf.mxu0
    %v670 = vadd.f32 0.0, %v669
    %671 = vdwg.mxu0
    %v673 = vsel %vm581, %v624, 0
    %675 = vmatpush.msra.mxu0 0.0
    %676 = vmatpush.msra.mxu0 0.0
    %677 = vmatpush.msra.mxu0 0.0
    %678 = vmatpush.msra.mxu0 0.0
    %679 = vmatpush.msra.mxu0 0.0
    %680 = vmatpush.msra.mxu0 0.0
    %681 = vmatpush.msra.mxu0 0.0
    %682 = vmatpush.msra.mxu0 0.0
    %683 = vmatpush.msra.mxu0 0.0
    %684 = vmatpush.msra.mxu0 0.0
    %685 = vmatpush.msra.mxu0 0.0
    %686 = vmatpush.msra.mxu0 0.0
    %687 = vmatpush.msra.mxu0 0.0
    %688 = vmatpush.msra.mxu0 0.0
    %689 = vmatpush.msra.mxu0 0.0
    %690 = vmatpush.msra.mxu0 %v471
    %691 = vmatmul.f32.gmra.mxu0 %v673
    %v692 = vpop.f32.mrf.mxu0
    %v693 = vadd.f32 0.0, %v692
    %694 = vdwg.mxu0
    %v696 = vsel %vm581, %v625, 0
    %698 = vmatpush.msra.mxu0 0.0
    %699 = vmatpush.msra.mxu0 0.0
    %700 = vmatpush.msra.mxu0 0.0
    %701 = vmatpush.msra.mxu0 0.0
    %702 = vmatpush.msra.mxu0 0.0
    %703 = vmatpush.msra.mxu0 0.0
    %704 = vmatpush.msra.mxu0 0.0
    %705 = vmatpush.msra.mxu0 0.0
    %706 = vmatpush.msra.mxu0 0.0
    %707 = vmatpush.msra.mxu0 0.0
    %708 = vmatpush.msra.mxu0 0.0
    %709 = vmatpush.msra.mxu0 0.0
    %710 = vmatpush.msra.mxu0 0.0
    %711 = vmatpush.msra.mxu0 0.0
    %712 = vmatpush.msra.mxu0 0.0
    %713 = vmatpush.msra.mxu0 %v474
    %714 = vmatmul.f32.gmra.mxu0 %v696
    %v715 = vpop.f32.mrf.mxu0
    %v716 = vadd.f32 0.0, %v715
    %717 = vdwg.mxu0
    %v718 = vld [vmem:[#allocation2] sm:$0xff]
    %v719 = vld [vmem:[#allocation2 + $0x8] sm:$0xff]
    %v720 = vld [vmem:[#allocation2 + $0x10] sm:$0xff]
    %v721 = vld [vmem:[#allocation2 + $0x18] sm:$0xff]
    %722 = vrot.lane.b32.xlu0 %v407, 96
    %v723 = vpop.permute.xlu0 %722
    %724 = vrot.lane.b32.xlu0 %v436, 96
    %v725 = vpop.permute.xlu0 %724
    %v726 = vsel %vm476, %v723, 0
    %v728 = vsel %vm476, %v725, 0
    %730 = vmatpush.xpose.msra.mxu0 0.0
    %731 = vmatpush.xpose.msra.mxu0 0.0
    %732 = vmatpush.xpose.msra.mxu0 0.0
    %733 = vmatpush.xpose.msra.mxu0 0.0
    %734 = vmatpush.xpose.msra.mxu0 0.0
    %735 = vmatpush.xpose.msra.mxu0 0.0
    %736 = vmatpush.xpose.msra.mxu0 0.0
    %737 = vmatpush.xpose.msra.mxu0 0.0
    %738 = vmatpush.xpose.msra.mxu0 0.0
    %739 = vmatpush.xpose.msra.mxu0 0.0
    %740 = vmatpush.xpose.msra.mxu0 0.0
    %741 = vmatpush.xpose.msra.mxu0 0.0
    %742 = vmatpush.xpose.msra.mxu0 0.0
    %743 = vmatpush.xpose.msra.mxu0 0.0
    %744 = vmatpush.xpose.msra.mxu0 0.0
    %745 = vmatpush.xpose.msra.mxu0 %v728
    %746 = vmatmul.f32.gmra.mxu0 %v726
    %v747 = vpop.f32.mrf.mxu0
    %v748 = vadd.f32 %v325, %v747
    %749 = vdwg.mxu0
    %750 = vrot.lane.b32.xlu0 %v410, 96
    %v751 = vpop.permute.xlu0 %750
    %752 = vrot.lane.b32.xlu0 %v439, 96
    %v753 = vpop.permute.xlu0 %752
    %v754 = vsel %vm476, %v751, 0
    %v756 = vsel %vm476, %v753, 0
    %758 = vmatpush.xpose.msra.mxu0 0.0
    %759 = vmatpush.xpose.msra.mxu0 0.0
    %760 = vmatpush.xpose.msra.mxu0 0.0
    %761 = vmatpush.xpose.msra.mxu0 0.0
    %762 = vmatpush.xpose.msra.mxu0 0.0
    %763 = vmatpush.xpose.msra.mxu0 0.0
    %764 = vmatpush.xpose.msra.mxu0 0.0
    %765 = vmatpush.xpose.msra.mxu0 0.0
    %766 = vmatpush.xpose.msra.mxu0 0.0
    %767 = vmatpush.xpose.msra.mxu0 0.0
    %768 = vmatpush.xpose.msra.mxu0 0.0
    %769 = vmatpush.xpose.msra.mxu0 0.0
    %770 = vmatpush.xpose.msra.mxu0 0.0
    %771 = vmatpush.xpose.msra.mxu0 0.0
    %772 = vmatpush.xpose.msra.mxu0 0.0
    %773 = vmatpush.xpose.msra.mxu0 %v756
    %774 = vmatmul.f32.gmra.mxu0 %v754
    %v775 = vpop.f32.mrf.mxu0
    %v776 = vadd.f32 %v326, %v775
    %777 = vdwg.mxu0
    %778 = vrot.lane.b32.xlu0 %v413, 96
    %v779 = vpop.permute.xlu0 %778
    %780 = vrot.lane.b32.xlu0 %v442, 96
    %v781 = vpop.permute.xlu0 %780
    %v782 = vsel %vm476, %v779, 0
    %v784 = vsel %vm476, %v781, 0
    %786 = vmatpush.xpose.msra.mxu0 0.0
    %787 = vmatpush.xpose.msra.mxu0 0.0
    %788 = vmatpush.xpose.msra.mxu0 0.0
    %789 = vmatpush.xpose.msra.mxu0 0.0
    %790 = vmatpush.xpose.msra.mxu0 0.0
    %791 = vmatpush.xpose.msra.mxu0 0.0
    %792 = vmatpush.xpose.msra.mxu0 0.0
    %793 = vmatpush.xpose.msra.mxu0 0.0
    %794 = vmatpush.xpose.msra.mxu0 0.0
    %795 = vmatpush.xpose.msra.mxu0 0.0
    %796 = vmatpush.xpose.msra.mxu0 0.0
    %797 = vmatpush.xpose.msra.mxu0 0.0
    %798 = vmatpush.xpose.msra.mxu0 0.0
    %799 = vmatpush.xpose.msra.mxu0 0.0
    %800 = vmatpush.xpose.msra.mxu0 0.0
    %801 = vmatpush.xpose.msra.mxu0 %v784
    %802 = vmatmul.f32.gmra.mxu0 %v782
    %v803 = vpop.f32.mrf.mxu0
    %v804 = vadd.f32 %v327, %v803
    %805 = vdwg.mxu0
    %806 = vrot.lane.b32.xlu0 %v416, 96
    %v807 = vpop.permute.xlu0 %806
    %808 = vrot.lane.b32.xlu0 %v445, 96
    %v809 = vpop.permute.xlu0 %808
    %v810 = vsel %vm476, %v807, 0
    %v812 = vsel %vm476, %v809, 0
    %814 = vmatpush.xpose.msra.mxu0 0.0
    %815 = vmatpush.xpose.msra.mxu0 0.0
    %816 = vmatpush.xpose.msra.mxu0 0.0
    %817 = vmatpush.xpose.msra.mxu0 0.0
    %818 = vmatpush.xpose.msra.mxu0 0.0
    %819 = vmatpush.xpose.msra.mxu0 0.0
    %820 = vmatpush.xpose.msra.mxu0 0.0
    %821 = vmatpush.xpose.msra.mxu0 0.0
    %822 = vmatpush.xpose.msra.mxu0 0.0
    %823 = vmatpush.xpose.msra.mxu0 0.0
    %824 = vmatpush.xpose.msra.mxu0 0.0
    %825 = vmatpush.xpose.msra.mxu0 0.0
    %826 = vmatpush.xpose.msra.mxu0 0.0
    %827 = vmatpush.xpose.msra.mxu0 0.0
    %828 = vmatpush.xpose.msra.mxu0 0.0
    %829 = vmatpush.xpose.msra.mxu0 %v812
    %830 = vmatmul.f32.gmra.mxu0 %v810
    %v831 = vpop.f32.mrf.mxu0
    %v832 = vadd.f32 %v328, %v831
    %833 = vdwg.mxu0
    %v834 = vsel %vm581, %v748, -inf
    %835 = vmax.xlane.f32.xlu0 %v834
    %v836 = vpop.xlane.xlu0 %835
    %v837 = vsel %vm581, %v776, -inf
    %838 = vmax.xlane.f32.xlu0 %v837
    %v839 = vpop.xlane.xlu0 %838
    %v840 = vsel %vm581, %v804, -inf
    %841 = vmax.xlane.f32.xlu0 %v840
    %v842 = vpop.xlane.xlu0 %841
    %v843 = vsel %vm581, %v832, -inf
    %844 = vmax.xlane.f32.xlu0 %v843
    %v845 = vpop.xlane.xlu0 %844
    %v846 = vsub.f32 %v748, %v836
    %v847 = vsub.f32 %v776, %v839
    %v848 = vsub.f32 %v804, %v842
    %v849 = vsub.f32 %v832, %v845
    %v850 = vmul.f32 %v846, 1.442695
    %v851 = vpow.pop %v850
    %v852 = vmul.f32 %v847, 1.442695
    %v853 = vpow.pop %v852
    %v854 = vmul.f32 %v848, 1.442695
    %v855 = vpow.pop %v854
    %v856 = vmul.f32 %v849, 1.442695
    %v857 = vpow.pop %v856
    %v858 = vsel %vm581, %v851, 0.0
    %859 = vadd.xlane.f32.xlu0 %v858
    %v860 = vpop.xlane.xlu0 %859
    %v861 = vsel %vm581, %v853, 0.0
    %862 = vadd.xlane.f32.xlu0 %v861
    %v863 = vpop.xlane.xlu0 %862
    %v864 = vsel %vm581, %v855, 0.0
    %865 = vadd.xlane.f32.xlu0 %v864
    %v866 = vpop.xlane.xlu0 %865
    %v867 = vsel %vm581, %v857, 0.0
    %868 = vadd.xlane.f32.xlu0 %v867
    %v869 = vpop.xlane.xlu0 %868
    %v870 = vrcp.pop %v860
    %v871 = vrcp.pop %v863
    %v872 = vrcp.pop %v866
    %v873 = vrcp.pop %v869
    %v874 = vmul.f32 %v851, %v870
    %v875 = vmul.f32 %v853, %v871
    %v876 = vmul.f32 %v855, %v872
    %v877 = vmul.f32 %v857, %v873
    %879 = vrot.lane.b32.xlu0 %v465, 96
    %v880 = vpop.permute.xlu0 %879
    %v883 = vsel %vm581, %v874, 0
    %885 = vmatpush.msra.mxu0 0.0
    %886 = vmatpush.msra.mxu0 0.0
    %887 = vmatpush.msra.mxu0 0.0
    %888 = vmatpush.msra.mxu0 0.0
    %889 = vmatpush.msra.mxu0 0.0
    %890 = vmatpush.msra.mxu0 0.0
    %891 = vmatpush.msra.mxu0 0.0
    %892 = vmatpush.msra.mxu0 0.0
    %893 = vmatpush.msra.mxu0 0.0
    %894 = vmatpush.msra.mxu0 0.0
    %895 = vmatpush.msra.mxu0 0.0
    %896 = vmatpush.msra.mxu0 0.0
    %897 = vmatpush.msra.mxu0 0.0
    %898 = vmatpush.msra.mxu0 0.0
    %899 = vmatpush.msra.mxu0 0.0
    %900 = vmatpush.msra.mxu0 %v880
    %901 = vmatmul.f32.gmra.mxu0 %v883
    %v902 = vpop.f32.mrf.mxu0
    %v903 = vadd.f32 0.0, %v902
    %904 = vdwg.mxu0
    %906 = vrot.lane.b32.xlu0 %v468, 96
    %v907 = vpop.permute.xlu0 %906
    %v910 = vsel %vm581, %v875, 0
    %912 = vmatpush.msra.mxu0 0.0
    %913 = vmatpush.msra.mxu0 0.0
    %914 = vmatpush.msra.mxu0 0.0
    %915 = vmatpush.msra.mxu0 0.0
    %916 = vmatpush.msra.mxu0 0.0
    %917 = vmatpush.msra.mxu0 0.0
    %918 = vmatpush.msra.mxu0 0.0
    %919 = vmatpush.msra.mxu0 0.0
    %920 = vmatpush.msra.mxu0 0.0
    %921 = vmatpush.msra.mxu0 0.0
    %922 = vmatpush.msra.mxu0 0.0
    %923 = vmatpush.msra.mxu0 0.0
    %924 = vmatpush.msra.mxu0 0.0
    %925 = vmatpush.msra.mxu0 0.0
    %926 = vmatpush.msra.mxu0 0.0
    %927 = vmatpush.msra.mxu0 %v907
    %928 = vmatmul.f32.gmra.mxu0 %v910
    %v929 = vpop.f32.mrf.mxu0
    %v930 = vadd.f32 0.0, %v929
    %931 = vdwg.mxu0
    %933 = vrot.lane.b32.xlu0 %v471, 96
    %v934 = vpop.permute.xlu0 %933
    %v937 = vsel %vm581, %v876, 0
    %939 = vmatpush.msra.mxu0 0.0
    %940 = vmatpush.msra.mxu0 0.0
    %941 = vmatpush.msra.mxu0 0.0
    %942 = vmatpush.msra.mxu0 0.0
    %943 = vmatpush.msra.mxu0 0.0
    %944 = vmatpush.msra.mxu0 0.0
    %945 = vmatpush.msra.mxu0 0.0
    %946 = vmatpush.msra.mxu0 0.0
    %947 = vmatpush.msra.mxu0 0.0
    %948 = vmatpush.msra.mxu0 0.0
    %949 = vmatpush.msra.mxu0 0.0
    %950 = vmatpush.msra.mxu0 0.0
    %951 = vmatpush.msra.mxu0 0.0
    %952 = vmatpush.msra.mxu0 0.0
    %953 = vmatpush.msra.mxu0 0.0
    %954 = vmatpush.msra.mxu0 %v934
    %955 = vmatmul.f32.gmra.mxu0 %v937
    %v956 = vpop.f32.mrf.mxu0
    %v957 = vadd.f32 0.0, %v956
    %958 = vdwg.mxu0
    %960 = vrot.lane.b32.xlu0 %v474, 96
    %v961 = vpop.permute.xlu0 %960
    %v964 = vsel %vm581, %v877, 0
    %966 = vmatpush.msra.mxu0 0.0
    %967 = vmatpush.msra.mxu0 0.0
    %968 = vmatpush.msra.mxu0 0.0
    %969 = vmatpush.msra.mxu0 0.0
    %970 = vmatpush.msra.mxu0 0.0
    %971 = vmatpush.msra.mxu0 0.0
    %972 = vmatpush.msra.mxu0 0.0
    %973 = vmatpush.msra.mxu0 0.0
    %974 = vmatpush.msra.mxu0 0.0
    %975 = vmatpush.msra.mxu0 0.0
    %976 = vmatpush.msra.mxu0 0.0
    %977 = vmatpush.msra.mxu0 0.0
    %978 = vmatpush.msra.mxu0 0.0
    %979 = vmatpush.msra.mxu0 0.0
    %980 = vmatpush.msra.mxu0 0.0
    %981 = vmatpush.msra.mxu0 %v961
    %982 = vmatmul.f32.gmra.mxu0 %v964
    %v983 = vpop.f32.mrf.mxu0
    %v984 = vadd.f32 0.0, %v983
    %985 = vdwg.mxu0
    %v986 = vld [vmem:[#allocation2 + $0x20] sm:$0xff]
    %v987 = vld [vmem:[#allocation2 + $0x28] sm:$0xff]
    %v988 = vld [vmem:[#allocation2 + $0x30] sm:$0xff]
    %v989 = vld [vmem:[#allocation2 + $0x38] sm:$0xff]
    %v991 = vsel %vm476, %v903, 0
    %v994 = vsel %vm476, %v930, 0
    %v997 = vsel %vm476, %v957, 0
    %v1000 = vsel %vm476, %v984, 0
    %1002 = vmatpush.msra.mxu0 0.0
    %1003 = vmatpush.msra.mxu0 0.0
    %1004 = vmatpush.msra.mxu0 0.0
    %1005 = vmatpush.msra.mxu0 0.0
    %1006 = vmatpush.msra.mxu0 0.0
    %1007 = vmatpush.msra.mxu0 0.0
    %1008 = vmatpush.msra.mxu0 0.0
    %1009 = vmatpush.msra.mxu0 0.0
    %1010 = vmatpush.msra.mxu0 0.0
    %1011 = vmatpush.msra.mxu0 0.0
    %1012 = vmatpush.msra.mxu0 0.0
    %1013 = vmatpush.msra.mxu0 0.0
    %1014 = vmatpush.msra.mxu0 %v989
    %1015 = vmatpush.msra.mxu0 %v988
    %1016 = vmatpush.msra.mxu0 %v987
    %1017 = vmatpush.msra.mxu0 %v986
    %1018 = vmatmul.f32.gmra.mxu0 %v991
    %v1019 = vpop.f32.mrf.mxu0
    %v1020 = vadd.f32 0.0, %v1019
    %1021 = vmatmul.f32.gmra.mxu0 %v994
    %v1022 = vpop.f32.mrf.mxu0
    %v1023 = vadd.f32 0.0, %v1022
    %1024 = vmatmul.f32.gmra.mxu0 %v997
    %v1025 = vpop.f32.mrf.mxu0
    %v1026 = vadd.f32 0.0, %v1025
    %1027 = vmatmul.f32.gmra.mxu0 %v1000
    %v1028 = vpop.f32.mrf.mxu0
    %v1029 = vadd.f32 0.0, %v1028
    %1030 = vdwg.mxu0
    %v1032 = vsel %vm476, %v647, 0
    %v1035 = vsel %vm476, %v670, 0
    %v1038 = vsel %vm476, %v693, 0
    %v1041 = vsel %vm476, %v716, 0
    %1043 = vmatpush.msra.mxu0 0.0
    %1044 = vmatpush.msra.mxu0 0.0
    %1045 = vmatpush.msra.mxu0 0.0
    %1046 = vmatpush.msra.mxu0 0.0
    %1047 = vmatpush.msra.mxu0 0.0
    %1048 = vmatpush.msra.mxu0 0.0
    %1049 = vmatpush.msra.mxu0 0.0
    %1050 = vmatpush.msra.mxu0 0.0
    %1051 = vmatpush.msra.mxu0 0.0
    %1052 = vmatpush.msra.mxu0 0.0
    %1053 = vmatpush.msra.mxu0 0.0
    %1054 = vmatpush.msra.mxu0 0.0
    %1055 = vmatpush.msra.mxu0 %v721
    %1056 = vmatpush.msra.mxu0 %v720
    %1057 = vmatpush.msra.mxu0 %v719
    %1058 = vmatpush.msra.mxu0 %v718
    %1059 = vmatmul.f32.gmra.mxu0 %v1032
    %v1060 = vpop.f32.mrf.mxu0
    %v1061 = vadd.f32 %v1020, %v1060
    %1062 = vmatmul.f32.gmra.mxu0 %v1035
    %v1063 = vpop.f32.mrf.mxu0
    %v1064 = vadd.f32 %v1023, %v1063
    %1065 = vmatmul.f32.gmra.mxu0 %v1038
    %v1066 = vpop.f32.mrf.mxu0
    %v1067 = vadd.f32 %v1026, %v1066
    %1068 = vmatmul.f32.gmra.mxu0 %v1041
    %v1069 = vpop.f32.mrf.mxu0
    %v1070 = vadd.f32 %v1029, %v1069
    %1071 = vdwg.mxu0
    %1072 = vrot.lane.b32.xlu0 %v407, 64
    %v1073 = vpop.permute.xlu0 %1072
    %1074 = vrot.lane.b32.xlu0 %v436, 64
    %v1075 = vpop.permute.xlu0 %1074
    %v1076 = vsel %vm476, %v1073, 0
    %v1078 = vsel %vm476, %v1075, 0
    %1080 = vmatpush.xpose.msra.mxu0 0.0
    %1081 = vmatpush.xpose.msra.mxu0 0.0
    %1082 = vmatpush.xpose.msra.mxu0 0.0
    %1083 = vmatpush.xpose.msra.mxu0 0.0
    %1084 = vmatpush.xpose.msra.mxu0 0.0
    %1085 = vmatpush.xpose.msra.mxu0 0.0
    %1086 = vmatpush.xpose.msra.mxu0 0.0
    %1087 = vmatpush.xpose.msra.mxu0 0.0
    %1088 = vmatpush.xpose.msra.mxu0 0.0
    %1089 = vmatpush.xpose.msra.mxu0 0.0
    %1090 = vmatpush.xpose.msra.mxu0 0.0
    %1091 = vmatpush.xpose.msra.mxu0 0.0
    %1092 = vmatpush.xpose.msra.mxu0 0.0
    %1093 = vmatpush.xpose.msra.mxu0 0.0
    %1094 = vmatpush.xpose.msra.mxu0 0.0
    %1095 = vmatpush.xpose.msra.mxu0 %v1078
    %1096 = vmatmul.f32.gmra.mxu0 %v1076
    %v1097 = vpop.f32.mrf.mxu0
    %v1098 = vadd.f32 %v325, %v1097
    %1099 = vdwg.mxu0
    %1100 = vrot.lane.b32.xlu0 %v410, 64
    %v1101 = vpop.permute.xlu0 %1100
    %1102 = vrot.lane.b32.xlu0 %v439, 64
    %v1103 = vpop.permute.xlu0 %1102
    %v1104 = vsel %vm476, %v1101, 0
    %v1106 = vsel %vm476, %v1103, 0
    %1108 = vmatpush.xpose.msra.mxu0 0.0
    %1109 = vmatpush.xpose.msra.mxu0 0.0
    %1110 = vmatpush.xpose.msra.mxu0 0.0
    %1111 = vmatpush.xpose.msra.mxu0 0.0
    %1112 = vmatpush.xpose.msra.mxu0 0.0
    %1113 = vmatpush.xpose.msra.mxu0 0.0
    %1114 = vmatpush.xpose.msra.mxu0 0.0
    %1115 = vmatpush.xpose.msra.mxu0 0.0
    %1116 = vmatpush.xpose.msra.mxu0 0.0
    %1117 = vmatpush.xpose.msra.mxu0 0.0
    %1118 = vmatpush.xpose.msra.mxu0 0.0
    %1119 = vmatpush.xpose.msra.mxu0 0.0
    %1120 = vmatpush.xpose.msra.mxu0 0.0
    %1121 = vmatpush.xpose.msra.mxu0 0.0
    %1122 = vmatpush.xpose.msra.mxu0 0.0
    %1123 = vmatpush.xpose.msra.mxu0 %v1106
    %1124 = vmatmul.f32.gmra.mxu0 %v1104
    %v1125 = vpop.f32.mrf.mxu0
    %v1126 = vadd.f32 %v326, %v1125
    %1127 = vdwg.mxu0
    %1128 = vrot.lane.b32.xlu0 %v413, 64
    %v1129 = vpop.permute.xlu0 %1128
    %1130 = vrot.lane.b32.xlu0 %v442, 64
    %v1131 = vpop.permute.xlu0 %1130
    %v1132 = vsel %vm476, %v1129, 0
    %v1134 = vsel %vm476, %v1131, 0
    %1136 = vmatpush.xpose.msra.mxu0 0.0
    %1137 = vmatpush.xpose.msra.mxu0 0.0
    %1138 = vmatpush.xpose.msra.mxu0 0.0
    %1139 = vmatpush.xpose.msra.mxu0 0.0
    %1140 = vmatpush.xpose.msra.mxu0 0.0
    %1141 = vmatpush.xpose.msra.mxu0 0.0
    %1142 = vmatpush.xpose.msra.mxu0 0.0
    %1143 = vmatpush.xpose.msra.mxu0 0.0
    %1144 = vmatpush.xpose.msra.mxu0 0.0
    %1145 = vmatpush.xpose.msra.mxu0 0.0
    %1146 = vmatpush.xpose.msra.mxu0 0.0
    %1147 = vmatpush.xpose.msra.mxu0 0.0
    %1148 = vmatpush.xpose.msra.mxu0 0.0
    %1149 = vmatpush.xpose.msra.mxu0 0.0
    %1150 = vmatpush.xpose.msra.mxu0 0.0
    %1151 = vmatpush.xpose.msra.mxu0 %v1134
    %1152 = vmatmul.f32.gmra.mxu0 %v1132
    %v1153 = vpop.f32.mrf.mxu0
    %v1154 = vadd.f32 %v327, %v1153
    %1155 = vdwg.mxu0
    %1156 = vrot.lane.b32.xlu0 %v416, 64
    %v1157 = vpop.permute.xlu0 %1156
    %1158 = vrot.lane.b32.xlu0 %v445, 64
    %v1159 = vpop.permute.xlu0 %1158
    %v1160 = vsel %vm476, %v1157, 0
    %v1162 = vsel %vm476, %v1159, 0
    %1164 = vmatpush.xpose.msra.mxu0 0.0
    %1165 = vmatpush.xpose.msra.mxu0 0.0
    %1166 = vmatpush.xpose.msra.mxu0 0.0
    %1167 = vmatpush.xpose.msra.mxu0 0.0
    %1168 = vmatpush.xpose.msra.mxu0 0.0
    %1169 = vmatpush.xpose.msra.mxu0 0.0
    %1170 = vmatpush.xpose.msra.mxu0 0.0
    %1171 = vmatpush.xpose.msra.mxu0 0.0
    %1172 = vmatpush.xpose.msra.mxu0 0.0
    %1173 = vmatpush.xpose.msra.mxu0 0.0
    %1174 = vmatpush.xpose.msra.mxu0 0.0
    %1175 = vmatpush.xpose.msra.mxu0 0.0
    %1176 = vmatpush.xpose.msra.mxu0 0.0
    %1177 = vmatpush.xpose.msra.mxu0 0.0
    %1178 = vmatpush.xpose.msra.mxu0 0.0
    %1179 = vmatpush.xpose.msra.mxu0 %v1162
    %1180 = vmatmul.f32.gmra.mxu0 %v1160
    %v1181 = vpop.f32.mrf.mxu0
    %v1182 = vadd.f32 %v328, %v1181
    %1183 = vdwg.mxu0
    %v1184 = vsel %vm581, %v1098, -inf
    %1185 = vmax.xlane.f32.xlu0 %v1184
    %v1186 = vpop.xlane.xlu0 %1185
    %v1187 = vsel %vm581, %v1126, -inf
    %1188 = vmax.xlane.f32.xlu0 %v1187
    %v1189 = vpop.xlane.xlu0 %1188
    %v1190 = vsel %vm581, %v1154, -inf
    %1191 = vmax.xlane.f32.xlu0 %v1190
    %v1192 = vpop.xlane.xlu0 %1191
    %v1193 = vsel %vm581, %v1182, -inf
    %1194 = vmax.xlane.f32.xlu0 %v1193
    %v1195 = vpop.xlane.xlu0 %1194
    %v1196 = vsub.f32 %v1098, %v1186
    %v1197 = vsub.f32 %v1126, %v1189
    %v1198 = vsub.f32 %v1154, %v1192
    %v1199 = vsub.f32 %v1182, %v1195
    %v1200 = vmul.f32 %v1196, 1.442695
    %v1201 = vpow.pop %v1200
    %v1202 = vmul.f32 %v1197, 1.442695
    %v1203 = vpow.pop %v1202
    %v1204 = vmul.f32 %v1198, 1.442695
    %v1205 = vpow.pop %v1204
    %v1206 = vmul.f32 %v1199, 1.442695
    %v1207 = vpow.pop %v1206
    %v1208 = vsel %vm581, %v1201, 0.0
    %1209 = vadd.xlane.f32.xlu0 %v1208
    %v1210 = vpop.xlane.xlu0 %1209
    %v1211 = vsel %vm581, %v1203, 0.0
    %1212 = vadd.xlane.f32.xlu0 %v1211
    %v1213 = vpop.xlane.xlu0 %1212
    %v1214 = vsel %vm581, %v1205, 0.0
    %1215 = vadd.xlane.f32.xlu0 %v1214
    %v1216 = vpop.xlane.xlu0 %1215
    %v1217 = vsel %vm581, %v1207, 0.0
    %1218 = vadd.xlane.f32.xlu0 %v1217
    %v1219 = vpop.xlane.xlu0 %1218
    %v1220 = vrcp.pop %v1210
    %v1221 = vrcp.pop %v1213
    %v1222 = vrcp.pop %v1216
    %v1223 = vrcp.pop %v1219
    %v1224 = vmul.f32 %v1201, %v1220
    %v1225 = vmul.f32 %v1203, %v1221
    %v1226 = vmul.f32 %v1205, %v1222
    %v1227 = vmul.f32 %v1207, %v1223
    %1228 = vrot.lane.b32.xlu0 %v465, 64
    %v1229 = vpop.permute.xlu0 %1228
    %v1232 = vsel %vm581, %v1224, 0
    %1234 = vmatpush.msra.mxu0 0.0
    %1235 = vmatpush.msra.mxu0 0.0
    %1236 = vmatpush.msra.mxu0 0.0
    %1237 = vmatpush.msra.mxu0 0.0
    %1238 = vmatpush.msra.mxu0 0.0
    %1239 = vmatpush.msra.mxu0 0.0
    %1240 = vmatpush.msra.mxu0 0.0
    %1241 = vmatpush.msra.mxu0 0.0
    %1242 = vmatpush.msra.mxu0 0.0
    %1243 = vmatpush.msra.mxu0 0.0
    %1244 = vmatpush.msra.mxu0 0.0
    %1245 = vmatpush.msra.mxu0 0.0
    %1246 = vmatpush.msra.mxu0 0.0
    %1247 = vmatpush.msra.mxu0 0.0
    %1248 = vmatpush.msra.mxu0 0.0
    %1249 = vmatpush.msra.mxu0 %v1229
    %1250 = vmatmul.f32.gmra.mxu0 %v1232
    %v1251 = vpop.f32.mrf.mxu0
    %v1252 = vadd.f32 0.0, %v1251
    %1253 = vdwg.mxu0
    %1254 = vrot.lane.b32.xlu0 %v468, 64
    %v1255 = vpop.permute.xlu0 %1254
    %v1258 = vsel %vm581, %v1225, 0
    %1260 = vmatpush.msra.mxu0 0.0
    %1261 = vmatpush.msra.mxu0 0.0
    %1262 = vmatpush.msra.mxu0 0.0
    %1263 = vmatpush.msra.mxu0 0.0
    %1264 = vmatpush.msra.mxu0 0.0
    %1265 = vmatpush.msra.mxu0 0.0
    %1266 = vmatpush.msra.mxu0 0.0
    %1267 = vmatpush.msra.mxu0 0.0
    %1268 = vmatpush.msra.mxu0 0.0
    %1269 = vmatpush.msra.mxu0 0.0
    %1270 = vmatpush.msra.mxu0 0.0
    %1271 = vmatpush.msra.mxu0 0.0
    %1272 = vmatpush.msra.mxu0 0.0
    %1273 = vmatpush.msra.mxu0 0.0
    %1274 = vmatpush.msra.mxu0 0.0
    %1275 = vmatpush.msra.mxu0 %v1255
    %1276 = vmatmul.f32.gmra.mxu0 %v1258
    %v1277 = vpop.f32.mrf.mxu0
    %v1278 = vadd.f32 0.0, %v1277
    %1279 = vdwg.mxu0
    %1280 = vrot.lane.b32.xlu0 %v471, 64
    %v1281 = vpop.permute.xlu0 %1280
    %v1284 = vsel %vm581, %v1226, 0
    %1286 = vmatpush.msra.mxu0 0.0
    %1287 = vmatpush.msra.mxu0 0.0
    %1288 = vmatpush.msra.mxu0 0.0
    %1289 = vmatpush.msra.mxu0 0.0
    %1290 = vmatpush.msra.mxu0 0.0
    %1291 = vmatpush.msra.mxu0 0.0
    %1292 = vmatpush.msra.mxu0 0.0
    %1293 = vmatpush.msra.mxu0 0.0
    %1294 = vmatpush.msra.mxu0 0.0
    %1295 = vmatpush.msra.mxu0 0.0
    %1296 = vmatpush.msra.mxu0 0.0
    %1297 = vmatpush.msra.mxu0 0.0
    %1298 = vmatpush.msra.mxu0 0.0
    %1299 = vmatpush.msra.mxu0 0.0
    %1300 = vmatpush.msra.mxu0 0.0
    %1301 = vmatpush.msra.mxu0 %v1281
    %1302 = vmatmul.f32.gmra.mxu0 %v1284
    %v1303 = vpop.f32.mrf.mxu0
    %v1304 = vadd.f32 0.0, %v1303
    %1305 = vdwg.mxu0
    %1306 = vrot.lane.b32.xlu0 %v474, 64
    %v1307 = vpop.permute.xlu0 %1306
    %v1310 = vsel %vm581, %v1227, 0
    %1312 = vmatpush.msra.mxu0 0.0
    %1313 = vmatpush.msra.mxu0 0.0
    %1314 = vmatpush.msra.mxu0 0.0
    %1315 = vmatpush.msra.mxu0 0.0
    %1316 = vmatpush.msra.mxu0 0.0
    %1317 = vmatpush.msra.mxu0 0.0
    %1318 = vmatpush.msra.mxu0 0.0
    %1319 = vmatpush.msra.mxu0 0.0
    %1320 = vmatpush.msra.mxu0 0.0
    %1321 = vmatpush.msra.mxu0 0.0
    %1322 = vmatpush.msra.mxu0 0.0
    %1323 = vmatpush.msra.mxu0 0.0
    %1324 = vmatpush.msra.mxu0 0.0
    %1325 = vmatpush.msra.mxu0 0.0
    %1326 = vmatpush.msra.mxu0 0.0
    %1327 = vmatpush.msra.mxu0 %v1307
    %1328 = vmatmul.f32.gmra.mxu0 %v1310
    %v1329 = vpop.f32.mrf.mxu0
    %v1330 = vadd.f32 0.0, %v1329
    %1331 = vdwg.mxu0
    %v1332 = vld [vmem:[#allocation2 + $0x40] sm:$0xff]
    %v1333 = vld [vmem:[#allocation2 + $0x48] sm:$0xff]
    %v1334 = vld [vmem:[#allocation2 + $0x50] sm:$0xff]
    %v1335 = vld [vmem:[#allocation2 + $0x58] sm:$0xff]
    %v1337 = vsel %vm476, %v1252, 0
    %v1340 = vsel %vm476, %v1278, 0
    %v1343 = vsel %vm476, %v1304, 0
    %v1346 = vsel %vm476, %v1330, 0
    %1348 = vmatpush.msra.mxu0 0.0
    %1349 = vmatpush.msra.mxu0 0.0
    %1350 = vmatpush.msra.mxu0 0.0
    %1351 = vmatpush.msra.mxu0 0.0
    %1352 = vmatpush.msra.mxu0 0.0
    %1353 = vmatpush.msra.mxu0 0.0
    %1354 = vmatpush.msra.mxu0 0.0
    %1355 = vmatpush.msra.mxu0 0.0
    %1356 = vmatpush.msra.mxu0 0.0
    %1357 = vmatpush.msra.mxu0 0.0
    %1358 = vmatpush.msra.mxu0 0.0
    %1359 = vmatpush.msra.mxu0 0.0
    %1360 = vmatpush.msra.mxu0 %v1335
    %1361 = vmatpush.msra.mxu0 %v1334
    %1362 = vmatpush.msra.mxu0 %v1333
    %1363 = vmatpush.msra.mxu0 %v1332
    %1364 = vmatmul.f32.gmra.mxu0 %v1337
    %v1365 = vpop.f32.mrf.mxu0
    %v1366 = vadd.f32 0.0, %v1365
    %1367 = vmatmul.f32.gmra.mxu0 %v1340
    %v1368 = vpop.f32.mrf.mxu0
    %v1369 = vadd.f32 0.0, %v1368
    %1370 = vmatmul.f32.gmra.mxu0 %v1343
    %v1371 = vpop.f32.mrf.mxu0
    %v1372 = vadd.f32 0.0, %v1371
    %1373 = vmatmul.f32.gmra.mxu0 %v1346
    %v1374 = vpop.f32.mrf.mxu0
    %v1375 = vadd.f32 0.0, %v1374
    %1376 = vdwg.mxu0
    %v1377 = vadd.f32 %v1061, %v1366
    %v1378 = vadd.f32 %v1064, %v1369
    %v1379 = vadd.f32 %v1067, %v1372
    %v1380 = vadd.f32 %v1070, %v1375
    %1381 = vrot.lane.b32.xlu0 %v407, 32
    %v1382 = vpop.permute.xlu0 %1381
    %1383 = vrot.lane.b32.xlu0 %v436, 32
    %v1384 = vpop.permute.xlu0 %1383
    %v1385 = vsel %vm476, %v1382, 0
    %v1387 = vsel %vm476, %v1384, 0
    %1389 = vmatpush.xpose.msra.mxu0 0.0
    %1390 = vmatpush.xpose.msra.mxu0 0.0
    %1391 = vmatpush.xpose.msra.mxu0 0.0
    %1392 = vmatpush.xpose.msra.mxu0 0.0
    %1393 = vmatpush.xpose.msra.mxu0 0.0
    %1394 = vmatpush.xpose.msra.mxu0 0.0
    %1395 = vmatpush.xpose.msra.mxu0 0.0
    %1396 = vmatpush.xpose.msra.mxu0 0.0
    %1397 = vmatpush.xpose.msra.mxu0 0.0
    %1398 = vmatpush.xpose.msra.mxu0 0.0
    %1399 = vmatpush.xpose.msra.mxu0 0.0
    %1400 = vmatpush.xpose.msra.mxu0 0.0
    %1401 = vmatpush.xpose.msra.mxu0 0.0
    %1402 = vmatpush.xpose.msra.mxu0 0.0
    %1403 = vmatpush.xpose.msra.mxu0 0.0
    %1404 = vmatpush.xpose.msra.mxu0 %v1387
    %1405 = vmatmul.f32.gmra.mxu0 %v1385
    %v1406 = vpop.f32.mrf.mxu0
    %v1407 = vadd.f32 %v325, %v1406
    %1408 = vdwg.mxu0
    %1409 = vrot.lane.b32.xlu0 %v410, 32
    %v1410 = vpop.permute.xlu0 %1409
    %1411 = vrot.lane.b32.xlu0 %v439, 32
    %v1412 = vpop.permute.xlu0 %1411
    %v1413 = vsel %vm476, %v1410, 0
    %v1415 = vsel %vm476, %v1412, 0
    %1417 = vmatpush.xpose.msra.mxu0 0.0
    %1418 = vmatpush.xpose.msra.mxu0 0.0
    %1419 = vmatpush.xpose.msra.mxu0 0.0
    %1420 = vmatpush.xpose.msra.mxu0 0.0
    %1421 = vmatpush.xpose.msra.mxu0 0.0
    %1422 = vmatpush.xpose.msra.mxu0 0.0
    %1423 = vmatpush.xpose.msra.mxu0 0.0
    %1424 = vmatpush.xpose.msra.mxu0 0.0
    %1425 = vmatpush.xpose.msra.mxu0 0.0
    %1426 = vmatpush.xpose.msra.mxu0 0.0
    %1427 = vmatpush.xpose.msra.mxu0 0.0
    %1428 = vmatpush.xpose.msra.mxu0 0.0
    %1429 = vmatpush.xpose.msra.mxu0 0.0
    %1430 = vmatpush.xpose.msra.mxu0 0.0
    %1431 = vmatpush.xpose.msra.mxu0 0.0
    %1432 = vmatpush.xpose.msra.mxu0 %v1415
    %1433 = vmatmul.f32.gmra.mxu0 %v1413
    %v1434 = vpop.f32.mrf.mxu0
    %v1435 = vadd.f32 %v326, %v1434
    %1436 = vdwg.mxu0
    %1437 = vrot.lane.b32.xlu0 %v413, 32
    %v1438 = vpop.permute.xlu0 %1437
    %1439 = vrot.lane.b32.xlu0 %v442, 32
    %v1440 = vpop.permute.xlu0 %1439
    %v1441 = vsel %vm476, %v1438, 0
    %v1443 = vsel %vm476, %v1440, 0
    %1445 = vmatpush.xpose.msra.mxu0 0.0
    %1446 = vmatpush.xpose.msra.mxu0 0.0
    %1447 = vmatpush.xpose.msra.mxu0 0.0
    %1448 = vmatpush.xpose.msra.mxu0 0.0
    %1449 = vmatpush.xpose.msra.mxu0 0.0
    %1450 = vmatpush.xpose.msra.mxu0 0.0
    %1451 = vmatpush.xpose.msra.mxu0 0.0
    %1452 = vmatpush.xpose.msra.mxu0 0.0
    %1453 = vmatpush.xpose.msra.mxu0 0.0
    %1454 = vmatpush.xpose.msra.mxu0 0.0
    %1455 = vmatpush.xpose.msra.mxu0 0.0
    %1456 = vmatpush.xpose.msra.mxu0 0.0
    %1457 = vmatpush.xpose.msra.mxu0 0.0
    %1458 = vmatpush.xpose.msra.mxu0 0.0
    %1459 = vmatpush.xpose.msra.mxu0 0.0
    %1460 = vmatpush.xpose.msra.mxu0 %v1443
    %1461 = vmatmul.f32.gmra.mxu0 %v1441
    %v1462 = vpop.f32.mrf.mxu0
    %v1463 = vadd.f32 %v327, %v1462
    %1464 = vdwg.mxu0
    %1465 = vrot.lane.b32.xlu0 %v416, 32
    %v1466 = vpop.permute.xlu0 %1465
    %1467 = vrot.lane.b32.xlu0 %v445, 32
    %v1468 = vpop.permute.xlu0 %1467
    %v1469 = vsel %vm476, %v1466, 0
    %v1471 = vsel %vm476, %v1468, 0
    %1473 = vmatpush.xpose.msra.mxu0 0.0
    %1474 = vmatpush.xpose.msra.mxu0 0.0
    %1475 = vmatpush.xpose.msra.mxu0 0.0
    %1476 = vmatpush.xpose.msra.mxu0 0.0
    %1477 = vmatpush.xpose.msra.mxu0 0.0
    %1478 = vmatpush.xpose.msra.mxu0 0.0
    %1479 = vmatpush.xpose.msra.mxu0 0.0
    %1480 = vmatpush.xpose.msra.mxu0 0.0
    %1481 = vmatpush.xpose.msra.mxu0 0.0
    %1482 = vmatpush.xpose.msra.mxu0 0.0
    %1483 = vmatpush.xpose.msra.mxu0 0.0
    %1484 = vmatpush.xpose.msra.mxu0 0.0
    %1485 = vmatpush.xpose.msra.mxu0 0.0
    %1486 = vmatpush.xpose.msra.mxu0 0.0
    %1487 = vmatpush.xpose.msra.mxu0 0.0
    %1488 = vmatpush.xpose.msra.mxu0 %v1471
    %1489 = vmatmul.f32.gmra.mxu0 %v1469
    %v1490 = vpop.f32.mrf.mxu0
    %v1491 = vadd.f32 %v328, %v1490
    %1492 = vdwg.mxu0
    %v1493 = vsel %vm581, %v1407, -inf
    %1494 = vmax.xlane.f32.xlu0 %v1493
    %v1495 = vpop.xlane.xlu0 %1494
    %v1496 = vsel %vm581, %v1435, -inf
    %1497 = vmax.xlane.f32.xlu0 %v1496
    %v1498 = vpop.xlane.xlu0 %1497
    %v1499 = vsel %vm581, %v1463, -inf
    %1500 = vmax.xlane.f32.xlu0 %v1499
    %v1501 = vpop.xlane.xlu0 %1500
    %v1502 = vsel %vm581, %v1491, -inf
    %1503 = vmax.xlane.f32.xlu0 %v1502
    %v1504 = vpop.xlane.xlu0 %1503
    %v1505 = vsub.f32 %v1407, %v1495
    %v1506 = vsub.f32 %v1435, %v1498
    %v1507 = vsub.f32 %v1463, %v1501
    %v1508 = vsub.f32 %v1491, %v1504
    %v1509 = vmul.f32 %v1505, 1.442695
    %v1510 = vpow.pop %v1509
    %v1511 = vmul.f32 %v1506, 1.442695
    %v1512 = vpow.pop %v1511
    %v1513 = vmul.f32 %v1507, 1.442695
    %v1514 = vpow.pop %v1513
    %v1515 = vmul.f32 %v1508, 1.442695
    %v1516 = vpow.pop %v1515
    %v1517 = vsel %vm581, %v1510, 0.0
    %1518 = vadd.xlane.f32.xlu0 %v1517
    %v1519 = vpop.xlane.xlu0 %1518
    %v1520 = vsel %vm581, %v1512, 0.0
    %1521 = vadd.xlane.f32.xlu0 %v1520
    %v1522 = vpop.xlane.xlu0 %1521
    %v1523 = vsel %vm581, %v1514, 0.0
    %1524 = vadd.xlane.f32.xlu0 %v1523
    %v1525 = vpop.xlane.xlu0 %1524
    %v1526 = vsel %vm581, %v1516, 0.0
    %1527 = vadd.xlane.f32.xlu0 %v1526
    %v1528 = vpop.xlane.xlu0 %1527
    %v1529 = vrcp.pop %v1519
    %v1530 = vrcp.pop %v1522
    %v1531 = vrcp.pop %v1525
    %v1532 = vrcp.pop %v1528
    %v1533 = vmul.f32 %v1510, %v1529
    %v1534 = vmul.f32 %v1512, %v1530
    %v1535 = vmul.f32 %v1514, %v1531
    %v1536 = vmul.f32 %v1516, %v1532
    %1537 = vrot.lane.b32.xlu0 %v465, 32
    %v1538 = vpop.permute.xlu0 %1537
    %v1541 = vsel %vm581, %v1533, 0
    %1543 = vmatpush.msra.mxu0 0.0
    %1544 = vmatpush.msra.mxu0 0.0
    %1545 = vmatpush.msra.mxu0 0.0
    %1546 = vmatpush.msra.mxu0 0.0
    %1547 = vmatpush.msra.mxu0 0.0
    %1548 = vmatpush.msra.mxu0 0.0
    %1549 = vmatpush.msra.mxu0 0.0
    %1550 = vmatpush.msra.mxu0 0.0
    %1551 = vmatpush.msra.mxu0 0.0
    %1552 = vmatpush.msra.mxu0 0.0
    %1553 = vmatpush.msra.mxu0 0.0
    %1554 = vmatpush.msra.mxu0 0.0
    %1555 = vmatpush.msra.mxu0 0.0
    %1556 = vmatpush.msra.mxu0 0.0
    %1557 = vmatpush.msra.mxu0 0.0
    %1558 = vmatpush.msra.mxu0 %v1538
    %1559 = vmatmul.f32.gmra.mxu0 %v1541
    %v1560 = vpop.f32.mrf.mxu0
    %v1561 = vadd.f32 0.0, %v1560
    %1562 = vdwg.mxu0
    %1563 = vrot.lane.b32.xlu0 %v468, 32
    %v1564 = vpop.permute.xlu0 %1563
    %v1567 = vsel %vm581, %v1534, 0
    %1569 = vmatpush.msra.mxu0 0.0
    %1570 = vmatpush.msra.mxu0 0.0
    %1571 = vmatpush.msra.mxu0 0.0
    %1572 = vmatpush.msra.mxu0 0.0
    %1573 = vmatpush.msra.mxu0 0.0
    %1574 = vmatpush.msra.mxu0 0.0
    %1575 = vmatpush.msra.mxu0 0.0
    %1576 = vmatpush.msra.mxu0 0.0
    %1577 = vmatpush.msra.mxu0 0.0
    %1578 = vmatpush.msra.mxu0 0.0
    %1579 = vmatpush.msra.mxu0 0.0
    %1580 = vmatpush.msra.mxu0 0.0
    %1581 = vmatpush.msra.mxu0 0.0
    %1582 = vmatpush.msra.mxu0 0.0
    %1583 = vmatpush.msra.mxu0 0.0
    %1584 = vmatpush.msra.mxu0 %v1564
    %1585 = vmatmul.f32.gmra.mxu0 %v1567
    %v1586 = vpop.f32.mrf.mxu0
    %v1587 = vadd.f32 0.0, %v1586
    %1588 = vdwg.mxu0
    %1589 = vrot.lane.b32.xlu0 %v471, 32
    %v1590 = vpop.permute.xlu0 %1589
    %v1593 = vsel %vm581, %v1535, 0
    %1595 = vmatpush.msra.mxu0 0.0
    %1596 = vmatpush.msra.mxu0 0.0
    %1597 = vmatpush.msra.mxu0 0.0
    %1598 = vmatpush.msra.mxu0 0.0
    %1599 = vmatpush.msra.mxu0 0.0
    %1600 = vmatpush.msra.mxu0 0.0
    %1601 = vmatpush.msra.mxu0 0.0
    %1602 = vmatpush.msra.mxu0 0.0
    %1603 = vmatpush.msra.mxu0 0.0
    %1604 = vmatpush.msra.mxu0 0.0
    %1605 = vmatpush.msra.mxu0 0.0
    %1606 = vmatpush.msra.mxu0 0.0
    %1607 = vmatpush.msra.mxu0 0.0
    %1608 = vmatpush.msra.mxu0 0.0
    %1609 = vmatpush.msra.mxu0 0.0
    %1610 = vmatpush.msra.mxu0 %v1590
    %1611 = vmatmul.f32.gmra.mxu0 %v1593
    %v1612 = vpop.f32.mrf.mxu0
    %v1613 = vadd.f32 0.0, %v1612
    %1614 = vdwg.mxu0
    %1615 = vrot.lane.b32.xlu0 %v474, 32
    %v1616 = vpop.permute.xlu0 %1615
    %v1619 = vsel %vm581, %v1536, 0
    %1621 = vmatpush.msra.mxu0 0.0
    %1622 = vmatpush.msra.mxu0 0.0
    %1623 = vmatpush.msra.mxu0 0.0
    %1624 = vmatpush.msra.mxu0 0.0
    %1625 = vmatpush.msra.mxu0 0.0
    %1626 = vmatpush.msra.mxu0 0.0
    %1627 = vmatpush.msra.mxu0 0.0
    %1628 = vmatpush.msra.mxu0 0.0
    %1629 = vmatpush.msra.mxu0 0.0
    %1630 = vmatpush.msra.mxu0 0.0
    %1631 = vmatpush.msra.mxu0 0.0
    %1632 = vmatpush.msra.mxu0 0.0
    %1633 = vmatpush.msra.mxu0 0.0
    %1634 = vmatpush.msra.mxu0 0.0
    %1635 = vmatpush.msra.mxu0 0.0
    %1636 = vmatpush.msra.mxu0 %v1616
    %1637 = vmatmul.f32.gmra.mxu0 %v1619
    %v1638 = vpop.f32.mrf.mxu0
    %v1639 = vadd.f32 0.0, %v1638
    %1640 = vdwg.mxu0
    %v1641 = vld [vmem:[#allocation2 + $0x60] sm:$0xff]
    %v1642 = vld [vmem:[#allocation2 + $0x68] sm:$0xff]
    %v1643 = vld [vmem:[#allocation2 + $0x70] sm:$0xff]
    %v1644 = vld [vmem:[#allocation2 + $0x78] sm:$0xff]
    %v1646 = vsel %vm476, %v1561, 0
    %v1649 = vsel %vm476, %v1587, 0
    %v1652 = vsel %vm476, %v1613, 0
    %v1655 = vsel %vm476, %v1639, 0
    %1657 = vmatpush.msra.mxu0 0.0
    %1658 = vmatpush.msra.mxu0 0.0
    %1659 = vmatpush.msra.mxu0 0.0
    %1660 = vmatpush.msra.mxu0 0.0
    %1661 = vmatpush.msra.mxu0 0.0
    %1662 = vmatpush.msra.mxu0 0.0
    %1663 = vmatpush.msra.mxu0 0.0
    %1664 = vmatpush.msra.mxu0 0.0
    %1665 = vmatpush.msra.mxu0 0.0
    %1666 = vmatpush.msra.mxu0 0.0
    %1667 = vmatpush.msra.mxu0 0.0
    %1668 = vmatpush.msra.mxu0 0.0
    %1669 = vmatpush.msra.mxu0 %v1644
    %1670 = vmatpush.msra.mxu0 %v1643
    %1671 = vmatpush.msra.mxu0 %v1642
    %1672 = vmatpush.msra.mxu0 %v1641
    %1673 = vmatmul.f32.gmra.mxu0 %v1646
    %v1674 = vpop.f32.mrf.mxu0
    %v1675 = vadd.f32 0.0, %v1674
    %1676 = vmatmul.f32.gmra.mxu0 %v1649
    %v1677 = vpop.f32.mrf.mxu0
    %v1678 = vadd.f32 0.0, %v1677
    %1679 = vmatmul.f32.gmra.mxu0 %v1652
    %v1680 = vpop.f32.mrf.mxu0
    %v1681 = vadd.f32 0.0, %v1680
    %1682 = vmatmul.f32.gmra.mxu0 %v1655
    %v1683 = vpop.f32.mrf.mxu0
    %v1684 = vadd.f32 0.0, %v1683
    %1685 = vdwg.mxu0
    %v1686 = vadd.f32 %v1377, %v1675
    %v1687 = vadd.f32 %v1378, %v1678
    %v1688 = vadd.f32 %v1379, %v1681
    %v1689 = vadd.f32 %v1380, %v1684
    %v1690 = vld [vmem:[%s7] sm:$0x1]
    %v1692 = vperm.slane %v1690, 0
    %v1694 = vadd.f32 %v1686, %v1692
    %v1695 = vadd.f32 %v1687, %v1692
    %v1696 = vadd.f32 %v1688, %v1692
    %v1697 = vadd.f32 %v1689, %v1692
    %v1698 = vadd.f32 %v1694, %v313
    %v1699 = vadd.f32 %v1695, %v314
    %v1700 = vadd.f32 %v1696, %v315
    %v1701 = vadd.f32 %v1697, %v316
    %1702 = vadd.xlane.f32.xlu0 %v1698
    %v1703 = vpop.xlane.xlu0 %1702
    %1704 = vadd.xlane.f32.xlu0 %v1699
    %v1705 = vpop.xlane.xlu0 %1704
    %1706 = vadd.xlane.f32.xlu0 %v1700
    %v1707 = vpop.xlane.xlu0 %1706
    %1708 = vadd.xlane.f32.xlu0 %v1701
    %v1709 = vpop.xlane.xlu0 %1708
    %v1710 = vmul.f32 %v1703, %v216
    %v1711 = vmul.f32 %v1705, %v216
    %v1712 = vmul.f32 %v1707, %v216
    %v1713 = vmul.f32 %v1709, %v216
    %v1714 = vmul.f32 %v1698, %v1698
    %v1715 = vmul.f32 %v1699, %v1699
    %v1716 = vmul.f32 %v1700, %v1700
    %v1717 = vmul.f32 %v1701, %v1701
    %1718 = vadd.xlane.f32.xlu0 %v1714
    %v1719 = vpop.xlane.xlu0 %1718
    %1720 = vadd.xlane.f32.xlu0 %v1715
    %v1721 = vpop.xlane.xlu0 %1720
    %1722 = vadd.xlane.f32.xlu0 %v1716
    %v1723 = vpop.xlane.xlu0 %1722
    %1724 = vadd.xlane.f32.xlu0 %v1717
    %v1725 = vpop.xlane.xlu0 %1724
    %v1726 = vmul.f32 %v1719, %v216
    %v1727 = vmul.f32 %v1721, %v216
    %v1728 = vmul.f32 %v1723, %v216
    %v1729 = vmul.f32 %v1725, %v216
    %v1730 = vmul.f32 %v1710, %v1710
    %v1731 = vmul.f32 %v1711, %v1711
    %v1732 = vmul.f32 %v1712, %v1712
    %v1733 = vmul.f32 %v1713, %v1713
    %v1734 = vsub.f32 %v1726, %v1730
    %v1735 = vsub.f32 %v1727, %v1731
    %v1736 = vsub.f32 %v1728, %v1732
    %v1737 = vsub.f32 %v1729, %v1733
    %v1738 = vmax.f32 %v1734, 0.0
    %v1739 = vmax.f32 %v1735, 0.0
    %v1740 = vmax.f32 %v1736, 0.0
    %v1741 = vmax.f32 %v1737, 0.0
    %v1742 = vsub.f32 %v1698, %v1710
    %v1743 = vsub.f32 %v1699, %v1711
    %v1744 = vsub.f32 %v1700, %v1712
    %v1745 = vsub.f32 %v1701, %v1713
    %v1746 = vadd.f32 %v1738, 1e-12
    %v1747 = vadd.f32 %v1739, 1e-12
    %v1748 = vadd.f32 %v1740, 1e-12
    %v1749 = vadd.f32 %v1741, 1e-12
    %v1750 = vrsqrt.pop %v1746
    %v1751 = vmul.f32 %v1750, %v1746
    %v1752 = vmul.f32 %v1751, %v1750
    %v1753 = vmul.f32 0.5, %v1752
    %v1754 = vsub.f32 1.5, %v1753
    %v1755 = vmul.f32 %v1750, %v1754
    %vm1756 = vweird.f32 %v1746
    %vm1757 = vweird.f32 %v1750
    %vm1758 = vmor %vm1756, %vm1757
    %v1759 = vsel %vm1758, %v1750, %v1755
    %v1760 = vrsqrt.pop %v1747
    %v1761 = vmul.f32 %v1760, %v1747
    %v1762 = vmul.f32 %v1761, %v1760
    %v1763 = vmul.f32 0.5, %v1762
    %v1764 = vsub.f32 1.5, %v1763
    %v1765 = vmul.f32 %v1760, %v1764
    %vm1766 = vweird.f32 %v1747
    %vm1767 = vweird.f32 %v1760
    %vm1768 = vmor %vm1766, %vm1767
    %v1769 = vsel %vm1768, %v1760, %v1765
    %v1770 = vrsqrt.pop %v1748
    %v1771 = vmul.f32 %v1770, %v1748
    %v1772 = vmul.f32 %v1771, %v1770
    %v1773 = vmul.f32 0.5, %v1772
    %v1774 = vsub.f32 1.5, %v1773
    %v1775 = vmul.f32 %v1770, %v1774
    %vm1776 = vweird.f32 %v1748
    %vm1777 = vweird.f32 %v1770
    %vm1778 = vmor %vm1776, %vm1777
    %v1779 = vsel %vm1778, %v1770, %v1775
    %v1780 = vrsqrt.pop %v1749
    %v1781 = vmul.f32 %v1780, %v1749
    %v1782 = vmul.f32 %v1781, %v1780
    %v1783 = vmul.f32 0.5, %v1782
    %v1784 = vsub.f32 1.5, %v1783
    %v1785 = vmul.f32 %v1780, %v1784
    %vm1786 = vweird.f32 %v1749
    %vm1787 = vweird.f32 %v1780
    %vm1788 = vmor %vm1786, %vm1787
    %v1789 = vsel %vm1788, %v1780, %v1785
    %v1790 = vmul.f32 %v1742, %v1759
    %v1791 = vmul.f32 %v1743, %v1769
    %v1792 = vmul.f32 %v1744, %v1779
    %v1793 = vmul.f32 %v1745, %v1789
    %v1794 = vld [vmem:[%s8] sm:$0x1]
    %v1796 = vperm.slane %v1794, 0
    %v1798 = vmul.f32 %v1790, %v1796
    %v1799 = vmul.f32 %v1791, %v1796
    %v1800 = vmul.f32 %v1792, %v1796
    %v1801 = vmul.f32 %v1793, %v1796
    %v1802 = vld [vmem:[%s9] sm:$0x1]
    %v1804 = vperm.slane %v1802, 0
    %v1806 = vadd.f32 %v1798, %v1804
    %v1807 = vadd.f32 %v1799, %v1804
    %v1808 = vadd.f32 %v1800, %v1804
    %v1809 = vadd.f32 %v1801, %v1804
    %v1810 = vld [vmem:[#allocation4] sm:$0xff]
    %v1811 = vld [vmem:[#allocation4 + $0x8] sm:$0xff]
    %v1812 = vld [vmem:[#allocation4 + $0x10] sm:$0xff]
    %v1813 = vld [vmem:[#allocation4 + $0x18] sm:$0xff]
    %v1814 = vld [vmem:[#allocation4 + $0x20] sm:$0xff]
    %v1815 = vld [vmem:[#allocation4 + $0x28] sm:$0xff]
    %v1816 = vld [vmem:[#allocation4 + $0x30] sm:$0xff]
    %v1817 = vld [vmem:[#allocation4 + $0x38] sm:$0xff]
    %v1818 = vld [vmem:[#allocation4 + $0x40] sm:$0xff]
    %v1819 = vld [vmem:[#allocation4 + $0x48] sm:$0xff]
    %v1820 = vld [vmem:[#allocation4 + $0x50] sm:$0xff]
    %v1821 = vld [vmem:[#allocation4 + $0x58] sm:$0xff]
    %v1822 = vld [vmem:[#allocation4 + $0x60] sm:$0xff]
    %v1823 = vld [vmem:[#allocation4 + $0x68] sm:$0xff]
    %v1824 = vld [vmem:[#allocation4 + $0x70] sm:$0xff]
    %v1825 = vld [vmem:[#allocation4 + $0x78] sm:$0xff]
    %v1826 = vld [vmem:[#allocation4 + $0x80] sm:$0xff]
    %v1827 = vld [vmem:[#allocation4 + $0x88] sm:$0xff]
    %v1828 = vld [vmem:[#allocation4 + $0x90] sm:$0xff]
    %v1829 = vld [vmem:[#allocation4 + $0x98] sm:$0xff]
    %v1830 = vld [vmem:[#allocation4 + $0xa0] sm:$0xff]
    %v1831 = vld [vmem:[#allocation4 + $0xa8] sm:$0xff]
    %v1832 = vld [vmem:[#allocation4 + $0xb0] sm:$0xff]
    %v1833 = vld [vmem:[#allocation4 + $0xb8] sm:$0xff]
    %v1834 = vld [vmem:[#allocation4 + $0xc0] sm:$0xff]
    %v1835 = vld [vmem:[#allocation4 + $0xc8] sm:$0xff]
    %v1836 = vld [vmem:[#allocation4 + $0xd0] sm:$0xff]
    %v1837 = vld [vmem:[#allocation4 + $0xd8] sm:$0xff]
    %v1838 = vld [vmem:[#allocation4 + $0xe0] sm:$0xff]
    %v1839 = vld [vmem:[#allocation4 + $0xe8] sm:$0xff]
    %v1840 = vld [vmem:[#allocation4 + $0xf0] sm:$0xff]
    %v1841 = vld [vmem:[#allocation4 + $0xf8] sm:$0xff]
    %v1842 = vld [vmem:[%s11] sm:$0x3]
    %v1844 = vperm.slane %v1842, 0
    %v1845 = vperm.slane %v1842, 1
    %1848 = vmatpush.msra.mxu0 %v1840
    %1849 = vmatpush.msra.mxu0 %v1838
    %1850 = vmatpush.msra.mxu0 %v1836
    %1851 = vmatpush.msra.mxu0 %v1834
    %1852 = vmatpush.msra.mxu0 %v1832
    %1853 = vmatpush.msra.mxu0 %v1830
    %1854 = vmatpush.msra.mxu0 %v1828
    %1855 = vmatpush.msra.mxu0 %v1826
    %1856 = vmatpush.msra.mxu0 %v1824
    %1857 = vmatpush.msra.mxu0 %v1822
    %1858 = vmatpush.msra.mxu0 %v1820
    %1859 = vmatpush.msra.mxu0 %v1818
    %1860 = vmatpush.msra.mxu0 %v1816
    %1861 = vmatpush.msra.mxu0 %v1814
    %1862 = vmatpush.msra.mxu0 %v1812
    %1863 = vmatpush.msra.mxu0 %v1810
    %1864 = vmatmul.f32.gmra.mxu0 %v1806
    %v1865 = vpop.f32.mrf.mxu0
    %v1866 = vadd.f32 %v1844, %v1865
    %1867 = vmatmul.f32.gmra.mxu0 %v1807
    %v1868 = vpop.f32.mrf.mxu0
    %v1869 = vadd.f32 %v1844, %v1868
    %1870 = vmatmul.f32.gmra.mxu0 %v1808
    %v1871 = vpop.f32.mrf.mxu0
    %v1872 = vadd.f32 %v1844, %v1871
    %1873 = vmatmul.f32.gmra.mxu0 %v1809
    %v1874 = vpop.f32.mrf.mxu0
    %v1875 = vadd.f32 %v1844, %v1874
    %1876 = vdwg.mxu0
    %1877 = vmatpush.msra.mxu0 %v1841
    %1878 = vmatpush.msra.mxu0 %v1839
    %1879 = vmatpush.msra.mxu0 %v1837
    %1880 = vmatpush.msra.mxu0 %v1835
    %1881 = vmatpush.msra.mxu0 %v1833
    %1882 = vmatpush.msra.mxu0 %v1831
    %1883 = vmatpush.msra.mxu0 %v1829
    %1884 = vmatpush.msra.mxu0 %v1827
    %1885 = vmatpush.msra.mxu0 %v1825
    %1886 = vmatpush.msra.mxu0 %v1823
    %1887 = vmatpush.msra.mxu0 %v1821
    %1888 = vmatpush.msra.mxu0 %v1819
    %1889 = vmatpush.msra.mxu0 %v1817
    %1890 = vmatpush.msra.mxu0 %v1815
    %1891 = vmatpush.msra.mxu0 %v1813
    %1892 = vmatpush.msra.mxu0 %v1811
    %1893 = vmatmul.f32.gmra.mxu0 %v1806
    %v1894 = vpop.f32.mrf.mxu0
    %v1895 = vadd.f32 %v1845, %v1894
    %1896 = vmatmul.f32.gmra.mxu0 %v1807
    %v1897 = vpop.f32.mrf.mxu0
    %v1898 = vadd.f32 %v1845, %v1897
    %1899 = vmatmul.f32.gmra.mxu0 %v1808
    %v1900 = vpop.f32.mrf.mxu0
    %v1901 = vadd.f32 %v1845, %v1900
    %1902 = vmatmul.f32.gmra.mxu0 %v1809
    %v1903 = vpop.f32.mrf.mxu0
    %v1904 = vadd.f32 %v1845, %v1903
    %1905 = vdwg.mxu0
    %v1906 = vmul.f32 %v1866, 0.5
    %v1907 = vmul.f32 %v1895, 0.5
    %v1908 = vmul.f32 %v1869, 0.5
    %v1909 = vmul.f32 %v1898, 0.5
    %v1910 = vmul.f32 %v1872, 0.5
    %v1911 = vmul.f32 %v1901, 0.5
    %v1912 = vmul.f32 %v1875, 0.5
    %v1913 = vmul.f32 %v1904, 0.5
    %v1914 = vmul.f32 %v1866, 0.044715
    %v1915 = vmul.f32 %v1895, 0.044715
    %v1916 = vmul.f32 %v1869, 0.044715
    %v1917 = vmul.f32 %v1898, 0.044715
    %v1918 = vmul.f32 %v1872, 0.044715
    %v1919 = vmul.f32 %v1901, 0.044715
    %v1920 = vmul.f32 %v1875, 0.044715
    %v1921 = vmul.f32 %v1904, 0.044715
    %v1922 = vmul.f32 %v1914, %v1866
    %v1923 = vmul.f32 %v1915, %v1895
    %v1924 = vmul.f32 %v1916, %v1869
    %v1925 = vmul.f32 %v1917, %v1898
    %v1926 = vmul.f32 %v1918, %v1872
    %v1927 = vmul.f32 %v1919, %v1901
    %v1928 = vmul.f32 %v1920, %v1875
    %v1929 = vmul.f32 %v1921, %v1904
    %v1930 = vmul.f32 %v1922, %v1866
    %v1931 = vmul.f32 %v1923, %v1895
    %v1932 = vmul.f32 %v1924, %v1869
    %v1933 = vmul.f32 %v1925, %v1898
    %v1934 = vmul.f32 %v1926, %v1872
    %v1935 = vmul.f32 %v1927, %v1901
    %v1936 = vmul.f32 %v1928, %v1875
    %v1937 = vmul.f32 %v1929, %v1904
    %v1938 = vadd.f32 %v1866, %v1930
    %v1939 = vadd.f32 %v1895, %v1931
    %v1940 = vadd.f32 %v1869, %v1932
    %v1941 = vadd.f32 %v1898, %v1933
    %v1942 = vadd.f32 %v1872, %v1934
    %v1943 = vadd.f32 %v1901, %v1935
    %v1944 = vadd.f32 %v1875, %v1936
    %v1945 = vadd.f32 %v1904, %v1937
    %v1946 = vmul.f32 %v1938, 0.7978846
    %v1947 = vmul.f32 %v1939, 0.7978846
    %v1948 = vmul.f32 %v1940, 0.7978846
    %v1949 = vmul.f32 %v1941, 0.7978846
    %v1950 = vmul.f32 %v1942, 0.7978846
    %v1951 = vmul.f32 %v1943, 0.7978846
    %v1952 = vmul.f32 %v1944, 0.7978846
    %v1953 = vmul.f32 %v1945, 0.7978846
    %v1954 = vtanh.pop %v1946
    %v1955 = vtanh.pop %v1947
    %v1956 = vtanh.pop %v1948
    %v1957 = vtanh.pop %v1949
    %v1958 = vtanh.pop %v1950
    %v1959 = vtanh.pop %v1951
    %v1960 = vtanh.pop %v1952
    %v1961 = vtanh.pop %v1953
    %v1962 = vadd.f32 %v1954, 1.0
    %v1963 = vadd.f32 %v1955, 1.0
    %v1964 = vadd.f32 %v1956, 1.0
    %v1965 = vadd.f32 %v1957, 1.0
    %v1966 = vadd.f32 %v1958, 1.0
    %v1967 = vadd.f32 %v1959, 1.0
    %v1968 = vadd.f32 %v1960, 1.0
    %v1969 = vadd.f32 %v1961, 1.0
    %v1970 = vmul.f32 %v1906, %v1962
    %v1971 = vmul.f32 %v1907, %v1963
    %v1972 = vmul.f32 %v1908, %v1964
    %v1973 = vmul.f32 %v1909, %v1965
    %v1974 = vmul.f32 %v1910, %v1966
    %v1975 = vmul.f32 %v1911, %v1967
    %v1976 = vmul.f32 %v1912, %v1968
    %v1977 = vmul.f32 %v1913, %v1969
    %v1978 = vld [vmem:[#allocation6] sm:$0xff]
    %v1979 = vld [vmem:[#allocation6 + $0x8] sm:$0xff]
    %v1980 = vld [vmem:[#allocation6 + $0x10] sm:$0xff]
    %v1981 = vld [vmem:[#allocation6 + $0x18] sm:$0xff]
    %v1982 = vld [vmem:[#allocation6 + $0x20] sm:$0xff]
    %v1983 = vld [vmem:[#allocation6 + $0x28] sm:$0xff]
    %v1984 = vld [vmem:[#allocation6 + $0x30] sm:$0xff]
    %v1985 = vld [vmem:[#allocation6 + $0x38] sm:$0xff]
    %v1986 = vld [vmem:[#allocation6 + $0x40] sm:$0xff]
    %v1987 = vld [vmem:[#allocation6 + $0x48] sm:$0xff]
    %v1988 = vld [vmem:[#allocation6 + $0x50] sm:$0xff]
    %v1989 = vld [vmem:[#allocation6 + $0x58] sm:$0xff]
    %v1990 = vld [vmem:[#allocation6 + $0x60] sm:$0xff]
    %v1991 = vld [vmem:[#allocation6 + $0x68] sm:$0xff]
    %v1992 = vld [vmem:[#allocation6 + $0x70] sm:$0xff]
    %v1993 = vld [vmem:[#allocation6 + $0x78] sm:$0xff]
    %v1994 = vld [vmem:[#allocation6 + $0x80] sm:$0xff]
    %v1995 = vld [vmem:[#allocation6 + $0x88] sm:$0xff]
    %v1996 = vld [vmem:[#allocation6 + $0x90] sm:$0xff]
    %v1997 = vld [vmem:[#allocation6 + $0x98] sm:$0xff]
    %v1998 = vld [vmem:[#allocation6 + $0xa0] sm:$0xff]
    %v1999 = vld [vmem:[#allocation6 + $0xa8] sm:$0xff]
    %v2000 = vld [vmem:[#allocation6 + $0xb0] sm:$0xff]
    %v2001 = vld [vmem:[#allocation6 + $0xb8] sm:$0xff]
    %v2002 = vld [vmem:[#allocation6 + $0xc0] sm:$0xff]
    %v2003 = vld [vmem:[#allocation6 + $0xc8] sm:$0xff]
    %v2004 = vld [vmem:[#allocation6 + $0xd0] sm:$0xff]
    %v2005 = vld [vmem:[#allocation6 + $0xd8] sm:$0xff]
    %v2006 = vld [vmem:[#allocation6 + $0xe0] sm:$0xff]
    %v2007 = vld [vmem:[#allocation6 + $0xe8] sm:$0xff]
    %v2008 = vld [vmem:[#allocation6 + $0xf0] sm:$0xff]
    %v2009 = vld [vmem:[#allocation6 + $0xf8] sm:$0xff]
    %v2010 = vld [vmem:[%s13] sm:$0x1]
    %v2012 = vperm.slane %v2010, 0
    %2014 = vmatpush.msra.mxu0 %v1993
    %2015 = vmatpush.msra.mxu0 %v1992
    %2016 = vmatpush.msra.mxu0 %v1991
    %2017 = vmatpush.msra.mxu0 %v1990
    %2018 = vmatpush.msra.mxu0 %v1989
    %2019 = vmatpush.msra.mxu0 %v1988
    %2020 = vmatpush.msra.mxu0 %v1987
    %2021 = vmatpush.msra.mxu0 %v1986
    %2022 = vmatpush.msra.mxu0 %v1985
    %2023 = vmatpush.msra.mxu0 %v1984
    %2024 = vmatpush.msra.mxu0 %v1983
    %2025 = vmatpush.msra.mxu0 %v1982
    %2026 = vmatpush.msra.mxu0 %v1981
    %2027 = vmatpush.msra.mxu0 %v1980
    %2028 = vmatpush.msra.mxu0 %v1979
    %2029 = vmatpush.msra.mxu0 %v1978
    %2030 = vmatmul.f32.gmra.mxu0 %v1970
    %v2031 = vpop.f32.mrf.mxu0
    %v2032 = vadd.f32 %v2012, %v2031
    %2033 = vmatmul.f32.gmra.mxu0 %v1972
    %v2034 = vpop.f32.mrf.mxu0
    %v2035 = vadd.f32 %v2012, %v2034
    %2036 = vmatmul.f32.gmra.mxu0 %v1974
    %v2037 = vpop.f32.mrf.mxu0
    %v2038 = vadd.f32 %v2012, %v2037
    %2039 = vmatmul.f32.gmra.mxu0 %v1976
    %v2040 = vpop.f32.mrf.mxu0
    %v2041 = vadd.f32 %v2012, %v2040
    %2042 = vdwg.mxu0
    %2043 = vmatpush.msra.mxu0 %v2009
    %2044 = vmatpush.msra.mxu0 %v2008
    %2045 = vmatpush.msra.mxu0 %v2007
    %2046 = vmatpush.msra.mxu0 %v2006
    %2047 = vmatpush.msra.mxu0 %v2005
    %2048 = vmatpush.msra.mxu0 %v2004
    %2049 = vmatpush.msra.mxu0 %v2003
    %2050 = vmatpush.msra.mxu0 %v2002
    %2051 = vmatpush.msra.mxu0 %v2001
    %2052 = vmatpush.msra.mxu0 %v2000
    %2053 = vmatpush.msra.mxu0 %v1999
    %2054 = vmatpush.msra.mxu0 %v1998
    %2055 = vmatpush.msra.mxu0 %v1997
    %2056 = vmatpush.msra.mxu0 %v1996
    %2057 = vmatpush.msra.mxu0 %v1995
    %2058 = vmatpush.msra.mxu0 %v1994
    %2059 = vmatmul.f32.gmra.mxu0 %v1971
    %v2060 = vpop.f32.mrf.mxu0
    %v2061 = vadd.f32 %v2032, %v2060
    %2062 = vmatmul.f32.gmra.mxu0 %v1973
    %v2063 = vpop.f32.mrf.mxu0
    %v2064 = vadd.f32 %v2035, %v2063
    %2065 = vmatmul.f32.gmra.mxu0 %v1975
    %v2066 = vpop.f32.mrf.mxu0
    %v2067 = vadd.f32 %v2038, %v2066
    %2068 = vmatmul.f32.gmra.mxu0 %v1977
    %v2069 = vpop.f32.mrf.mxu0
    %v2070 = vadd.f32 %v2041, %v2069
    %2071 = vdwg.mxu0
    %v2072 = vadd.f32 %v2061, %v1806
    %v2073 = vadd.f32 %v2064, %v1807
    %v2074 = vadd.f32 %v2067, %v1808
    %v2075 = vadd.f32 %v2070, %v1809
    %2076 = vadd.xlane.f32.xlu0 %v2072
    %v2077 = vpop.xlane.xlu0 %2076
    %2078 = vadd.xlane.f32.xlu0 %v2073
    %v2079 = vpop.xlane.xlu0 %2078
    %2080 = vadd.xlane.f32.xlu0 %v2074
    %v2081 = vpop.xlane.xlu0 %2080
    %2082 = vadd.xlane.f32.xlu0 %v2075
    %v2083 = vpop.xlane.xlu0 %2082
    %v2084 = vmul.f32 %v2077, %v216
    %v2085 = vmul.f32 %v2079, %v216
    %v2086 = vmul.f32 %v2081, %v216
    %v2087 = vmul.f32 %v2083, %v216
    %v2088 = vmul.f32 %v2072, %v2072
    %v2089 = vmul.f32 %v2073, %v2073
    %v2090 = vmul.f32 %v2074, %v2074
    %v2091 = vmul.f32 %v2075, %v2075
    %2092 = vadd.xlane.f32.xlu0 %v2088
    %v2093 = vpop.xlane.xlu0 %2092
    %2094 = vadd.xlane.f32.xlu0 %v2089
    %v2095 = vpop.xlane.xlu0 %2094
    %2096 = vadd.xlane.f32.xlu0 %v2090
    %v2097 = vpop.xlane.xlu0 %2096
    %2098 = vadd.xlane.f32.xlu0 %v2091
    %v2099 = vpop.xlane.xlu0 %2098
    %v2100 = vmul.f32 %v2093, %v216
    %v2101 = vmul.f32 %v2095, %v216
    %v2102 = vmul.f32 %v2097, %v216
    %v2103 = vmul.f32 %v2099, %v216
    %v2104 = vmul.f32 %v2084, %v2084
    %v2105 = vmul.f32 %v2085, %v2085
    %v2106 = vmul.f32 %v2086, %v2086
    %v2107 = vmul.f32 %v2087, %v2087
    %v2108 = vsub.f32 %v2100, %v2104
    %v2109 = vsub.f32 %v2101, %v2105
    %v2110 = vsub.f32 %v2102, %v2106
    %v2111 = vsub.f32 %v2103, %v2107
    %v2112 = vmax.f32 %v2108, 0.0
    %v2113 = vmax.f32 %v2109, 0.0
    %v2114 = vmax.f32 %v2110, 0.0
    %v2115 = vmax.f32 %v2111, 0.0
    %v2116 = vsub.f32 %v2072, %v2084
    %v2117 = vsub.f32 %v2073, %v2085
    %v2118 = vsub.f32 %v2074, %v2086
    %v2119 = vsub.f32 %v2075, %v2087
    %v2120 = vadd.f32 %v2112, 1e-12
    %v2121 = vadd.f32 %v2113, 1e-12
    %v2122 = vadd.f32 %v2114, 1e-12
    %v2123 = vadd.f32 %v2115, 1e-12
    %v2124 = vrsqrt.pop %v2120
    %v2125 = vmul.f32 %v2124, %v2120
    %v2126 = vmul.f32 %v2125, %v2124
    %v2127 = vmul.f32 0.5, %v2126
    %v2128 = vsub.f32 1.5, %v2127
    %v2129 = vmul.f32 %v2124, %v2128
    %vm2130 = vweird.f32 %v2120
    %vm2131 = vweird.f32 %v2124
    %vm2132 = vmor %vm2130, %vm2131
    %v2133 = vsel %vm2132, %v2124, %v2129
    %v2134 = vrsqrt.pop %v2121
    %v2135 = vmul.f32 %v2134, %v2121
    %v2136 = vmul.f32 %v2135, %v2134
    %v2137 = vmul.f32 0.5, %v2136
    %v2138 = vsub.f32 1.5, %v2137
    %v2139 = vmul.f32 %v2134, %v2138
    %vm2140 = vweird.f32 %v2121
    %vm2141 = vweird.f32 %v2134
    %vm2142 = vmor %vm2140, %vm2141
    %v2143 = vsel %vm2142, %v2134, %v2139
    %v2144 = vrsqrt.pop %v2122
    %v2145 = vmul.f32 %v2144, %v2122
    %v2146 = vmul.f32 %v2145, %v2144
    %v2147 = vmul.f32 0.5, %v2146
    %v2148 = vsub.f32 1.5, %v2147
    %v2149 = vmul.f32 %v2144, %v2148
    %vm2150 = vweird.f32 %v2122
    %vm2151 = vweird.f32 %v2144
    %vm2152 = vmor %vm2150, %vm2151
    %v2153 = vsel %vm2152, %v2144, %v2149
    %v2154 = vrsqrt.pop %v2123
    %v2155 = vmul.f32 %v2154, %v2123
    %v2156 = vmul.f32 %v2155, %v2154
    %v2157 = vmul.f32 0.5, %v2156
    %v2158 = vsub.f32 1.5, %v2157
    %v2159 = vmul.f32 %v2154, %v2158
    %vm2160 = vweird.f32 %v2123
    %vm2161 = vweird.f32 %v2154
    %vm2162 = vmor %vm2160, %vm2161
    %v2163 = vsel %vm2162, %v2154, %v2159
    %v2164 = vmul.f32 %v2116, %v2133
    %v2165 = vmul.f32 %v2117, %v2143
    %v2166 = vmul.f32 %v2118, %v2153
    %v2167 = vmul.f32 %v2119, %v2163
    %v2168 = vld [vmem:[%s14] sm:$0x1]
    %v2170 = vperm.slane %v2168, 0
    %v2172 = vmul.f32 %v2164, %v2170
    %v2173 = vmul.f32 %v2165, %v2170
    %v2174 = vmul.f32 %v2166, %v2170
    %v2175 = vmul.f32 %v2167, %v2170
    %v2176 = vld [vmem:[%s15] sm:$0x1]
    %v2178 = vperm.slane %v2176, 0
    %v2180 = vadd.f32 %v2172, %v2178
    %v2181 = vadd.f32 %v2173, %v2178
    %v2182 = vadd.f32 %v2174, %v2178
    %v2183 = vadd.f32 %v2175, %v2178
    %v2184 = vld [vmem:[#allocation7] sm:$0xff]
    %v2185 = vld [vmem:[#allocation7 + $0x8] sm:$0xff]
    %v2186 = vld [vmem:[#allocation7 + $0x10] sm:$0xff]
    %v2187 = vld [vmem:[#allocation7 + $0x18] sm:$0xff]
    %v2188 = vld [vmem:[#allocation7 + $0x20] sm:$0xff]
    %v2189 = vld [vmem:[#allocation7 + $0x28] sm:$0xff]
    %v2190 = vld [vmem:[#allocation7 + $0x30] sm:$0xff]
    %v2191 = vld [vmem:[#allocation7 + $0x38] sm:$0xff]
    %v2192 = vld [vmem:[#allocation7 + $0x40] sm:$0xff]
    %v2193 = vld [vmem:[#allocation7 + $0x48] sm:$0xff]
    %v2194 = vld [vmem:[#allocation7 + $0x50] sm:$0xff]
    %v2195 = vld [vmem:[#allocation7 + $0x58] sm:$0xff]
    %v2196 = vld [vmem:[#allocation7 + $0x60] sm:$0xff]
    %v2197 = vld [vmem:[#allocation7 + $0x68] sm:$0xff]
    %v2198 = vld [vmem:[#allocation7 + $0x70] sm:$0xff]
    %v2199 = vld [vmem:[#allocation7 + $0x78] sm:$0xff]
    %v2200 = vld [vmem:[#allocation7 + $0x80] sm:$0xff]
    %v2201 = vld [vmem:[#allocation7 + $0x88] sm:$0xff]
    %v2202 = vld [vmem:[#allocation7 + $0x90] sm:$0xff]
    %v2203 = vld [vmem:[#allocation7 + $0x98] sm:$0xff]
    %v2204 = vld [vmem:[#allocation7 + $0xa0] sm:$0xff]
    %v2205 = vld [vmem:[#allocation7 + $0xa8] sm:$0xff]
    %v2206 = vld [vmem:[#allocation7 + $0xb0] sm:$0xff]
    %v2207 = vld [vmem:[#allocation7 + $0xb8] sm:$0xff]
    %v2208 = vld [vmem:[#allocation7 + $0xc0] sm:$0xff]
    %v2209 = vld [vmem:[#allocation7 + $0xc8] sm:$0xff]
    %v2210 = vld [vmem:[#allocation7 + $0xd0] sm:$0xff]
    %v2211 = vld [vmem:[#allocation7 + $0xd8] sm:$0xff]
    %v2212 = vld [vmem:[#allocation7 + $0xe0] sm:$0xff]
    %v2213 = vld [vmem:[#allocation7 + $0xe8] sm:$0xff]
    %v2214 = vld [vmem:[#allocation7 + $0xf0] sm:$0xff]
    %v2215 = vld [vmem:[#allocation7 + $0xf8] sm:$0xff]
    %v2216 = vld [vmem:[#allocation7 + $0x100] sm:$0xff]
    %v2217 = vld [vmem:[#allocation7 + $0x108] sm:$0xff]
    %v2218 = vld [vmem:[#allocation7 + $0x110] sm:$0xff]
    %v2219 = vld [vmem:[#allocation7 + $0x118] sm:$0xff]
    %v2220 = vld [vmem:[#allocation7 + $0x120] sm:$0xff]
    %v2221 = vld [vmem:[#allocation7 + $0x128] sm:$0xff]
    %v2222 = vld [vmem:[#allocation7 + $0x130] sm:$0xff]
    %v2223 = vld [vmem:[#allocation7 + $0x138] sm:$0xff]
    %v2224 = vld [vmem:[#allocation7 + $0x140] sm:$0xff]
    %v2225 = vld [vmem:[#allocation7 + $0x148] sm:$0xff]
    %v2226 = vld [vmem:[#allocation7 + $0x150] sm:$0xff]
    %v2227 = vld [vmem:[#allocation7 + $0x158] sm:$0xff]
    %v2228 = vld [vmem:[#allocation7 + $0x160] sm:$0xff]
    %v2229 = vld [vmem:[#allocation7 + $0x168] sm:$0xff]
    %v2230 = vld [vmem:[#allocation7 + $0x170] sm:$0xff]
    %v2231 = vld [vmem:[#allocation7 + $0x178] sm:$0xff]
    %v2232 = vld [vmem:[%s17] sm:$0x7]
    %v2234 = vperm.slane %v2232, 0
    %v2235 = vperm.slane %v2232, 1
    %v2236 = vperm.slane %v2232, 2
    %2240 = vmatpush.msra.mxu0 %v2229
    %2241 = vmatpush.msra.mxu0 %v2226
    %2242 = vmatpush.msra.mxu0 %v2223
    %2243 = vmatpush.msra.mxu0 %v2220
    %2244 = vmatpush.msra.mxu0 %v2217
    %2245 = vmatpush.msra.mxu0 %v2214
    %2246 = vmatpush.msra.mxu0 %v2211
    %2247 = vmatpush.msra.mxu0 %v2208
    %2248 = vmatpush.msra.mxu0 %v2205
    %2249 = vmatpush.msra.mxu0 %v2202
    %2250 = vmatpush.msra.mxu0 %v2199
    %2251 = vmatpush.msra.mxu0 %v2196
    %2252 = vmatpush.msra.mxu0 %v2193
    %2253 = vmatpush.msra.mxu0 %v2190
    %2254 = vmatpush.msra.mxu0 %v2187
    %2255 = vmatpush.msra.mxu0 %v2184
    %2256 = vmatmul.f32.gmra.mxu0 %v2180
    %v2257 = vpop.f32.mrf.mxu0
    %v2258 = vadd.f32 %v2234, %v2257
    %2259 = vmatmul.f32.gmra.mxu0 %v2181
    %v2260 = vpop.f32.mrf.mxu0
    %v2261 = vadd.f32 %v2234, %v2260
    %2262 = vmatmul.f32.gmra.mxu0 %v2182
    %v2263 = vpop.f32.mrf.mxu0
    %v2264 = vadd.f32 %v2234, %v2263
    %2265 = vmatmul.f32.gmra.mxu0 %v2183
    %v2266 = vpop.f32.mrf.mxu0
    %v2267 = vadd.f32 %v2234, %v2266
    %2268 = vdwg.mxu0
    %2269 = vmatpush.msra.mxu0 %v2230
    %2270 = vmatpush.msra.mxu0 %v2227
    %2271 = vmatpush.msra.mxu0 %v2224
    %2272 = vmatpush.msra.mxu0 %v2221
    %2273 = vmatpush.msra.mxu0 %v2218
    %2274 = vmatpush.msra.mxu0 %v2215
    %2275 = vmatpush.msra.mxu0 %v2212
    %2276 = vmatpush.msra.mxu0 %v2209
    %2277 = vmatpush.msra.mxu0 %v2206
    %2278 = vmatpush.msra.mxu0 %v2203
    %2279 = vmatpush.msra.mxu0 %v2200
    %2280 = vmatpush.msra.mxu0 %v2197
    %2281 = vmatpush.msra.mxu0 %v2194
    %2282 = vmatpush.msra.mxu0 %v2191
    %2283 = vmatpush.msra.mxu0 %v2188
    %2284 = vmatpush.msra.mxu0 %v2185
    %2285 = vmatmul.f32.gmra.mxu0 %v2180
    %v2286 = vpop.f32.mrf.mxu0
    %v2287 = vadd.f32 %v2235, %v2286
    %2288 = vmatmul.f32.gmra.mxu0 %v2181
    %v2289 = vpop.f32.mrf.mxu0
    %v2290 = vadd.f32 %v2235, %v2289
    %2291 = vmatmul.f32.gmra.mxu0 %v2182
    %v2292 = vpop.f32.mrf.mxu0
    %v2293 = vadd.f32 %v2235, %v2292
    %2294 = vmatmul.f32.gmra.mxu0 %v2183
    %v2295 = vpop.f32.mrf.mxu0
    %v2296 = vadd.f32 %v2235, %v2295
    %2297 = vdwg.mxu0
    %2298 = vmatpush.msra.mxu0 %v2231
    %2299 = vmatpush.msra.mxu0 %v2228
    %2300 = vmatpush.msra.mxu0 %v2225
    %2301 = vmatpush.msra.mxu0 %v2222
    %2302 = vmatpush.msra.mxu0 %v2219
    %2303 = vmatpush.msra.mxu0 %v2216
    %2304 = vmatpush.msra.mxu0 %v2213
    %2305 = vmatpush.msra.mxu0 %v2210
    %2306 = vmatpush.msra.mxu0 %v2207
    %2307 = vmatpush.msra.mxu0 %v2204
    %2308 = vmatpush.msra.mxu0 %v2201
    %2309 = vmatpush.msra.mxu0 %v2198
    %2310 = vmatpush.msra.mxu0 %v2195
    %2311 = vmatpush.msra.mxu0 %v2192
    %2312 = vmatpush.msra.mxu0 %v2189
    %2313 = vmatpush.msra.mxu0 %v2186
    %2314 = vmatmul.f32.gmra.mxu0 %v2180
    %v2315 = vpop.f32.mrf.mxu0
    %v2316 = vadd.f32 %v2236, %v2315
    %2317 = vmatmul.f32.gmra.mxu0 %v2181
    %v2318 = vpop.f32.mrf.mxu0
    %v2319 = vadd.f32 %v2236, %v2318
    %2320 = vmatmul.f32.gmra.mxu0 %v2182
    %v2321 = vpop.f32.mrf.mxu0
    %v2322 = vadd.f32 %v2236, %v2321
    %2323 = vmatmul.f32.gmra.mxu0 %v2183
    %v2324 = vpop.f32.mrf.mxu0
    %v2325 = vadd.f32 %v2236, %v2324
    %2326 = vdwg.mxu0
    %v2328 = vsel %vm476, %v2258, 0
    %v2331 = vsel %vm476, %v2287, 0
    %2333 = vmatpush.xpose.msra.mxu0 0.0
    %2334 = vmatpush.xpose.msra.mxu0 0.0
    %2335 = vmatpush.xpose.msra.mxu0 0.0
    %2336 = vmatpush.xpose.msra.mxu0 0.0
    %2337 = vmatpush.xpose.msra.mxu0 0.0
    %2338 = vmatpush.xpose.msra.mxu0 0.0
    %2339 = vmatpush.xpose.msra.mxu0 0.0
    %2340 = vmatpush.xpose.msra.mxu0 0.0
    %2341 = vmatpush.xpose.msra.mxu0 0.0
    %2342 = vmatpush.xpose.msra.mxu0 0.0
    %2343 = vmatpush.xpose.msra.mxu0 0.0
    %2344 = vmatpush.xpose.msra.mxu0 0.0
    %2345 = vmatpush.xpose.msra.mxu0 0.0
    %2346 = vmatpush.xpose.msra.mxu0 0.0
    %2347 = vmatpush.xpose.msra.mxu0 0.0
    %2348 = vmatpush.xpose.msra.mxu0 %v2331
    %2349 = vmatmul.f32.gmra.mxu0 %v2328
    %v2350 = vpop.f32.mrf.mxu0
    %v2351 = vadd.f32 %v325, %v2350
    %2352 = vdwg.mxu0
    %v2354 = vsel %vm476, %v2261, 0
    %v2357 = vsel %vm476, %v2290, 0
    %2359 = vmatpush.xpose.msra.mxu0 0.0
    %2360 = vmatpush.xpose.msra.mxu0 0.0
    %2361 = vmatpush.xpose.msra.mxu0 0.0
    %2362 = vmatpush.xpose.msra.mxu0 0.0
    %2363 = vmatpush.xpose.msra.mxu0 0.0
    %2364 = vmatpush.xpose.msra.mxu0 0.0
    %2365 = vmatpush.xpose.msra.mxu0 0.0
    %2366 = vmatpush.xpose.msra.mxu0 0.0
    %2367 = vmatpush.xpose.msra.mxu0 0.0
    %2368 = vmatpush.xpose.msra.mxu0 0.0
    %2369 = vmatpush.xpose.msra.mxu0 0.0
    %2370 = vmatpush.xpose.msra.mxu0 0.0
    %2371 = vmatpush.xpose.msra.mxu0 0.0
    %2372 = vmatpush.xpose.msra.mxu0 0.0
    %2373 = vmatpush.xpose.msra.mxu0 0.0
    %2374 = vmatpush.xpose.msra.mxu0 %v2357
    %2375 = vmatmul.f32.gmra.mxu0 %v2354
    %v2376 = vpop.f32.mrf.mxu0
    %v2377 = vadd.f32 %v326, %v2376
    %2378 = vdwg.mxu0
    %v2380 = vsel %vm476, %v2264, 0
    %v2383 = vsel %vm476, %v2293, 0
    %2385 = vmatpush.xpose.msra.mxu0 0.0
    %2386 = vmatpush.xpose.msra.mxu0 0.0
    %2387 = vmatpush.xpose.msra.mxu0 0.0
    %2388 = vmatpush.xpose.msra.mxu0 0.0
    %2389 = vmatpush.xpose.msra.mxu0 0.0
    %2390 = vmatpush.xpose.msra.mxu0 0.0
    %2391 = vmatpush.xpose.msra.mxu0 0.0
    %2392 = vmatpush.xpose.msra.mxu0 0.0
    %2393 = vmatpush.xpose.msra.mxu0 0.0
    %2394 = vmatpush.xpose.msra.mxu0 0.0
    %2395 = vmatpush.xpose.msra.mxu0 0.0
    %2396 = vmatpush.xpose.msra.mxu0 0.0
    %2397 = vmatpush.xpose.msra.mxu0 0.0
    %2398 = vmatpush.xpose.msra.mxu0 0.0
    %2399 = vmatpush.xpose.msra.mxu0 0.0
    %2400 = vmatpush.xpose.msra.mxu0 %v2383
    %2401 = vmatmul.f32.gmra.mxu0 %v2380
    %v2402 = vpop.f32.mrf.mxu0
    %v2403 = vadd.f32 %v327, %v2402
    %2404 = vdwg.mxu0
    %v2406 = vsel %vm476, %v2267, 0
    %v2409 = vsel %vm476, %v2296, 0
    %2411 = vmatpush.xpose.msra.mxu0 0.0
    %2412 = vmatpush.xpose.msra.mxu0 0.0
    %2413 = vmatpush.xpose.msra.mxu0 0.0
    %2414 = vmatpush.xpose.msra.mxu0 0.0
    %2415 = vmatpush.xpose.msra.mxu0 0.0
    %2416 = vmatpush.xpose.msra.mxu0 0.0
    %2417 = vmatpush.xpose.msra.mxu0 0.0
    %2418 = vmatpush.xpose.msra.mxu0 0.0
    %2419 = vmatpush.xpose.msra.mxu0 0.0
    %2420 = vmatpush.xpose.msra.mxu0 0.0
    %2421 = vmatpush.xpose.msra.mxu0 0.0
    %2422 = vmatpush.xpose.msra.mxu0 0.0
    %2423 = vmatpush.xpose.msra.mxu0 0.0
    %2424 = vmatpush.xpose.msra.mxu0 0.0
    %2425 = vmatpush.xpose.msra.mxu0 0.0
    %2426 = vmatpush.xpose.msra.mxu0 %v2409
    %2427 = vmatmul.f32.gmra.mxu0 %v2406
    %v2428 = vpop.f32.mrf.mxu0
    %v2429 = vadd.f32 %v328, %v2428
    %2430 = vdwg.mxu0
    %v2431 = vsel %vm581, %v2351, -inf
    %2432 = vmax.xlane.f32.xlu0 %v2431
    %v2433 = vpop.xlane.xlu0 %2432
    %v2434 = vsel %vm581, %v2377, -inf
    %2435 = vmax.xlane.f32.xlu0 %v2434
    %v2436 = vpop.xlane.xlu0 %2435
    %v2437 = vsel %vm581, %v2403, -inf
    %2438 = vmax.xlane.f32.xlu0 %v2437
    %v2439 = vpop.xlane.xlu0 %2438
    %v2440 = vsel %vm581, %v2429, -inf
    %2441 = vmax.xlane.f32.xlu0 %v2440
    %v2442 = vpop.xlane.xlu0 %2441
    %v2443 = vsub.f32 %v2351, %v2433
    %v2444 = vsub.f32 %v2377, %v2436
    %v2445 = vsub.f32 %v2403, %v2439
    %v2446 = vsub.f32 %v2429, %v2442
    %v2447 = vmul.f32 %v2443, 1.442695
    %v2448 = vpow.pop %v2447
    %v2449 = vmul.f32 %v2444, 1.442695
    %v2450 = vpow.pop %v2449
    %v2451 = vmul.f32 %v2445, 1.442695
    %v2452 = vpow.pop %v2451
    %v2453 = vmul.f32 %v2446, 1.442695
    %v2454 = vpow.pop %v2453
    %v2455 = vsel %vm581, %v2448, 0.0
    %2456 = vadd.xlane.f32.xlu0 %v2455
    %v2457 = vpop.xlane.xlu0 %2456
    %v2458 = vsel %vm581, %v2450, 0.0
    %2459 = vadd.xlane.f32.xlu0 %v2458
    %v2460 = vpop.xlane.xlu0 %2459
    %v2461 = vsel %vm581, %v2452, 0.0
    %2462 = vadd.xlane.f32.xlu0 %v2461
    %v2463 = vpop.xlane.xlu0 %2462
    %v2464 = vsel %vm581, %v2454, 0.0
    %2465 = vadd.xlane.f32.xlu0 %v2464
    %v2466 = vpop.xlane.xlu0 %2465
    %v2467 = vrcp.pop %v2457
    %v2468 = vrcp.pop %v2460
    %v2469 = vrcp.pop %v2463
    %v2470 = vrcp.pop %v2466
    %v2471 = vmul.f32 %v2448, %v2467
    %v2472 = vmul.f32 %v2450, %v2468
    %v2473 = vmul.f32 %v2452, %v2469
    %v2474 = vmul.f32 %v2454, %v2470
    %v2476 = vsel %vm581, %v2471, 0
    %2478 = vmatpush.msra.mxu0 0.0
    %2479 = vmatpush.msra.mxu0 0.0
    %2480 = vmatpush.msra.mxu0 0.0
    %2481 = vmatpush.msra.mxu0 0.0
    %2482 = vmatpush.msra.mxu0 0.0
    %2483 = vmatpush.msra.mxu0 0.0
    %2484 = vmatpush.msra.mxu0 0.0
    %2485 = vmatpush.msra.mxu0 0.0
    %2486 = vmatpush.msra.mxu0 0.0
    %2487 = vmatpush.msra.mxu0 0.0
    %2488 = vmatpush.msra.mxu0 0.0
    %2489 = vmatpush.msra.mxu0 0.0
    %2490 = vmatpush.msra.mxu0 0.0
    %2491 = vmatpush.msra.mxu0 0.0
    %2492 = vmatpush.msra.mxu0 0.0
    %2493 = vmatpush.msra.mxu0 %v2316
    %2494 = vmatmul.f32.gmra.mxu0 %v2476
    %v2495 = vpop.f32.mrf.mxu0
    %v2496 = vadd.f32 0.0, %v2495
    %2497 = vdwg.mxu0
    %v2499 = vsel %vm581, %v2472, 0
    %2501 = vmatpush.msra.mxu0 0.0
    %2502 = vmatpush.msra.mxu0 0.0
    %2503 = vmatpush.msra.mxu0 0.0
    %2504 = vmatpush.msra.mxu0 0.0
    %2505 = vmatpush.msra.mxu0 0.0
    %2506 = vmatpush.msra.mxu0 0.0
    %2507 = vmatpush.msra.mxu0 0.0
    %2508 = vmatpush.msra.mxu0 0.0
    %2509 = vmatpush.msra.mxu0 0.0
    %2510 = vmatpush.msra.mxu0 0.0
    %2511 = vmatpush.msra.mxu0 0.0
    %2512 = vmatpush.msra.mxu0 0.0
    %2513 = vmatpush.msra.mxu0 0.0
    %2514 = vmatpush.msra.mxu0 0.0
    %2515 = vmatpush.msra.mxu0 0.0
    %2516 = vmatpush.msra.mxu0 %v2319
    %2517 = vmatmul.f32.gmra.mxu0 %v2499
    %v2518 = vpop.f32.mrf.mxu0
    %v2519 = vadd.f32 0.0, %v2518
    %2520 = vdwg.mxu0
    %v2522 = vsel %vm581, %v2473, 0
    %2524 = vmatpush.msra.mxu0 0.0
    %2525 = vmatpush.msra.mxu0 0.0
    %2526 = vmatpush.msra.mxu0 0.0
    %2527 = vmatpush.msra.mxu0 0.0
    %2528 = vmatpush.msra.mxu0 0.0
    %2529 = vmatpush.msra.mxu0 0.0
    %2530 = vmatpush.msra.mxu0 0.0
    %2531 = vmatpush.msra.mxu0 0.0
    %2532 = vmatpush.msra.mxu0 0.0
    %2533 = vmatpush.msra.mxu0 0.0
    %2534 = vmatpush.msra.mxu0 0.0
    %2535 = vmatpush.msra.mxu0 0.0
    %2536 = vmatpush.msra.mxu0 0.0
    %2537 = vmatpush.msra.mxu0 0.0
    %2538 = vmatpush.msra.mxu0 0.0
    %2539 = vmatpush.msra.mxu0 %v2322
    %2540 = vmatmul.f32.gmra.mxu0 %v2522
    %v2541 = vpop.f32.mrf.mxu0
    %v2542 = vadd.f32 0.0, %v2541
    %2543 = vdwg.mxu0
    %v2545 = vsel %vm581, %v2474, 0
    %2547 = vmatpush.msra.mxu0 0.0
    %2548 = vmatpush.msra.mxu0 0.0
    %2549 = vmatpush.msra.mxu0 0.0
    %2550 = vmatpush.msra.mxu0 0.0
    %2551 = vmatpush.msra.mxu0 0.0
    %2552 = vmatpush.msra.mxu0 0.0
    %2553 = vmatpush.msra.mxu0 0.0
    %2554 = vmatpush.msra.mxu0 0.0
    %2555 = vmatpush.msra.mxu0 0.0
    %2556 = vmatpush.msra.mxu0 0.0
    %2557 = vmatpush.msra.mxu0 0.0
    %2558 = vmatpush.msra.mxu0 0.0
    %2559 = vmatpush.msra.mxu0 0.0
    %2560 = vmatpush.msra.mxu0 0.0
    %2561 = vmatpush.msra.mxu0 0.0
    %2562 = vmatpush.msra.mxu0 %v2325
    %2563 = vmatmul.f32.gmra.mxu0 %v2545
    %v2564 = vpop.f32.mrf.mxu0
    %v2565 = vadd.f32 0.0, %v2564
    %2566 = vdwg.mxu0
    %v2567 = vld [vmem:[#allocation9] sm:$0xff]
    %v2568 = vld [vmem:[#allocation9 + $0x8] sm:$0xff]
    %v2569 = vld [vmem:[#allocation9 + $0x10] sm:$0xff]
    %v2570 = vld [vmem:[#allocation9 + $0x18] sm:$0xff]
    %2571 = vrot.lane.b32.xlu0 %v2258, 96
    %v2572 = vpop.permute.xlu0 %2571
    %2573 = vrot.lane.b32.xlu0 %v2287, 96
    %v2574 = vpop.permute.xlu0 %2573
    %v2575 = vsel %vm476, %v2572, 0
    %v2577 = vsel %vm476, %v2574, 0
    %2579 = vmatpush.xpose.msra.mxu0 0.0
    %2580 = vmatpush.xpose.msra.mxu0 0.0
    %2581 = vmatpush.xpose.msra.mxu0 0.0
    %2582 = vmatpush.xpose.msra.mxu0 0.0
    %2583 = vmatpush.xpose.msra.mxu0 0.0
    %2584 = vmatpush.xpose.msra.mxu0 0.0
    %2585 = vmatpush.xpose.msra.mxu0 0.0
    %2586 = vmatpush.xpose.msra.mxu0 0.0
    %2587 = vmatpush.xpose.msra.mxu0 0.0
    %2588 = vmatpush.xpose.msra.mxu0 0.0
    %2589 = vmatpush.xpose.msra.mxu0 0.0
    %2590 = vmatpush.xpose.msra.mxu0 0.0
    %2591 = vmatpush.xpose.msra.mxu0 0.0
    %2592 = vmatpush.xpose.msra.mxu0 0.0
    %2593 = vmatpush.xpose.msra.mxu0 0.0
    %2594 = vmatpush.xpose.msra.mxu0 %v2577
    %2595 = vmatmul.f32.gmra.mxu0 %v2575
    %v2596 = vpop.f32.mrf.mxu0
    %v2597 = vadd.f32 %v325, %v2596
    %2598 = vdwg.mxu0
    %2599 = vrot.lane.b32.xlu0 %v2261, 96
    %v2600 = vpop.permute.xlu0 %2599
    %2601 = vrot.lane.b32.xlu0 %v2290, 96
    %v2602 = vpop.permute.xlu0 %2601
    %v2603 = vsel %vm476, %v2600, 0
    %v2605 = vsel %vm476, %v2602, 0
    %2607 = vmatpush.xpose.msra.mxu0 0.0
    %2608 = vmatpush.xpose.msra.mxu0 0.0
    %2609 = vmatpush.xpose.msra.mxu0 0.0
    %2610 = vmatpush.xpose.msra.mxu0 0.0
    %2611 = vmatpush.xpose.msra.mxu0 0.0
    %2612 = vmatpush.xpose.msra.mxu0 0.0
    %2613 = vmatpush.xpose.msra.mxu0 0.0
    %2614 = vmatpush.xpose.msra.mxu0 0.0
    %2615 = vmatpush.xpose.msra.mxu0 0.0
    %2616 = vmatpush.xpose.msra.mxu0 0.0
    %2617 = vmatpush.xpose.msra.mxu0 0.0
    %2618 = vmatpush.xpose.msra.mxu0 0.0
    %2619 = vmatpush.xpose.msra.mxu0 0.0
    %2620 = vmatpush.xpose.msra.mxu0 0.0
    %2621 = vmatpush.xpose.msra.mxu0 0.0
    %2622 = vmatpush.xpose.msra.mxu0 %v2605
    %2623 = vmatmul.f32.gmra.mxu0 %v2603
    %v2624 = vpop.f32.mrf.mxu0
    %v2625 = vadd.f32 %v326, %v2624
    %2626 = vdwg.mxu0
    %2627 = vrot.lane.b32.xlu0 %v2264, 96
    %v2628 = vpop.permute.xlu0 %2627
    %2629 = vrot.lane.b32.xlu0 %v2293, 96
    %v2630 = vpop.permute.xlu0 %2629
    %v2631 = vsel %vm476, %v2628, 0
    %v2633 = vsel %vm476, %v2630, 0
    %2635 = vmatpush.xpose.msra.mxu0 0.0
    %2636 = vmatpush.xpose.msra.mxu0 0.0
    %2637 = vmatpush.xpose.msra.mxu0 0.0
    %2638 = vmatpush.xpose.msra.mxu0 0.0
    %2639 = vmatpush.xpose.msra.mxu0 0.0
    %2640 = vmatpush.xpose.msra.mxu0 0.0
    %2641 = vmatpush.xpose.msra.mxu0 0.0
    %2642 = vmatpush.xpose.msra.mxu0 0.0
    %2643 = vmatpush.xpose.msra.mxu0 0.0
    %2644 = vmatpush.xpose.msra.mxu0 0.0
    %2645 = vmatpush.xpose.msra.mxu0 0.0
    %2646 = vmatpush.xpose.msra.mxu0 0.0
    %2647 = vmatpush.xpose.msra.mxu0 0.0
    %2648 = vmatpush.xpose.msra.mxu0 0.0
    %2649 = vmatpush.xpose.msra.mxu0 0.0
    %2650 = vmatpush.xpose.msra.mxu0 %v2633
    %2651 = vmatmul.f32.gmra.mxu0 %v2631
    %v2652 = vpop.f32.mrf.mxu0
    %v2653 = vadd.f32 %v327, %v2652
    %2654 = vdwg.mxu0
    %2655 = vrot.lane.b32.xlu0 %v2267, 96
    %v2656 = vpop.permute.xlu0 %2655
    %2657 = vrot.lane.b32.xlu0 %v2296, 96
    %v2658 = vpop.permute.xlu0 %2657
    %v2659 = vsel %vm476, %v2656, 0
    %v2661 = vsel %vm476, %v2658, 0
    %2663 = vmatpush.xpose.msra.mxu0 0.0
    %2664 = vmatpush.xpose.msra.mxu0 0.0
    %2665 = vmatpush.xpose.msra.mxu0 0.0
    %2666 = vmatpush.xpose.msra.mxu0 0.0
    %2667 = vmatpush.xpose.msra.mxu0 0.0
    %2668 = vmatpush.xpose.msra.mxu0 0.0
    %2669 = vmatpush.xpose.msra.mxu0 0.0
    %2670 = vmatpush.xpose.msra.mxu0 0.0
    %2671 = vmatpush.xpose.msra.mxu0 0.0
    %2672 = vmatpush.xpose.msra.mxu0 0.0
    %2673 = vmatpush.xpose.msra.mxu0 0.0
    %2674 = vmatpush.xpose.msra.mxu0 0.0
    %2675 = vmatpush.xpose.msra.mxu0 0.0
    %2676 = vmatpush.xpose.msra.mxu0 0.0
    %2677 = vmatpush.xpose.msra.mxu0 0.0
    %2678 = vmatpush.xpose.msra.mxu0 %v2661
    %2679 = vmatmul.f32.gmra.mxu0 %v2659
    %v2680 = vpop.f32.mrf.mxu0
    %v2681 = vadd.f32 %v328, %v2680
    %2682 = vdwg.mxu0
    %v2683 = vsel %vm581, %v2597, -inf
    %2684 = vmax.xlane.f32.xlu0 %v2683
    %v2685 = vpop.xlane.xlu0 %2684
    %v2686 = vsel %vm581, %v2625, -inf
    %2687 = vmax.xlane.f32.xlu0 %v2686
    %v2688 = vpop.xlane.xlu0 %2687
    %v2689 = vsel %vm581, %v2653, -inf
    %2690 = vmax.xlane.f32.xlu0 %v2689
    %v2691 = vpop.xlane.xlu0 %2690
    %v2692 = vsel %vm581, %v2681, -inf
    %2693 = vmax.xlane.f32.xlu0 %v2692
    %v2694 = vpop.xlane.xlu0 %2693
    %v2695 = vsub.f32 %v2597, %v2685
    %v2696 = vsub.f32 %v2625, %v2688
    %v2697 = vsub.f32 %v2653, %v2691
    %v2698 = vsub.f32 %v2681, %v2694
    %v2699 = vmul.f32 %v2695, 1.442695
    %v2700 = vpow.pop %v2699
    %v2701 = vmul.f32 %v2696, 1.442695
    %v2702 = vpow.pop %v2701
    %v2703 = vmul.f32 %v2697, 1.442695
    %v2704 = vpow.pop %v2703
    %v2705 = vmul.f32 %v2698, 1.442695
    %v2706 = vpow.pop %v2705
    %v2707 = vsel %vm581, %v2700, 0.0
    %2708 = vadd.xlane.f32.xlu0 %v2707
    %v2709 = vpop.xlane.xlu0 %2708
    %v2710 = vsel %vm581, %v2702, 0.0
    %2711 = vadd.xlane.f32.xlu0 %v2710
    %v2712 = vpop.xlane.xlu0 %2711
    %v2713 = vsel %vm581, %v2704, 0.0
    %2714 = vadd.xlane.f32.xlu0 %v2713
    %v2715 = vpop.xlane.xlu0 %2714
    %v2716 = vsel %vm581, %v2706, 0.0
    %2717 = vadd.xlane.f32.xlu0 %v2716
    %v2718 = vpop.xlane.xlu0 %2717
    %v2719 = vrcp.pop %v2709
    %v2720 = vrcp.pop %v2712
    %v2721 = vrcp.pop %v2715
    %v2722 = vrcp.pop %v2718
    %v2723 = vmul.f32 %v2700, %v2719
    %v2724 = vmul.f32 %v2702, %v2720
    %v2725 = vmul.f32 %v2704, %v2721
    %v2726 = vmul.f32 %v2706, %v2722
    %2728 = vrot.lane.b32.xlu0 %v2316, 96
    %v2729 = vpop.permute.xlu0 %2728
    %v2732 = vsel %vm581, %v2723, 0
    %2734 = vmatpush.msra.mxu0 0.0
    %2735 = vmatpush.msra.mxu0 0.0
    %2736 = vmatpush.msra.mxu0 0.0
    %2737 = vmatpush.msra.mxu0 0.0
    %2738 = vmatpush.msra.mxu0 0.0
    %2739 = vmatpush.msra.mxu0 0.0
    %2740 = vmatpush.msra.mxu0 0.0
    %2741 = vmatpush.msra.mxu0 0.0
    %2742 = vmatpush.msra.mxu0 0.0
    %2743 = vmatpush.msra.mxu0 0.0
    %2744 = vmatpush.msra.mxu0 0.0
    %2745 = vmatpush.msra.mxu0 0.0
    %2746 = vmatpush.msra.mxu0 0.0
    %2747 = vmatpush.msra.mxu0 0.0
    %2748 = vmatpush.msra.mxu0 0.0
    %2749 = vmatpush.msra.mxu0 %v2729
    %2750 = vmatmul.f32.gmra.mxu0 %v2732
    %v2751 = vpop.f32.mrf.mxu0
    %v2752 = vadd.f32 0.0, %v2751
    %2753 = vdwg.mxu0
    %2755 = vrot.lane.b32.xlu0 %v2319, 96
    %v2756 = vpop.permute.xlu0 %2755
    %v2759 = vsel %vm581, %v2724, 0
    %2761 = vmatpush.msra.mxu0 0.0
    %2762 = vmatpush.msra.mxu0 0.0
    %2763 = vmatpush.msra.mxu0 0.0
    %2764 = vmatpush.msra.mxu0 0.0
    %2765 = vmatpush.msra.mxu0 0.0
    %2766 = vmatpush.msra.mxu0 0.0
    %2767 = vmatpush.msra.mxu0 0.0
    %2768 = vmatpush.msra.mxu0 0.0
    %2769 = vmatpush.msra.mxu0 0.0
    %2770 = vmatpush.msra.mxu0 0.0
    %2771 = vmatpush.msra.mxu0 0.0
    %2772 = vmatpush.msra.mxu0 0.0
    %2773 = vmatpush.msra.mxu0 0.0
    %2774 = vmatpush.msra.mxu0 0.0
    %2775 = vmatpush.msra.mxu0 0.0
    %2776 = vmatpush.msra.mxu0 %v2756
    %2777 = vmatmul.f32.gmra.mxu0 %v2759
    %v2778 = vpop.f32.mrf.mxu0
    %v2779 = vadd.f32 0.0, %v2778
    %2780 = vdwg.mxu0
    %2782 = vrot.lane.b32.xlu0 %v2322, 96
    %v2783 = vpop.permute.xlu0 %2782
    %v2786 = vsel %vm581, %v2725, 0
    %2788 = vmatpush.msra.mxu0 0.0
    %2789 = vmatpush.msra.mxu0 0.0
    %2790 = vmatpush.msra.mxu0 0.0
    %2791 = vmatpush.msra.mxu0 0.0
    %2792 = vmatpush.msra.mxu0 0.0
    %2793 = vmatpush.msra.mxu0 0.0
    %2794 = vmatpush.msra.mxu0 0.0
    %2795 = vmatpush.msra.mxu0 0.0
    %2796 = vmatpush.msra.mxu0 0.0
    %2797 = vmatpush.msra.mxu0 0.0
    %2798 = vmatpush.msra.mxu0 0.0
    %2799 = vmatpush.msra.mxu0 0.0
    %2800 = vmatpush.msra.mxu0 0.0
    %2801 = vmatpush.msra.mxu0 0.0
    %2802 = vmatpush.msra.mxu0 0.0
    %2803 = vmatpush.msra.mxu0 %v2783
    %2804 = vmatmul.f32.gmra.mxu0 %v2786
    %v2805 = vpop.f32.mrf.mxu0
    %v2806 = vadd.f32 0.0, %v2805
    %2807 = vdwg.mxu0
    %2809 = vrot.lane.b32.xlu0 %v2325, 96
    %v2810 = vpop.permute.xlu0 %2809
    %v2813 = vsel %vm581, %v2726, 0
    %2815 = vmatpush.msra.mxu0 0.0
    %2816 = vmatpush.msra.mxu0 0.0
    %2817 = vmatpush.msra.mxu0 0.0
    %2818 = vmatpush.msra.mxu0 0.0
    %2819 = vmatpush.msra.mxu0 0.0
    %2820 = vmatpush.msra.mxu0 0.0
    %2821 = vmatpush.msra.mxu0 0.0
    %2822 = vmatpush.msra.mxu0 0.0
    %2823 = vmatpush.msra.mxu0 0.0
    %2824 = vmatpush.msra.mxu0 0.0
    %2825 = vmatpush.msra.mxu0 0.0
    %2826 = vmatpush.msra.mxu0 0.0
    %2827 = vmatpush.msra.mxu0 0.0
    %2828 = vmatpush.msra.mxu0 0.0
    %2829 = vmatpush.msra.mxu0 0.0
    %2830 = vmatpush.msra.mxu0 %v2810
    %2831 = vmatmul.f32.gmra.mxu0 %v2813
    %v2832 = vpop.f32.mrf.mxu0
    %v2833 = vadd.f32 0.0, %v2832
    %2834 = vdwg.mxu0
    %v2835 = vld [vmem:[#allocation9 + $0x20] sm:$0xff]
    %v2836 = vld [vmem:[#allocation9 + $0x28] sm:$0xff]
    %v2837 = vld [vmem:[#allocation9 + $0x30] sm:$0xff]
    %v2838 = vld [vmem:[#allocation9 + $0x38] sm:$0xff]
    %v2840 = vsel %vm476, %v2752, 0
    %v2843 = vsel %vm476, %v2779, 0
    %v2846 = vsel %vm476, %v2806, 0
    %v2849 = vsel %vm476, %v2833, 0
    %2851 = vmatpush.msra.mxu0 0.0
    %2852 = vmatpush.msra.mxu0 0.0
    %2853 = vmatpush.msra.mxu0 0.0
    %2854 = vmatpush.msra.mxu0 0.0
    %2855 = vmatpush.msra.mxu0 0.0
    %2856 = vmatpush.msra.mxu0 0.0
    %2857 = vmatpush.msra.mxu0 0.0
    %2858 = vmatpush.msra.mxu0 0.0
    %2859 = vmatpush.msra.mxu0 0.0
    %2860 = vmatpush.msra.mxu0 0.0
    %2861 = vmatpush.msra.mxu0 0.0
    %2862 = vmatpush.msra.mxu0 0.0
    %2863 = vmatpush.msra.mxu0 %v2838
    %2864 = vmatpush.msra.mxu0 %v2837
    %2865 = vmatpush.msra.mxu0 %v2836
    %2866 = vmatpush.msra.mxu0 %v2835
    %2867 = vmatmul.f32.gmra.mxu0 %v2840
    %v2868 = vpop.f32.mrf.mxu0
    %v2869 = vadd.f32 0.0, %v2868
    %2870 = vmatmul.f32.gmra.mxu0 %v2843
    %v2871 = vpop.f32.mrf.mxu0
    %v2872 = vadd.f32 0.0, %v2871
    %2873 = vmatmul.f32.gmra.mxu0 %v2846
    %v2874 = vpop.f32.mrf.mxu0
    %v2875 = vadd.f32 0.0, %v2874
    %2876 = vmatmul.f32.gmra.mxu0 %v2849
    %v2877 = vpop.f32.mrf.mxu0
    %v2878 = vadd.f32 0.0, %v2877
    %2879 = vdwg.mxu0
    %v2881 = vsel %vm476, %v2496, 0
    %v2884 = vsel %vm476, %v2519, 0
    %v2887 = vsel %vm476, %v2542, 0
    %v2890 = vsel %vm476, %v2565, 0
    %2892 = vmatpush.msra.mxu0 0.0
    %2893 = vmatpush.msra.mxu0 0.0
    %2894 = vmatpush.msra.mxu0 0.0
    %2895 = vmatpush.msra.mxu0 0.0
    %2896 = vmatpush.msra.mxu0 0.0
    %2897 = vmatpush.msra.mxu0 0.0
    %2898 = vmatpush.msra.mxu0 0.0
    %2899 = vmatpush.msra.mxu0 0.0
    %2900 = vmatpush.msra.mxu0 0.0
    %2901 = vmatpush.msra.mxu0 0.0
    %2902 = vmatpush.msra.mxu0 0.0
    %2903 = vmatpush.msra.mxu0 0.0
    %2904 = vmatpush.msra.mxu0 %v2570
    %2905 = vmatpush.msra.mxu0 %v2569
    %2906 = vmatpush.msra.mxu0 %v2568
    %2907 = vmatpush.msra.mxu0 %v2567
    %2908 = vmatmul.f32.gmra.mxu0 %v2881
    %v2909 = vpop.f32.mrf.mxu0
    %v2910 = vadd.f32 %v2869, %v2909
    %2911 = vmatmul.f32.gmra.mxu0 %v2884
    %v2912 = vpop.f32.mrf.mxu0
    %v2913 = vadd.f32 %v2872, %v2912
    %2914 = vmatmul.f32.gmra.mxu0 %v2887
    %v2915 = vpop.f32.mrf.mxu0
    %v2916 = vadd.f32 %v2875, %v2915
    %2917 = vmatmul.f32.gmra.mxu0 %v2890
    %v2918 = vpop.f32.mrf.mxu0
    %v2919 = vadd.f32 %v2878, %v2918
    %2920 = vdwg.mxu0
    %2921 = vrot.lane.b32.xlu0 %v2258, 64
    %v2922 = vpop.permute.xlu0 %2921
    %2923 = vrot.lane.b32.xlu0 %v2287, 64
    %v2924 = vpop.permute.xlu0 %2923
    %v2925 = vsel %vm476, %v2922, 0
    %v2927 = vsel %vm476, %v2924, 0
    %2929 = vmatpush.xpose.msra.mxu0 0.0
    %2930 = vmatpush.xpose.msra.mxu0 0.0
    %2931 = vmatpush.xpose.msra.mxu0 0.0
    %2932 = vmatpush.xpose.msra.mxu0 0.0
    %2933 = vmatpush.xpose.msra.mxu0 0.0
    %2934 = vmatpush.xpose.msra.mxu0 0.0
    %2935 = vmatpush.xpose.msra.mxu0 0.0
    %2936 = vmatpush.xpose.msra.mxu0 0.0
    %2937 = vmatpush.xpose.msra.mxu0 0.0
    %2938 = vmatpush.xpose.msra.mxu0 0.0
    %2939 = vmatpush.xpose.msra.mxu0 0.0
    %2940 = vmatpush.xpose.msra.mxu0 0.0
    %2941 = vmatpush.xpose.msra.mxu0 0.0
    %2942 = vmatpush.xpose.msra.mxu0 0.0
    %2943 = vmatpush.xpose.msra.mxu0 0.0
    %2944 = vmatpush.xpose.msra.mxu0 %v2927
    %2945 = vmatmul.f32.gmra.mxu0 %v2925
    %v2946 = vpop.f32.mrf.mxu0
    %v2947 = vadd.f32 %v325, %v2946
    %2948 = vdwg.mxu0
    %2949 = vrot.lane.b32.xlu0 %v2261, 64
    %v2950 = vpop.permute.xlu0 %2949
    %2951 = vrot.lane.b32.xlu0 %v2290, 64
    %v2952 = vpop.permute.xlu0 %2951
    %v2953 = vsel %vm476, %v2950, 0
    %v2955 = vsel %vm476, %v2952, 0
    %2957 = vmatpush.xpose.msra.mxu0 0.0
    %2958 = vmatpush.xpose.msra.mxu0 0.0
    %2959 = vmatpush.xpose.msra.mxu0 0.0
    %2960 = vmatpush.xpose.msra.mxu0 0.0
    %2961 = vmatpush.xpose.msra.mxu0 0.0
    %2962 = vmatpush.xpose.msra.mxu0 0.0
    %2963 = vmatpush.xpose.msra.mxu0 0.0
    %2964 = vmatpush.xpose.msra.mxu0 0.0
    %2965 = vmatpush.xpose.msra.mxu0 0.0
    %2966 = vmatpush.xpose.msra.mxu0 0.0
    %2967 = vmatpush.xpose.msra.mxu0 0.0
    %2968 = vmatpush.xpose.msra.mxu0 0.0
    %2969 = vmatpush.xpose.msra.mxu0 0.0
    %2970 = vmatpush.xpose.msra.mxu0 0.0
    %2971 = vmatpush.xpose.msra.mxu0 0.0
    %2972 = vmatpush.xpose.msra.mxu0 %v2955
    %2973 = vmatmul.f32.gmra.mxu0 %v2953
    %v2974 = vpop.f32.mrf.mxu0
    %v2975 = vadd.f32 %v326, %v2974
    %2976 = vdwg.mxu0
    %2977 = vrot.lane.b32.xlu0 %v2264, 64
    %v2978 = vpop.permute.xlu0 %2977
    %2979 = vrot.lane.b32.xlu0 %v2293, 64
    %v2980 = vpop.permute.xlu0 %2979
    %v2981 = vsel %vm476, %v2978, 0
    %v2983 = vsel %vm476, %v2980, 0
    %2985 = vmatpush.xpose.msra.mxu0 0.0
    %2986 = vmatpush.xpose.msra.mxu0 0.0
    %2987 = vmatpush.xpose.msra.mxu0 0.0
    %2988 = vmatpush.xpose.msra.mxu0 0.0
    %2989 = vmatpush.xpose.msra.mxu0 0.0
    %2990 = vmatpush.xpose.msra.mxu0 0.0
    %2991 = vmatpush.xpose.msra.mxu0 0.0
    %2992 = vmatpush.xpose.msra.mxu0 0.0
    %2993 = vmatpush.xpose.msra.mxu0 0.0
    %2994 = vmatpush.xpose.msra.mxu0 0.0
    %2995 = vmatpush.xpose.msra.mxu0 0.0
    %2996 = vmatpush.xpose.msra.mxu0 0.0
    %2997 = vmatpush.xpose.msra.mxu0 0.0
    %2998 = vmatpush.xpose.msra.mxu0 0.0
    %2999 = vmatpush.xpose.msra.mxu0 0.0
    %3000 = vmatpush.xpose.msra.mxu0 %v2983
    %3001 = vmatmul.f32.gmra.mxu0 %v2981
    %v3002 = vpop.f32.mrf.mxu0
    %v3003 = vadd.f32 %v327, %v3002
    %3004 = vdwg.mxu0
    %3005 = vrot.lane.b32.xlu0 %v2267, 64
    %v3006 = vpop.permute.xlu0 %3005
    %3007 = vrot.lane.b32.xlu0 %v2296, 64
    %v3008 = vpop.permute.xlu0 %3007
    %v3009 = vsel %vm476, %v3006, 0
    %v3011 = vsel %vm476, %v3008, 0
    %3013 = vmatpush.xpose.msra.mxu0 0.0
    %3014 = vmatpush.xpose.msra.mxu0 0.0
    %3015 = vmatpush.xpose.msra.mxu0 0.0
    %3016 = vmatpush.xpose.msra.mxu0 0.0
    %3017 = vmatpush.xpose.msra.mxu0 0.0
    %3018 = vmatpush.xpose.msra.mxu0 0.0
    %3019 = vmatpush.xpose.msra.mxu0 0.0
    %3020 = vmatpush.xpose.msra.mxu0 0.0
    %3021 = vmatpush.xpose.msra.mxu0 0.0
    %3022 = vmatpush.xpose.msra.mxu0 0.0
    %3023 = vmatpush.xpose.msra.mxu0 0.0
    %3024 = vmatpush.xpose.msra.mxu0 0.0
    %3025 = vmatpush.xpose.msra.mxu0 0.0
    %3026 = vmatpush.xpose.msra.mxu0 0.0
    %3027 = vmatpush.xpose.msra.mxu0 0.0
    %3028 = vmatpush.xpose.msra.mxu0 %v3011
    %3029 = vmatmul.f32.gmra.mxu0 %v3009
    %v3030 = vpop.f32.mrf.mxu0
    %v3031 = vadd.f32 %v328, %v3030
    %3032 = vdwg.mxu0
    %v3033 = vsel %vm581, %v2947, -inf
    %3034 = vmax.xlane.f32.xlu0 %v3033
    %v3035 = vpop.xlane.xlu0 %3034
    %v3036 = vsel %vm581, %v2975, -inf
    %3037 = vmax.xlane.f32.xlu0 %v3036
    %v3038 = vpop.xlane.xlu0 %3037
    %v3039 = vsel %vm581, %v3003, -inf
    %3040 = vmax.xlane.f32.xlu0 %v3039
    %v3041 = vpop.xlane.xlu0 %3040
    %v3042 = vsel %vm581, %v3031, -inf
    %3043 = vmax.xlane.f32.xlu0 %v3042
    %v3044 = vpop.xlane.xlu0 %3043
    %v3045 = vsub.f32 %v2947, %v3035
    %v3046 = vsub.f32 %v2975, %v3038
    %v3047 = vsub.f32 %v3003, %v3041
    %v3048 = vsub.f32 %v3031, %v3044
    %v3049 = vmul.f32 %v3045, 1.442695
    %v3050 = vpow.pop %v3049
    %v3051 = vmul.f32 %v3046, 1.442695
    %v3052 = vpow.pop %v3051
    %v3053 = vmul.f32 %v3047, 1.442695
    %v3054 = vpow.pop %v3053
    %v3055 = vmul.f32 %v3048, 1.442695
    %v3056 = vpow.pop %v3055
    %v3057 = vsel %vm581, %v3050, 0.0
    %3058 = vadd.xlane.f32.xlu0 %v3057
    %v3059 = vpop.xlane.xlu0 %3058
    %v3060 = vsel %vm581, %v3052, 0.0
    %3061 = vadd.xlane.f32.xlu0 %v3060
    %v3062 = vpop.xlane.xlu0 %3061
    %v3063 = vsel %vm581, %v3054, 0.0
    %3064 = vadd.xlane.f32.xlu0 %v3063
    %v3065 = vpop.xlane.xlu0 %3064
    %v3066 = vsel %vm581, %v3056, 0.0
    %3067 = vadd.xlane.f32.xlu0 %v3066
    %v3068 = vpop.xlane.xlu0 %3067
    %v3069 = vrcp.pop %v3059
    %v3070 = vrcp.pop %v3062
    %v3071 = vrcp.pop %v3065
    %v3072 = vrcp.pop %v3068
    %v3073 = vmul.f32 %v3050, %v3069
    %v3074 = vmul.f32 %v3052, %v3070
    %v3075 = vmul.f32 %v3054, %v3071
    %v3076 = vmul.f32 %v3056, %v3072
    %3077 = vrot.lane.b32.xlu0 %v2316, 64
    %v3078 = vpop.permute.xlu0 %3077
    %v3081 = vsel %vm581, %v3073, 0
    %3083 = vmatpush.msra.mxu0 0.0
    %3084 = vmatpush.msra.mxu0 0.0
    %3085 = vmatpush.msra.mxu0 0.0
    %3086 = vmatpush.msra.mxu0 0.0
    %3087 = vmatpush.msra.mxu0 0.0
    %3088 = vmatpush.msra.mxu0 0.0
    %3089 = vmatpush.msra.mxu0 0.0
    %3090 = vmatpush.msra.mxu0 0.0
    %3091 = vmatpush.msra.mxu0 0.0
    %3092 = vmatpush.msra.mxu0 0.0
    %3093 = vmatpush.msra.mxu0 0.0
    %3094 = vmatpush.msra.mxu0 0.0
    %3095 = vmatpush.msra.mxu0 0.0
    %3096 = vmatpush.msra.mxu0 0.0
    %3097 = vmatpush.msra.mxu0 0.0
    %3098 = vmatpush.msra.mxu0 %v3078
    %3099 = vmatmul.f32.gmra.mxu0 %v3081
    %v3100 = vpop.f32.mrf.mxu0
    %v3101 = vadd.f32 0.0, %v3100
    %3102 = vdwg.mxu0
    %3103 = vrot.lane.b32.xlu0 %v2319, 64
    %v3104 = vpop.permute.xlu0 %3103
    %v3107 = vsel %vm581, %v3074, 0
    %3109 = vmatpush.msra.mxu0 0.0
    %3110 = vmatpush.msra.mxu0 0.0
    %3111 = vmatpush.msra.mxu0 0.0
    %3112 = vmatpush.msra.mxu0 0.0
    %3113 = vmatpush.msra.mxu0 0.0
    %3114 = vmatpush.msra.mxu0 0.0
    %3115 = vmatpush.msra.mxu0 0.0
    %3116 = vmatpush.msra.mxu0 0.0
    %3117 = vmatpush.msra.mxu0 0.0
    %3118 = vmatpush.msra.mxu0 0.0
    %3119 = vmatpush.msra.mxu0 0.0
    %3120 = vmatpush.msra.mxu0 0.0
    %3121 = vmatpush.msra.mxu0 0.0
    %3122 = vmatpush.msra.mxu0 0.0
    %3123 = vmatpush.msra.mxu0 0.0
    %3124 = vmatpush.msra.mxu0 %v3104
    %3125 = vmatmul.f32.gmra.mxu0 %v3107
    %v3126 = vpop.f32.mrf.mxu0
    %v3127 = vadd.f32 0.0, %v3126
    %3128 = vdwg.mxu0
    %3129 = vrot.lane.b32.xlu0 %v2322, 64
    %v3130 = vpop.permute.xlu0 %3129
    %v3133 = vsel %vm581, %v3075, 0
    %3135 = vmatpush.msra.mxu0 0.0
    %3136 = vmatpush.msra.mxu0 0.0
    %3137 = vmatpush.msra.mxu0 0.0
    %3138 = vmatpush.msra.mxu0 0.0
    %3139 = vmatpush.msra.mxu0 0.0
    %3140 = vmatpush.msra.mxu0 0.0
    %3141 = vmatpush.msra.mxu0 0.0
    %3142 = vmatpush.msra.mxu0 0.0
    %3143 = vmatpush.msra.mxu0 0.0
    %3144 = vmatpush.msra.mxu0 0.0
    %3145 = vmatpush.msra.mxu0 0.0
    %3146 = vmatpush.msra.mxu0 0.0
    %3147 = vmatpush.msra.mxu0 0.0
    %3148 = vmatpush.msra.mxu0 0.0
    %3149 = vmatpush.msra.mxu0 0.0
    %3150 = vmatpush.msra.mxu0 %v3130
    %3151 = vmatmul.f32.gmra.mxu0 %v3133
    %v3152 = vpop.f32.mrf.mxu0
    %v3153 = vadd.f32 0.0, %v3152
    %3154 = vdwg.mxu0
    %3155 = vrot.lane.b32.xlu0 %v2325, 64
    %v3156 = vpop.permute.xlu0 %3155
    %v3159 = vsel %vm581, %v3076, 0
    %3161 = vmatpush.msra.mxu0 0.0
    %3162 = vmatpush.msra.mxu0 0.0
    %3163 = vmatpush.msra.mxu0 0.0
    %3164 = vmatpush.msra.mxu0 0.0
    %3165 = vmatpush.msra.mxu0 0.0
    %3166 = vmatpush.msra.mxu0 0.0
    %3167 = vmatpush.msra.mxu0 0.0
    %3168 = vmatpush.msra.mxu0 0.0
    %3169 = vmatpush.msra.mxu0 0.0
    %3170 = vmatpush.msra.mxu0 0.0
    %3171 = vmatpush.msra.mxu0 0.0
    %3172 = vmatpush.msra.mxu0 0.0
    %3173 = vmatpush.msra.mxu0 0.0
    %3174 = vmatpush.msra.mxu0 0.0
    %3175 = vmatpush.msra.mxu0 0.0
    %3176 = vmatpush.msra.mxu0 %v3156
    %3177 = vmatmul.f32.gmra.mxu0 %v3159
    %v3178 = vpop.f32.mrf.mxu0
    %v3179 = vadd.f32 0.0, %v3178
    %3180 = vdwg.mxu0
    %v3181 = vld [vmem:[#allocation9 + $0x40] sm:$0xff]
    %v3182 = vld [vmem:[#allocation9 + $0x48] sm:$0xff]
    %v3183 = vld [vmem:[#allocation9 + $0x50] sm:$0xff]
    %v3184 = vld [vmem:[#allocation9 + $0x58] sm:$0xff]
    %v3186 = vsel %vm476, %v3101, 0
    %v3189 = vsel %vm476, %v3127, 0
    %v3192 = vsel %vm476, %v3153, 0
    %v3195 = vsel %vm476, %v3179, 0
    %3197 = vmatpush.msra.mxu0 0.0
    %3198 = vmatpush.msra.mxu0 0.0
    %3199 = vmatpush.msra.mxu0 0.0
    %3200 = vmatpush.msra.mxu0 0.0
    %3201 = vmatpush.msra.mxu0 0.0
    %3202 = vmatpush.msra.mxu0 0.0
    %3203 = vmatpush.msra.mxu0 0.0
    %3204 = vmatpush.msra.mxu0 0.0
    %3205 = vmatpush.msra.mxu0 0.0
    %3206 = vmatpush.msra.mxu0 0.0
    %3207 = vmatpush.msra.mxu0 0.0
    %3208 = vmatpush.msra.mxu0 0.0
    %3209 = vmatpush.msra.mxu0 %v3184
    %3210 = vmatpush.msra.mxu0 %v3183
    %3211 = vmatpush.msra.mxu0 %v3182
    %3212 = vmatpush.msra.mxu0 %v3181
    %3213 = vmatmul.f32.gmra.mxu0 %v3186
    %v3214 = vpop.f32.mrf.mxu0
    %v3215 = vadd.f32 0.0, %v3214
    %3216 = vmatmul.f32.gmra.mxu0 %v3189
    %v3217 = vpop.f32.mrf.mxu0
    %v3218 = vadd.f32 0.0, %v3217
    %3219 = vmatmul.f32.gmra.mxu0 %v3192
    %v3220 = vpop.f32.mrf.mxu0
    %v3221 = vadd.f32 0.0, %v3220
    %3222 = vmatmul.f32.gmra.mxu0 %v3195
    %v3223 = vpop.f32.mrf.mxu0
    %v3224 = vadd.f32 0.0, %v3223
    %3225 = vdwg.mxu0
    %v3226 = vadd.f32 %v2910, %v3215
    %v3227 = vadd.f32 %v2913, %v3218
    %v3228 = vadd.f32 %v2916, %v3221
    %v3229 = vadd.f32 %v2919, %v3224
    %3230 = vrot.lane.b32.xlu0 %v2258, 32
    %v3231 = vpop.permute.xlu0 %3230
    %3232 = vrot.lane.b32.xlu0 %v2287, 32
    %v3233 = vpop.permute.xlu0 %3232
    %v3234 = vsel %vm476, %v3231, 0
    %v3236 = vsel %vm476, %v3233, 0
    %3238 = vmatpush.xpose.msra.mxu0 0.0
    %3239 = vmatpush.xpose.msra.mxu0 0.0
    %3240 = vmatpush.xpose.msra.mxu0 0.0
    %3241 = vmatpush.xpose.msra.mxu0 0.0
    %3242 = vmatpush.xpose.msra.mxu0 0.0
    %3243 = vmatpush.xpose.msra.mxu0 0.0
    %3244 = vmatpush.xpose.msra.mxu0 0.0
    %3245 = vmatpush.xpose.msra.mxu0 0.0
    %3246 = vmatpush.xpose.msra.mxu0 0.0
    %3247 = vmatpush.xpose.msra.mxu0 0.0
    %3248 = vmatpush.xpose.msra.mxu0 0.0
    %3249 = vmatpush.xpose.msra.mxu0 0.0
    %3250 = vmatpush.xpose.msra.mxu0 0.0
    %3251 = vmatpush.xpose.msra.mxu0 0.0
    %3252 = vmatpush.xpose.msra.mxu0 0.0
    %3253 = vmatpush.xpose.msra.mxu0 %v3236
    %3254 = vmatmul.f32.gmra.mxu0 %v3234
    %v3255 = vpop.f32.mrf.mxu0
    %v3256 = vadd.f32 %v325, %v3255
    %3257 = vdwg.mxu0
    %3258 = vrot.lane.b32.xlu0 %v2261, 32
    %v3259 = vpop.permute.xlu0 %3258
    %3260 = vrot.lane.b32.xlu0 %v2290, 32
    %v3261 = vpop.permute.xlu0 %3260
    %v3262 = vsel %vm476, %v3259, 0
    %v3264 = vsel %vm476, %v3261, 0
    %3266 = vmatpush.xpose.msra.mxu0 0.0
    %3267 = vmatpush.xpose.msra.mxu0 0.0
    %3268 = vmatpush.xpose.msra.mxu0 0.0
    %3269 = vmatpush.xpose.msra.mxu0 0.0
    %3270 = vmatpush.xpose.msra.mxu0 0.0
    %3271 = vmatpush.xpose.msra.mxu0 0.0
    %3272 = vmatpush.xpose.msra.mxu0 0.0
    %3273 = vmatpush.xpose.msra.mxu0 0.0
    %3274 = vmatpush.xpose.msra.mxu0 0.0
    %3275 = vmatpush.xpose.msra.mxu0 0.0
    %3276 = vmatpush.xpose.msra.mxu0 0.0
    %3277 = vmatpush.xpose.msra.mxu0 0.0
    %3278 = vmatpush.xpose.msra.mxu0 0.0
    %3279 = vmatpush.xpose.msra.mxu0 0.0
    %3280 = vmatpush.xpose.msra.mxu0 0.0
    %3281 = vmatpush.xpose.msra.mxu0 %v3264
    %3282 = vmatmul.f32.gmra.mxu0 %v3262
    %v3283 = vpop.f32.mrf.mxu0
    %v3284 = vadd.f32 %v326, %v3283
    %3285 = vdwg.mxu0
    %3286 = vrot.lane.b32.xlu0 %v2264, 32
    %v3287 = vpop.permute.xlu0 %3286
    %3288 = vrot.lane.b32.xlu0 %v2293, 32
    %v3289 = vpop.permute.xlu0 %3288
    %v3290 = vsel %vm476, %v3287, 0
    %v3292 = vsel %vm476, %v3289, 0
    %3294 = vmatpush.xpose.msra.mxu0 0.0
    %3295 = vmatpush.xpose.msra.mxu0 0.0
    %3296 = vmatpush.xpose.msra.mxu0 0.0
    %3297 = vmatpush.xpose.msra.mxu0 0.0
    %3298 = vmatpush.xpose.msra.mxu0 0.0
    %3299 = vmatpush.xpose.msra.mxu0 0.0
    %3300 = vmatpush.xpose.msra.mxu0 0.0
    %3301 = vmatpush.xpose.msra.mxu0 0.0
    %3302 = vmatpush.xpose.msra.mxu0 0.0
    %3303 = vmatpush.xpose.msra.mxu0 0.0
    %3304 = vmatpush.xpose.msra.mxu0 0.0
    %3305 = vmatpush.xpose.msra.mxu0 0.0
    %3306 = vmatpush.xpose.msra.mxu0 0.0
    %3307 = vmatpush.xpose.msra.mxu0 0.0
    %3308 = vmatpush.xpose.msra.mxu0 0.0
    %3309 = vmatpush.xpose.msra.mxu0 %v3292
    %3310 = vmatmul.f32.gmra.mxu0 %v3290
    %v3311 = vpop.f32.mrf.mxu0
    %v3312 = vadd.f32 %v327, %v3311
    %3313 = vdwg.mxu0
    %3314 = vrot.lane.b32.xlu0 %v2267, 32
    %v3315 = vpop.permute.xlu0 %3314
    %3316 = vrot.lane.b32.xlu0 %v2296, 32
    %v3317 = vpop.permute.xlu0 %3316
    %v3318 = vsel %vm476, %v3315, 0
    %v3320 = vsel %vm476, %v3317, 0
    %3322 = vmatpush.xpose.msra.mxu0 0.0
    %3323 = vmatpush.xpose.msra.mxu0 0.0
    %3324 = vmatpush.xpose.msra.mxu0 0.0
    %3325 = vmatpush.xpose.msra.mxu0 0.0
    %3326 = vmatpush.xpose.msra.mxu0 0.0
    %3327 = vmatpush.xpose.msra.mxu0 0.0
    %3328 = vmatpush.xpose.msra.mxu0 0.0
    %3329 = vmatpush.xpose.msra.mxu0 0.0
    %3330 = vmatpush.xpose.msra.mxu0 0.0
    %3331 = vmatpush.xpose.msra.mxu0 0.0
    %3332 = vmatpush.xpose.msra.mxu0 0.0
    %3333 = vmatpush.xpose.msra.mxu0 0.0
    %3334 = vmatpush.xpose.msra.mxu0 0.0
    %3335 = vmatpush.xpose.msra.mxu0 0.0
    %3336 = vmatpush.xpose.msra.mxu0 0.0
    %3337 = vmatpush.xpose.msra.mxu0 %v3320
    %3338 = vmatmul.f32.gmra.mxu0 %v3318
    %v3339 = vpop.f32.mrf.mxu0
    %v3340 = vadd.f32 %v328, %v3339
    %3341 = vdwg.mxu0
    %v3342 = vsel %vm581, %v3256, -inf
    %3343 = vmax.xlane.f32.xlu0 %v3342
    %v3344 = vpop.xlane.xlu0 %3343
    %v3345 = vsel %vm581, %v3284, -inf
    %3346 = vmax.xlane.f32.xlu0 %v3345
    %v3347 = vpop.xlane.xlu0 %3346
    %v3348 = vsel %vm581, %v3312, -inf
    %3349 = vmax.xlane.f32.xlu0 %v3348
    %v3350 = vpop.xlane.xlu0 %3349
    %v3351 = vsel %vm581, %v3340, -inf
    %3352 = vmax.xlane.f32.xlu0 %v3351
    %v3353 = vpop.xlane.xlu0 %3352
    %v3354 = vsub.f32 %v3256, %v3344
    %v3355 = vsub.f32 %v3284, %v3347
    %v3356 = vsub.f32 %v3312, %v3350
    %v3357 = vsub.f32 %v3340, %v3353
    %v3358 = vmul.f32 %v3354, 1.442695
    %v3359 = vpow.pop %v3358
    %v3360 = vmul.f32 %v3355, 1.442695
    %v3361 = vpow.pop %v3360
    %v3362 = vmul.f32 %v3356, 1.442695
    %v3363 = vpow.pop %v3362
    %v3364 = vmul.f32 %v3357, 1.442695
    %v3365 = vpow.pop %v3364
    %v3366 = vsel %vm581, %v3359, 0.0
    %3367 = vadd.xlane.f32.xlu0 %v3366
    %v3368 = vpop.xlane.xlu0 %3367
    %v3369 = vsel %vm581, %v3361, 0.0
    %3370 = vadd.xlane.f32.xlu0 %v3369
    %v3371 = vpop.xlane.xlu0 %3370
    %v3372 = vsel %vm581, %v3363, 0.0
    %3373 = vadd.xlane.f32.xlu0 %v3372
    %v3374 = vpop.xlane.xlu0 %3373
    %v3375 = vsel %vm581, %v3365, 0.0
    %3376 = vadd.xlane.f32.xlu0 %v3375
    %v3377 = vpop.xlane.xlu0 %3376
    %v3378 = vrcp.pop %v3368
    %v3379 = vrcp.pop %v3371
    %v3380 = vrcp.pop %v3374
    %v3381 = vrcp.pop %v3377
    %v3382 = vmul.f32 %v3359, %v3378
    %v3383 = vmul.f32 %v3361, %v3379
    %v3384 = vmul.f32 %v3363, %v3380
    %v3385 = vmul.f32 %v3365, %v3381
    %3386 = vrot.lane.b32.xlu0 %v2316, 32
    %v3387 = vpop.permute.xlu0 %3386
    %v3390 = vsel %vm581, %v3382, 0
    %3392 = vmatpush.msra.mxu0 0.0
    %3393 = vmatpush.msra.mxu0 0.0
    %3394 = vmatpush.msra.mxu0 0.0
    %3395 = vmatpush.msra.mxu0 0.0
    %3396 = vmatpush.msra.mxu0 0.0
    %3397 = vmatpush.msra.mxu0 0.0
    %3398 = vmatpush.msra.mxu0 0.0
    %3399 = vmatpush.msra.mxu0 0.0
    %3400 = vmatpush.msra.mxu0 0.0
    %3401 = vmatpush.msra.mxu0 0.0
    %3402 = vmatpush.msra.mxu0 0.0
    %3403 = vmatpush.msra.mxu0 0.0
    %3404 = vmatpush.msra.mxu0 0.0
    %3405 = vmatpush.msra.mxu0 0.0
    %3406 = vmatpush.msra.mxu0 0.0
    %3407 = vmatpush.msra.mxu0 %v3387
    %3408 = vmatmul.f32.gmra.mxu0 %v3390
    %v3409 = vpop.f32.mrf.mxu0
    %v3410 = vadd.f32 0.0, %v3409
    %3411 = vdwg.mxu0
    %3412 = vrot.lane.b32.xlu0 %v2319, 32
    %v3413 = vpop.permute.xlu0 %3412
    %v3416 = vsel %vm581, %v3383, 0
    %3418 = vmatpush.msra.mxu0 0.0
    %3419 = vmatpush.msra.mxu0 0.0
    %3420 = vmatpush.msra.mxu0 0.0
    %3421 = vmatpush.msra.mxu0 0.0
    %3422 = vmatpush.msra.mxu0 0.0
    %3423 = vmatpush.msra.mxu0 0.0
    %3424 = vmatpush.msra.mxu0 0.0
    %3425 = vmatpush.msra.mxu0 0.0
    %3426 = vmatpush.msra.mxu0 0.0
    %3427 = vmatpush.msra.mxu0 0.0
    %3428 = vmatpush.msra.mxu0 0.0
    %3429 = vmatpush.msra.mxu0 0.0
    %3430 = vmatpush.msra.mxu0 0.0
    %3431 = vmatpush.msra.mxu0 0.0
    %3432 = vmatpush.msra.mxu0 0.0
    %3433 = vmatpush.msra.mxu0 %v3413
    %3434 = vmatmul.f32.gmra.mxu0 %v3416
    %v3435 = vpop.f32.mrf.mxu0
    %v3436 = vadd.f32 0.0, %v3435
    %3437 = vdwg.mxu0
    %3438 = vrot.lane.b32.xlu0 %v2322, 32
    %v3439 = vpop.permute.xlu0 %3438
    %v3442 = vsel %vm581, %v3384, 0
    %3444 = vmatpush.msra.mxu0 0.0
    %3445 = vmatpush.msra.mxu0 0.0
    %3446 = vmatpush.msra.mxu0 0.0
    %3447 = vmatpush.msra.mxu0 0.0
    %3448 = vmatpush.msra.mxu0 0.0
    %3449 = vmatpush.msra.mxu0 0.0
    %3450 = vmatpush.msra.mxu0 0.0
    %3451 = vmatpush.msra.mxu0 0.0
    %3452 = vmatpush.msra.mxu0 0.0
    %3453 = vmatpush.msra.mxu0 0.0
    %3454 = vmatpush.msra.mxu0 0.0
    %3455 = vmatpush.msra.mxu0 0.0
    %3456 = vmatpush.msra.mxu0 0.0
    %3457 = vmatpush.msra.mxu0 0.0
    %3458 = vmatpush.msra.mxu0 0.0
    %3459 = vmatpush.msra.mxu0 %v3439
    %3460 = vmatmul.f32.gmra.mxu0 %v3442
    %v3461 = vpop.f32.mrf.mxu0
    %v3462 = vadd.f32 0.0, %v3461
    %3463 = vdwg.mxu0
    %3464 = vrot.lane.b32.xlu0 %v2325, 32
    %v3465 = vpop.permute.xlu0 %3464
    %v3468 = vsel %vm581, %v3385, 0
    %3470 = vmatpush.msra.mxu0 0.0
    %3471 = vmatpush.msra.mxu0 0.0
    %3472 = vmatpush.msra.mxu0 0.0
    %3473 = vmatpush.msra.mxu0 0.0
    %3474 = vmatpush.msra.mxu0 0.0
    %3475 = vmatpush.msra.mxu0 0.0
    %3476 = vmatpush.msra.mxu0 0.0
    %3477 = vmatpush.msra.mxu0 0.0
    %3478 = vmatpush.msra.mxu0 0.0
    %3479 = vmatpush.msra.mxu0 0.0
    %3480 = vmatpush.msra.mxu0 0.0
    %3481 = vmatpush.msra.mxu0 0.0
    %3482 = vmatpush.msra.mxu0 0.0
    %3483 = vmatpush.msra.mxu0 0.0
    %3484 = vmatpush.msra.mxu0 0.0
    %3485 = vmatpush.msra.mxu0 %v3465
    %3486 = vmatmul.f32.gmra.mxu0 %v3468
    %v3487 = vpop.f32.mrf.mxu0
    %v3488 = vadd.f32 0.0, %v3487
    %3489 = vdwg.mxu0
    %v3490 = vld [vmem:[#allocation9 + $0x60] sm:$0xff]
    %v3491 = vld [vmem:[#allocation9 + $0x68] sm:$0xff]
    %v3492 = vld [vmem:[#allocation9 + $0x70] sm:$0xff]
    %v3493 = vld [vmem:[#allocation9 + $0x78] sm:$0xff]
    %v3495 = vsel %vm476, %v3410, 0
    %v3498 = vsel %vm476, %v3436, 0
    %v3501 = vsel %vm476, %v3462, 0
    %v3504 = vsel %vm476, %v3488, 0
    %3506 = vmatpush.msra.mxu0 0.0
    %3507 = vmatpush.msra.mxu0 0.0
    %3508 = vmatpush.msra.mxu0 0.0
    %3509 = vmatpush.msra.mxu0 0.0
    %3510 = vmatpush.msra.mxu0 0.0
    %3511 = vmatpush.msra.mxu0 0.0
    %3512 = vmatpush.msra.mxu0 0.0
    %3513 = vmatpush.msra.mxu0 0.0
    %3514 = vmatpush.msra.mxu0 0.0
    %3515 = vmatpush.msra.mxu0 0.0
    %3516 = vmatpush.msra.mxu0 0.0
    %3517 = vmatpush.msra.mxu0 0.0
    %3518 = vmatpush.msra.mxu0 %v3493
    %3519 = vmatpush.msra.mxu0 %v3492
    %3520 = vmatpush.msra.mxu0 %v3491
    %3521 = vmatpush.msra.mxu0 %v3490
    %3522 = vmatmul.f32.gmra.mxu0 %v3495
    %v3523 = vpop.f32.mrf.mxu0
    %v3524 = vadd.f32 0.0, %v3523
    %3525 = vmatmul.f32.gmra.mxu0 %v3498
    %v3526 = vpop.f32.mrf.mxu0
    %v3527 = vadd.f32 0.0, %v3526
    %3528 = vmatmul.f32.gmra.mxu0 %v3501
    %v3529 = vpop.f32.mrf.mxu0
    %v3530 = vadd.f32 0.0, %v3529
    %3531 = vmatmul.f32.gmra.mxu0 %v3504
    %v3532 = vpop.f32.mrf.mxu0
    %v3533 = vadd.f32 0.0, %v3532
    %3534 = vdwg.mxu0
    %v3535 = vadd.f32 %v3226, %v3524
    %v3536 = vadd.f32 %v3227, %v3527
    %v3537 = vadd.f32 %v3228, %v3530
    %v3538 = vadd.f32 %v3229, %v3533
    %v3539 = vld [vmem:[%s19] sm:$0x1]
    %v3541 = vperm.slane %v3539, 0
    %v3543 = vadd.f32 %v3535, %v3541
    %v3544 = vadd.f32 %v3536, %v3541
    %v3545 = vadd.f32 %v3537, %v3541
    %v3546 = vadd.f32 %v3538, %v3541
    %v3547 = vadd.f32 %v3543, %v2180
    %v3548 = vadd.f32 %v3544, %v2181
    %v3549 = vadd.f32 %v3545, %v2182
    %v3550 = vadd.f32 %v3546, %v2183
    %3551 = vadd.xlane.f32.xlu0 %v3547
    %v3552 = vpop.xlane.xlu0 %3551
    %3553 = vadd.xlane.f32.xlu0 %v3548
    %v3554 = vpop.xlane.xlu0 %3553
    %3555 = vadd.xlane.f32.xlu0 %v3549
    %v3556 = vpop.xlane.xlu0 %3555
    %3557 = vadd.xlane.f32.xlu0 %v3550
    %v3558 = vpop.xlane.xlu0 %3557
    %v3559 = vmul.f32 %v3552, %v216
    %v3560 = vmul.f32 %v3554, %v216
    %v3561 = vmul.f32 %v3556, %v216
    %v3562 = vmul.f32 %v3558, %v216
    %v3563 = vmul.f32 %v3547, %v3547
    %v3564 = vmul.f32 %v3548, %v3548
    %v3565 = vmul.f32 %v3549, %v3549
    %v3566 = vmul.f32 %v3550, %v3550
    %3567 = vadd.xlane.f32.xlu0 %v3563
    %v3568 = vpop.xlane.xlu0 %3567
    %3569 = vadd.xlane.f32.xlu0 %v3564
    %v3570 = vpop.xlane.xlu0 %3569
    %3571 = vadd.xlane.f32.xlu0 %v3565
    %v3572 = vpop.xlane.xlu0 %3571
    %3573 = vadd.xlane.f32.xlu0 %v3566
    %v3574 = vpop.xlane.xlu0 %3573
    %v3575 = vmul.f32 %v3568, %v216
    %v3576 = vmul.f32 %v3570, %v216
    %v3577 = vmul.f32 %v3572, %v216
    %v3578 = vmul.f32 %v3574, %v216
    %v3579 = vmul.f32 %v3559, %v3559
    %v3580 = vmul.f32 %v3560, %v3560
    %v3581 = vmul.f32 %v3561, %v3561
    %v3582 = vmul.f32 %v3562, %v3562
    %v3583 = vsub.f32 %v3575, %v3579
    %v3584 = vsub.f32 %v3576, %v3580
    %v3585 = vsub.f32 %v3577, %v3581
    %v3586 = vsub.f32 %v3578, %v3582
    %v3587 = vmax.f32 %v3583, 0.0
    %v3588 = vmax.f32 %v3584, 0.0
    %v3589 = vmax.f32 %v3585, 0.0
    %v3590 = vmax.f32 %v3586, 0.0
    %v3591 = vsub.f32 %v3547, %v3559
    %v3592 = vsub.f32 %v3548, %v3560
    %v3593 = vsub.f32 %v3549, %v3561
    %v3594 = vsub.f32 %v3550, %v3562
    %v3595 = vadd.f32 %v3587, 1e-12
    %v3596 = vadd.f32 %v3588, 1e-12
    %v3597 = vadd.f32 %v3589, 1e-12
    %v3598 = vadd.f32 %v3590, 1e-12
    %v3599 = vrsqrt.pop %v3595
    %v3600 = vmul.f32 %v3599, %v3595
    %v3601 = vmul.f32 %v3600, %v3599
    %v3602 = vmul.f32 0.5, %v3601
    %v3603 = vsub.f32 1.5, %v3602
    %v3604 = vmul.f32 %v3599, %v3603
    %vm3605 = vweird.f32 %v3595
    %vm3606 = vweird.f32 %v3599
    %vm3607 = vmor %vm3605, %vm3606
    %v3608 = vsel %vm3607, %v3599, %v3604
    %v3609 = vrsqrt.pop %v3596
    %v3610 = vmul.f32 %v3609, %v3596
    %v3611 = vmul.f32 %v3610, %v3609
    %v3612 = vmul.f32 0.5, %v3611
    %v3613 = vsub.f32 1.5, %v3612
    %v3614 = vmul.f32 %v3609, %v3613
    %vm3615 = vweird.f32 %v3596
    %vm3616 = vweird.f32 %v3609
    %vm3617 = vmor %vm3615, %vm3616
    %v3618 = vsel %vm3617, %v3609, %v3614
    %v3619 = vrsqrt.pop %v3597
    %v3620 = vmul.f32 %v3619, %v3597
    %v3621 = vmul.f32 %v3620, %v3619
    %v3622 = vmul.f32 0.5, %v3621
    %v3623 = vsub.f32 1.5, %v3622
    %v3624 = vmul.f32 %v3619, %v3623
    %vm3625 = vweird.f32 %v3597
    %vm3626 = vweird.f32 %v3619
    %vm3627 = vmor %vm3625, %vm3626
    %v3628 = vsel %vm3627, %v3619, %v3624
    %v3629 = vrsqrt.pop %v3598
    %v3630 = vmul.f32 %v3629, %v3598
    %v3631 = vmul.f32 %v3630, %v3629
    %v3632 = vmul.f32 0.5, %v3631
    %v3633 = vsub.f32 1.5, %v3632
    %v3634 = vmul.f32 %v3629, %v3633
    %vm3635 = vweird.f32 %v3598
    %vm3636 = vweird.f32 %v3629
    %vm3637 = vmor %vm3635, %vm3636
    %v3638 = vsel %vm3637, %v3629, %v3634
    %v3639 = vmul.f32 %v3591, %v3608
    %v3640 = vmul.f32 %v3592, %v3618
    %v3641 = vmul.f32 %v3593, %v3628
    %v3642 = vmul.f32 %v3594, %v3638
    %v3643 = vld [vmem:[%s20] sm:$0x1]
    %v3645 = vperm.slane %v3643, 0
    %v3647 = vmul.f32 %v3639, %v3645
    %v3648 = vmul.f32 %v3640, %v3645
    %v3649 = vmul.f32 %v3641, %v3645
    %v3650 = vmul.f32 %v3642, %v3645
    %v3651 = vld [vmem:[%s21] sm:$0x1]
    %v3653 = vperm.slane %v3651, 0
    %v3655 = vadd.f32 %v3647, %v3653
    %v3656 = vadd.f32 %v3648, %v3653
    %v3657 = vadd.f32 %v3649, %v3653
    %v3658 = vadd.f32 %v3650, %v3653
    %v3659 = vld [vmem:[#allocation10] sm:$0xff]
    %v3660 = vld [vmem:[#allocation10 + $0x8] sm:$0xff]
    %v3661 = vld [vmem:[#allocation10 + $0x10] sm:$0xff]
    %v3662 = vld [vmem:[#allocation10 + $0x18] sm:$0xff]
    %v3663 = vld [vmem:[#allocation10 + $0x20] sm:$0xff]
    %v3664 = vld [vmem:[#allocation10 + $0x28] sm:$0xff]
    %v3665 = vld [vmem:[#allocation10 + $0x30] sm:$0xff]
    %v3666 = vld [vmem:[#allocation10 + $0x38] sm:$0xff]
    %v3667 = vld [vmem:[#allocation10 + $0x40] sm:$0xff]
    %v3668 = vld [vmem:[#allocation10 + $0x48] sm:$0xff]
    %v3669 = vld [vmem:[#allocation10 + $0x50] sm:$0xff]
    %v3670 = vld [vmem:[#allocation10 + $0x58] sm:$0xff]
    %v3671 = vld [vmem:[#allocation10 + $0x60] sm:$0xff]
    %v3672 = vld [vmem:[#allocation10 + $0x68] sm:$0xff]
    %v3673 = vld [vmem:[#allocation10 + $0x70] sm:$0xff]
    %v3674 = vld [vmem:[#allocation10 + $0x78] sm:$0xff]
    %v3675 = vld [vmem:[#allocation10 + $0x80] sm:$0xff]
    %v3676 = vld [vmem:[#allocation10 + $0x88] sm:$0xff]
    %v3677 = vld [vmem:[#allocation10 + $0x90] sm:$0xff]
    %v3678 = vld [vmem:[#allocation10 + $0x98] sm:$0xff]
    %v3679 = vld [vmem:[#allocation10 + $0xa0] sm:$0xff]
    %v3680 = vld [vmem:[#allocation10 + $0xa8] sm:$0xff]
    %v3681 = vld [vmem:[#allocation10 + $0xb0] sm:$0xff]
    %v3682 = vld [vmem:[#allocation10 + $0xb8] sm:$0xff]
    %v3683 = vld [vmem:[#allocation10 + $0xc0] sm:$0xff]
    %v3684 = vld [vmem:[#allocation10 + $0xc8] sm:$0xff]
    %v3685 = vld [vmem:[#allocation10 + $0xd0] sm:$0xff]
    %v3686 = vld [vmem:[#allocation10 + $0xd8] sm:$0xff]
    %v3687 = vld [vmem:[#allocation10 + $0xe0] sm:$0xff]
    %v3688 = vld [vmem:[#allocation10 + $0xe8] sm:$0xff]
    %v3689 = vld [vmem:[#allocation10 + $0xf0] sm:$0xff]
    %v3690 = vld [vmem:[#allocation10 + $0xf8] sm:$0xff]
    %v3691 = vld [vmem:[%s23] sm:$0x3]
    %v3693 = vperm.slane %v3691, 0
    %v3694 = vperm.slane %v3691, 1
    %3697 = vmatpush.msra.mxu0 %v3689
    %3698 = vmatpush.msra.mxu0 %v3687
    %3699 = vmatpush.msra.mxu0 %v3685
    %3700 = vmatpush.msra.mxu0 %v3683
    %3701 = vmatpush.msra.mxu0 %v3681
    %3702 = vmatpush.msra.mxu0 %v3679
    %3703 = vmatpush.msra.mxu0 %v3677
    %3704 = vmatpush.msra.mxu0 %v3675
    %3705 = vmatpush.msra.mxu0 %v3673
    %3706 = vmatpush.msra.mxu0 %v3671
    %3707 = vmatpush.msra.mxu0 %v3669
    %3708 = vmatpush.msra.mxu0 %v3667
    %3709 = vmatpush.msra.mxu0 %v3665
    %3710 = vmatpush.msra.mxu0 %v3663
    %3711 = vmatpush.msra.mxu0 %v3661
    %3712 = vmatpush.msra.mxu0 %v3659
    %3713 = vmatmul.f32.gmra.mxu0 %v3655
    %v3714 = vpop.f32.mrf.mxu0
    %v3715 = vadd.f32 %v3693, %v3714
    %3716 = vmatmul.f32.gmra.mxu0 %v3656
    %v3717 = vpop.f32.mrf.mxu0
    %v3718 = vadd.f32 %v3693, %v3717
    %3719 = vmatmul.f32.gmra.mxu0 %v3657
    %v3720 = vpop.f32.mrf.mxu0
    %v3721 = vadd.f32 %v3693, %v3720
    %3722 = vmatmul.f32.gmra.mxu0 %v3658
    %v3723 = vpop.f32.mrf.mxu0
    %v3724 = vadd.f32 %v3693, %v3723
    %3725 = vdwg.mxu0
    %3726 = vmatpush.msra.mxu0 %v3690
    %3727 = vmatpush.msra.mxu0 %v3688
    %3728 = vmatpush.msra.mxu0 %v3686
    %3729 = vmatpush.msra.mxu0 %v3684
    %3730 = vmatpush.msra.mxu0 %v3682
    %3731 = vmatpush.msra.mxu0 %v3680
    %3732 = vmatpush.msra.mxu0 %v3678
    %3733 = vmatpush.msra.mxu0 %v3676
    %3734 = vmatpush.msra.mxu0 %v3674
    %3735 = vmatpush.msra.mxu0 %v3672
    %3736 = vmatpush.msra.mxu0 %v3670
    %3737 = vmatpush.msra.mxu0 %v3668
    %3738 = vmatpush.msra.mxu0 %v3666
    %3739 = vmatpush.msra.mxu0 %v3664
    %3740 = vmatpush.msra.mxu0 %v3662
    %3741 = vmatpush.msra.mxu0 %v3660
    %3742 = vmatmul.f32.gmra.mxu0 %v3655
    %v3743 = vpop.f32.mrf.mxu0
    %v3744 = vadd.f32 %v3694, %v3743
    %3745 = vmatmul.f32.gmra.mxu0 %v3656
    %v3746 = vpop.f32.mrf.mxu0
    %v3747 = vadd.f32 %v3694, %v3746
    %3748 = vmatmul.f32.gmra.mxu0 %v3657
    %v3749 = vpop.f32.mrf.mxu0
    %v3750 = vadd.f32 %v3694, %v3749
    %3751 = vmatmul.f32.gmra.mxu0 %v3658
    %v3752 = vpop.f32.mrf.mxu0
    %v3753 = vadd.f32 %v3694, %v3752
    %3754 = vdwg.mxu0
    %v3755 = vmul.f32 %v3715, 0.5
    %v3756 = vmul.f32 %v3744, 0.5
    %v3757 = vmul.f32 %v3718, 0.5
    %v3758 = vmul.f32 %v3747, 0.5
    %v3759 = vmul.f32 %v3721, 0.5
    %v3760 = vmul.f32 %v3750, 0.5
    %v3761 = vmul.f32 %v3724, 0.5
    %v3762 = vmul.f32 %v3753, 0.5
    %v3763 = vmul.f32 %v3715, 0.044715
    %v3764 = vmul.f32 %v3744, 0.044715
    %v3765 = vmul.f32 %v3718, 0.044715
    %v3766 = vmul.f32 %v3747, 0.044715
    %v3767 = vmul.f32 %v3721, 0.044715
    %v3768 = vmul.f32 %v3750, 0.044715
    %v3769 = vmul.f32 %v3724, 0.044715
    %v3770 = vmul.f32 %v3753, 0.044715
    %v3771 = vmul.f32 %v3763, %v3715
    %v3772 = vmul.f32 %v3764, %v3744
    %v3773 = vmul.f32 %v3765, %v3718
    %v3774 = vmul.f32 %v3766, %v3747
    %v3775 = vmul.f32 %v3767, %v3721
    %v3776 = vmul.f32 %v3768, %v3750
    %v3777 = vmul.f32 %v3769, %v3724
    %v3778 = vmul.f32 %v3770, %v3753
    %v3779 = vmul.f32 %v3771, %v3715
    %v3780 = vmul.f32 %v3772, %v3744
    %v3781 = vmul.f32 %v3773, %v3718
    %v3782 = vmul.f32 %v3774, %v3747
    %v3783 = vmul.f32 %v3775, %v3721
    %v3784 = vmul.f32 %v3776, %v3750
    %v3785 = vmul.f32 %v3777, %v3724
    %v3786 = vmul.f32 %v3778, %v3753
    %v3787 = vadd.f32 %v3715, %v3779
    %v3788 = vadd.f32 %v3744, %v3780
    %v3789 = vadd.f32 %v3718, %v3781
    %v3790 = vadd.f32 %v3747, %v3782
    %v3791 = vadd.f32 %v3721, %v3783
    %v3792 = vadd.f32 %v3750, %v3784
    %v3793 = vadd.f32 %v3724, %v3785
    %v3794 = vadd.f32 %v3753, %v3786
    %v3795 = vmul.f32 %v3787, 0.7978846
    %v3796 = vmul.f32 %v3788, 0.7978846
    %v3797 = vmul.f32 %v3789, 0.7978846
    %v3798 = vmul.f32 %v3790, 0.7978846
    %v3799 = vmul.f32 %v3791, 0.7978846
    %v3800 = vmul.f32 %v3792, 0.7978846
    %v3801 = vmul.f32 %v3793, 0.7978846
    %v3802 = vmul.f32 %v3794, 0.7978846
    %v3803 = vtanh.pop %v3795
    %v3804 = vtanh.pop %v3796
    %v3805 = vtanh.pop %v3797
    %v3806 = vtanh.pop %v3798
    %v3807 = vtanh.pop %v3799
    %v3808 = vtanh.pop %v3800
    %v3809 = vtanh.pop %v3801
    %v3810 = vtanh.pop %v3802
    %v3811 = vadd.f32 %v3803, 1.0
    %v3812 = vadd.f32 %v3804, 1.0
    %v3813 = vadd.f32 %v3805, 1.0
    %v3814 = vadd.f32 %v3806, 1.0
    %v3815 = vadd.f32 %v3807, 1.0
    %v3816 = vadd.f32 %v3808, 1.0
    %v3817 = vadd.f32 %v3809, 1.0
    %v3818 = vadd.f32 %v3810, 1.0
    %v3819 = vmul.f32 %v3755, %v3811
    %v3820 = vmul.f32 %v3756, %v3812
    %v3821 = vmul.f32 %v3757, %v3813
    %v3822 = vmul.f32 %v3758, %v3814
    %v3823 = vmul.f32 %v3759, %v3815
    %v3824 = vmul.f32 %v3760, %v3816
    %v3825 = vmul.f32 %v3761, %v3817
    %v3826 = vmul.f32 %v3762, %v3818
    %v3827 = vld [vmem:[#allocation12] sm:$0xff]
    %v3828 = vld [vmem:[#allocation12 + $0x8] sm:$0xff]
    %v3829 = vld [vmem:[#allocation12 + $0x10] sm:$0xff]
    %v3830 = vld [vmem:[#allocation12 + $0x18] sm:$0xff]
    %v3831 = vld [vmem:[#allocation12 + $0x20] sm:$0xff]
    %v3832 = vld [vmem:[#allocation12 + $0x28] sm:$0xff]
    %v3833 = vld [vmem:[#allocation12 + $0x30] sm:$0xff]
    %v3834 = vld [vmem:[#allocation12 + $0x38] sm:$0xff]
    %v3835 = vld [vmem:[#allocation12 + $0x40] sm:$0xff]
    %v3836 = vld [vmem:[#allocation12 + $0x48] sm:$0xff]
    %v3837 = vld [vmem:[#allocation12 + $0x50] sm:$0xff]
    %v3838 = vld [vmem:[#allocation12 + $0x58] sm:$0xff]
    %v3839 = vld [vmem:[#allocation12 + $0x60] sm:$0xff]
    %v3840 = vld [vmem:[#allocation12 + $0x68] sm:$0xff]
    %v3841 = vld [vmem:[#allocation12 + $0x70] sm:$0xff]
    %v3842 = vld [vmem:[#allocation12 + $0x78] sm:$0xff]
    %v3843 = vld [vmem:[#allocation12 + $0x80] sm:$0xff]
    %v3844 = vld [vmem:[#allocation12 + $0x88] sm:$0xff]
    %v3845 = vld [vmem:[#allocation12 + $0x90] sm:$0xff]
    %v3846 = vld [vmem:[#allocation12 + $0x98] sm:$0xff]
    %v3847 = vld [vmem:[#allocation12 + $0xa0] sm:$0xff]
    %v3848 = vld [vmem:[#allocation12 + $0xa8] sm:$0xff]
    %v3849 = vld [vmem:[#allocation12 + $0xb0] sm:$0xff]
    %v3850 = vld [vmem:[#allocation12 + $0xb8] sm:$0xff]
    %v3851 = vld [vmem:[#allocation12 + $0xc0] sm:$0xff]
    %v3852 = vld [vmem:[#allocation12 + $0xc8] sm:$0xff]
    %v3853 = vld [vmem:[#allocation12 + $0xd0] sm:$0xff]
    %v3854 = vld [vmem:[#allocation12 + $0xd8] sm:$0xff]
    %v3855 = vld [vmem:[#allocation12 + $0xe0] sm:$0xff]
    %v3856 = vld [vmem:[#allocation12 + $0xe8] sm:$0xff]
    %v3857 = vld [vmem:[#allocation12 + $0xf0] sm:$0xff]
    %v3858 = vld [vmem:[#allocation12 + $0xf8] sm:$0xff]
    %v3859 = vld [vmem:[%s25] sm:$0x1]
    %v3861 = vperm.slane %v3859, 0
    %3863 = vmatpush.msra.mxu0 %v3842
    %3864 = vmatpush.msra.mxu0 %v3841
    %3865 = vmatpush.msra.mxu0 %v3840
    %3866 = vmatpush.msra.mxu0 %v3839
    %3867 = vmatpush.msra.mxu0 %v3838
    %3868 = vmatpush.msra.mxu0 %v3837
    %3869 = vmatpush.msra.mxu0 %v3836
    %3870 = vmatpush.msra.mxu0 %v3835
    %3871 = vmatpush.msra.mxu0 %v3834
    %3872 = vmatpush.msra.mxu0 %v3833
    %3873 = vmatpush.msra.mxu0 %v3832
    %3874 = vmatpush.msra.mxu0 %v3831
    %3875 = vmatpush.msra.mxu0 %v3830
    %3876 = vmatpush.msra.mxu0 %v3829
    %3877 = vmatpush.msra.mxu0 %v3828
    %3878 = vmatpush.msra.mxu0 %v3827
    %3879 = vmatmul.f32.gmra.mxu0 %v3819
    %v3880 = vpop.f32.mrf.mxu0
    %v3881 = vadd.f32 %v3861, %v3880
    %3882 = vmatmul.f32.gmra.mxu0 %v3821
    %v3883 = vpop.f32.mrf.mxu0
    %v3884 = vadd.f32 %v3861, %v3883
    %3885 = vmatmul.f32.gmra.mxu0 %v3823
    %v3886 = vpop.f32.mrf.mxu0
    %v3887 = vadd.f32 %v3861, %v3886
    %3888 = vmatmul.f32.gmra.mxu0 %v3825
    %v3889 = vpop.f32.mrf.mxu0
    %v3890 = vadd.f32 %v3861, %v3889
    %3891 = vdwg.mxu0
    %3892 = vmatpush.msra.mxu0 %v3858
    %3893 = vmatpush.msra.mxu0 %v3857
    %3894 = vmatpush.msra.mxu0 %v3856
    %3895 = vmatpush.msra.mxu0 %v3855
    %3896 = vmatpush.msra.mxu0 %v3854
    %3897 = vmatpush.msra.mxu0 %v3853
    %3898 = vmatpush.msra.mxu0 %v3852
    %3899 = vmatpush.msra.mxu0 %v3851
    %3900 = vmatpush.msra.mxu0 %v3850
    %3901 = vmatpush.msra.mxu0 %v3849
    %3902 = vmatpush.msra.mxu0 %v3848
    %3903 = vmatpush.msra.mxu0 %v3847
    %3904 = vmatpush.msra.mxu0 %v3846
    %3905 = vmatpush.msra.mxu0 %v3845
    %3906 = vmatpush.msra.mxu0 %v3844
    %3907 = vmatpush.msra.mxu0 %v3843
    %3908 = vmatmul.f32.gmra.mxu0 %v3820
    %v3909 = vpop.f32.mrf.mxu0
    %v3910 = vadd.f32 %v3881, %v3909
    %3911 = vmatmul.f32.gmra.mxu0 %v3822
    %v3912 = vpop.f32.mrf.mxu0
    %v3913 = vadd.f32 %v3884, %v3912
    %3914 = vmatmul.f32.gmra.mxu0 %v3824
    %v3915 = vpop.f32.mrf.mxu0
    %v3916 = vadd.f32 %v3887, %v3915
    %3917 = vmatmul.f32.gmra.mxu0 %v3826
    %v3918 = vpop.f32.mrf.mxu0
    %v3919 = vadd.f32 %v3890, %v3918
    %3920 = vdwg.mxu0
    %v3921 = vadd.f32 %v3910, %v3655
    %v3922 = vadd.f32 %v3913, %v3656
    %v3923 = vadd.f32 %v3916, %v3657
    %v3924 = vadd.f32 %v3919, %v3658
    %3925 = vadd.xlane.f32.xlu0 %v3921
    %v3926 = vpop.xlane.xlu0 %3925
    %3927 = vadd.xlane.f32.xlu0 %v3922
    %v3928 = vpop.xlane.xlu0 %3927
    %3929 = vadd.xlane.f32.xlu0 %v3923
    %v3930 = vpop.xlane.xlu0 %3929
    %3931 = vadd.xlane.f32.xlu0 %v3924
    %v3932 = vpop.xlane.xlu0 %3931
    %v3933 = vmul.f32 %v3926, %v216
    %v3934 = vmul.f32 %v3928, %v216
    %v3935 = vmul.f32 %v3930, %v216
    %v3936 = vmul.f32 %v3932, %v216
    %v3937 = vmul.f32 %v3921, %v3921
    %v3938 = vmul.f32 %v3922, %v3922
    %v3939 = vmul.f32 %v3923, %v3923
    %v3940 = vmul.f32 %v3924, %v3924
    %3941 = vadd.xlane.f32.xlu0 %v3937
    %v3942 = vpop.xlane.xlu0 %3941
    %3943 = vadd.xlane.f32.xlu0 %v3938
    %v3944 = vpop.xlane.xlu0 %3943
    %3945 = vadd.xlane.f32.xlu0 %v3939
    %v3946 = vpop.xlane.xlu0 %3945
    %3947 = vadd.xlane.f32.xlu0 %v3940
    %v3948 = vpop.xlane.xlu0 %3947
    %v3949 = vmul.f32 %v3942, %v216
    %v3950 = vmul.f32 %v3944, %v216
    %v3951 = vmul.f32 %v3946, %v216
    %v3952 = vmul.f32 %v3948, %v216
    %v3953 = vmul.f32 %v3933, %v3933
    %v3954 = vmul.f32 %v3934, %v3934
    %v3955 = vmul.f32 %v3935, %v3935
    %v3956 = vmul.f32 %v3936, %v3936
    %v3957 = vsub.f32 %v3949, %v3953
    %v3958 = vsub.f32 %v3950, %v3954
    %v3959 = vsub.f32 %v3951, %v3955
    %v3960 = vsub.f32 %v3952, %v3956
    %v3961 = vmax.f32 %v3957, 0.0
    %v3962 = vmax.f32 %v3958, 0.0
    %v3963 = vmax.f32 %v3959, 0.0
    %v3964 = vmax.f32 %v3960, 0.0
    %v3965 = vsub.f32 %v3921, %v3933
    %v3966 = vsub.f32 %v3922, %v3934
    %v3967 = vsub.f32 %v3923, %v3935
    %v3968 = vsub.f32 %v3924, %v3936
    %v3969 = vadd.f32 %v3961, 1e-12
    %v3970 = vadd.f32 %v3962, 1e-12
    %v3971 = vadd.f32 %v3963, 1e-12
    %v3972 = vadd.f32 %v3964, 1e-12
    %v3973 = vrsqrt.pop %v3969
    %v3974 = vmul.f32 %v3973, %v3969
    %v3975 = vmul.f32 %v3974, %v3973
    %v3976 = vmul.f32 0.5, %v3975
    %v3977 = vsub.f32 1.5, %v3976
    %v3978 = vmul.f32 %v3973, %v3977
    %vm3979 = vweird.f32 %v3969
    %vm3980 = vweird.f32 %v3973
    %vm3981 = vmor %vm3979, %vm3980
    %v3982 = vsel %vm3981, %v3973, %v3978
    %v3983 = vrsqrt.pop %v3970
    %v3984 = vmul.f32 %v3983, %v3970
    %v3985 = vmul.f32 %v3984, %v3983
    %v3986 = vmul.f32 0.5, %v3985
    %v3987 = vsub.f32 1.5, %v3986
    %v3988 = vmul.f32 %v3983, %v3987
    %vm3989 = vweird.f32 %v3970
    %vm3990 = vweird.f32 %v3983
    %vm3991 = vmor %vm3989, %vm3990
    %v3992 = vsel %vm3991, %v3983, %v3988
    %v3993 = vrsqrt.pop %v3971
    %v3994 = vmul.f32 %v3993, %v3971
    %v3995 = vmul.f32 %v3994, %v3993
    %v3996 = vmul.f32 0.5, %v3995
    %v3997 = vsub.f32 1.5, %v3996
    %v3998 = vmul.f32 %v3993, %v3997
    %vm3999 = vweird.f32 %v3971
    %vm4000 = vweird.f32 %v3993
    %vm4001 = vmor %vm3999, %vm4000
    %v4002 = vsel %vm4001, %v3993, %v3998
    %v4003 = vrsqrt.pop %v3972
    %v4004 = vmul.f32 %v4003, %v3972
    %v4005 = vmul.f32 %v4004, %v4003
    %v4006 = vmul.f32 0.5, %v4005
    %v4007 = vsub.f32 1.5, %v4006
    %v4008 = vmul.f32 %v4003, %v4007
    %vm4009 = vweird.f32 %v3972
    %vm4010 = vweird.f32 %v4003
    %vm4011 = vmor %vm4009, %vm4010
    %v4012 = vsel %vm4011, %v4003, %v4008
    %v4013 = vmul.f32 %v3965, %v3982
    %v4014 = vmul.f32 %v3966, %v3992
    %v4015 = vmul.f32 %v3967, %v4002
    %v4016 = vmul.f32 %v3968, %v4012
    %v4017 = vld [vmem:[%s26] sm:$0x1]
    %v4019 = vperm.slane %v4017, 0
    %v4021 = vmul.f32 %v4013, %v4019
    %v4022 = vmul.f32 %v4014, %v4019
    %v4023 = vmul.f32 %v4015, %v4019
    %v4024 = vmul.f32 %v4016, %v4019
    %v4025 = vld [vmem:[%s27] sm:$0x1]
    %v4027 = vperm.slane %v4025, 0
    %v4029 = vadd.f32 %v4021, %v4027
    %v4030 = vadd.f32 %v4022, %v4027
    %v4031 = vadd.f32 %v4023, %v4027
    %v4032 = vadd.f32 %v4024, %v4027
    %4033 = vst [vmem:[%s28] sm:$0xff] %v4029
    %4034 = vst [vmem:[%s28 + $0x8] sm:$0xff] %v4030
    %4035 = vst [vmem:[%s28 + $0x10] sm:$0xff] %v4031
    %4036 = vst [vmem:[%s28 + $0x18] sm:$0xff] %v4032
    // Predicated region
    $region142: #{_lambda_.1} parent=1 // pred_check
      _
    $region143: #{_lambda_.1} parent=1 // pred_check_branch
      %4038 = sbr.rel (0) target = $region145
    $region144: #{_lambda_.1} parent=1 // pred_region
      _
    $region145: #{_lambda_.1} parent=1 // pred_fallthru
      _
    // Predicated region
    $region146: #{_lambda_.1} parent=1 // pred_check
      _
    $region147: #{_lambda_.1} parent=1 // pred_check_branch
      %4040 = sbr.rel (0) target = $region149
    $region148: #{_lambda_.1} parent=1 // pred_region
      _
    $region149: #{_lambda_.1} parent=1 // pred_fallthru
      _
    %4041 = vsyncpa [#allocation3], 1
    %4042 = vsyncpa [#allocation5], 1
    %4043 = vsyncpa [#allocation8], 1
    %4044 = vsyncpa [#allocation11], 1

</llo_original>
